<compile_context>
chip_gen: v6e
topology: v6e:2x2x1
jax: 0.10.0
libtpu: 0.0.40
codegen_flags: <defaults>
</compile_context>

<pallas_src>
import numpy as np
import jax
import jax.numpy as jnp
from jax.experimental import pallas as pl
from jax.experimental.pallas import tpu as pltpu


def _make_tcn_kernel(dilations, P, eps):
    """Build the fused TCN kernel for a static list of per-block dilations."""

    def kernel(x_ref, w1_ref, a1_ref, g1_ref, b1_ref, wd_ref, a2_ref,
               g2_ref, b2_ref, wo_ref, ws_ref, out_ref):
        # x_ref: [B, T] (one batch sample; channels on sublanes, time on lanes)
        top = x_ref[...].astype(jnp.float32)   # "output" path of previous block
        bot = None                             # "skip" path of previous block

        for i, dilation in enumerate(dilations):
            pad = (P - 1) * dilation // 2
            # PyTorch block: residual = x[:, B:, :] (prev skip) after block 0,
            #                skipped  = x[:, :B, :] (prev output)
            residual = top if bot is None else bot

            # ---- 1x1 conv (B -> H): [H, B] @ [B, T] on the MXU ----
            y = jnp.dot(w1_ref[i], residual, preferred_element_type=jnp.float32)

            # ---- PReLU (single shared alpha) ----
            a1 = a1_ref[i]
            y = jnp.where(y >= 0, y, a1 * y)

            # ---- GroupNorm(1, H): normalize over (channels, time) ----
            mean = jnp.mean(y)
            cen = y - mean
            var = jnp.mean(cen * cen)
            y = cen * jax.lax.rsqrt(var + eps) * g1_ref[i] + b1_ref[i]

            # ---- depthwise dilated conv, "same" padding, static unroll ----
            Hh, T = y.shape
            if pad > 0:
                zp = jnp.zeros((Hh, pad), jnp.float32)
                yp = jnp.concatenate([zp, y, zp], axis=1)    # [H, T + 2*pad]
            else:
                yp = y
            wd = wd_ref[i]                                   # [H, P]
            acc = wd[:, 0:1] * yp[:, 0:T]
            for p in range(1, P):
                acc = acc + wd[:, p:p + 1] * yp[:, p * dilation:p * dilation + T]
            y = acc

            # ---- PReLU2 + GroupNorm2 ----
            a2 = a2_ref[i]
            y = jnp.where(y >= 0, y, a2 * y)
            mean = jnp.mean(y)
            cen = y - mean
            var = jnp.mean(cen * cen)
            y = cen * jax.lax.rsqrt(var + eps) * g2_ref[i] + b2_ref[i]

            # ---- output / skip 1x1 convs (MXU) ----
            out = jnp.dot(wo_ref[i], y, preferred_element_type=jnp.float32) + residual
            sk = jnp.dot(ws_ref[i], y, preferred_element_type=jnp.float32)
            if bot is not None:
                sk = sk + top          # skip_connection += skipped

            top, bot = out, sk

        # TemporalConvNet returns network(x)[:, B:, :] == final skip path.
        out_ref[...] = bot.astype(out_ref.dtype)

    return kernel


def tcn_forward(mixture_w, params, *, B, Sc, H, P, X, R, eps=1e-8):
    """Fused Pallas TemporalConvNet forward.

    mixture_w: [Bs, B, T]
    params: list of R*X tuples
        (W1 [H,B], a1 (), g1 [H], b1 [H], Wd [H,P], a2 (), g2 [H], b2 [H],
         Wo [B,H], Ws [Sc,H])
    returns [Bs, Sc, T]
    """
    assert B == Sc, "module semantics require Sc == B"
    Bs, Bin, T = mixture_w.shape
    assert Bin == B
    RX = R * X
    assert len(params) == RX
    dilations = tuple(2 ** xi for _ in range(R) for xi in range(X))
    for d in dilations:
        assert ((P - 1) * d) % 2 == 0, "non-causal 'same' padding needs (P-1)*dilation even"

    f32 = jnp.float32
    W1s = jnp.stack([p[0] for p in params]).astype(f32)               # [RX, H, B]
    A1 = jnp.stack([jnp.asarray(p[1], f32) for p in params])          # [RX]
    G1 = jnp.stack([p[2] for p in params]).astype(f32)[..., None]     # [RX, H, 1]
    B1 = jnp.stack([p[3] for p in params]).astype(f32)[..., None]     # [RX, H, 1]
    Wds = jnp.stack([p[4] for p in params]).astype(f32)               # [RX, H, P]
    A2 = jnp.stack([jnp.asarray(p[5], f32) for p in params])          # [RX]
    G2 = jnp.stack([p[6] for p in params]).astype(f32)[..., None]     # [RX, H, 1]
    B2 = jnp.stack([p[7] for p in params]).astype(f32)[..., None]     # [RX, H, 1]
    Wos = jnp.stack([p[8] for p in params]).astype(f32)               # [RX, B, H]
    Wss = jnp.stack([p[9] for p in params]).astype(f32)               # [RX, Sc, H]

    x = mixture_w.astype(f32)

    kernel = _make_tcn_kernel(dilations, P, eps)

    def full(shape):
        return pl.BlockSpec(shape, lambda b, _n=len(shape): (0,) * _n)

    smem = pl.BlockSpec(memory_space=pltpu.MemorySpace.SMEM)

    out = pl.pallas_call(
        kernel,
        out_shape=jax.ShapeDtypeStruct((Bs, Sc, T), f32),
        grid_spec=pltpu.PrefetchScalarGridSpec(
            num_scalar_prefetch=0,
            grid=(Bs,),
            in_specs=[
                pl.BlockSpec((None, B, T), lambda b: (b, 0, 0)),   # per-sample input
                full((RX, H, B)),      # W1 stack
                smem,                  # PReLU alpha 1 stack
                full((RX, H, 1)),      # gamma1
                full((RX, H, 1)),      # beta1
                full((RX, H, P)),      # depthwise weights
                smem,                  # PReLU alpha 2 stack
                full((RX, H, 1)),      # gamma2
                full((RX, H, 1)),      # beta2
                full((RX, B, H)),      # output 1x1 stack
                full((RX, Sc, H)),     # skip 1x1 stack
            ],
            out_specs=pl.BlockSpec((None, Sc, T), lambda b: (b, 0, 0)),
        ),
        compiler_params=pltpu.CompilerParams(
            dimension_semantics=("parallel",),
        ),
    )(x, W1s, A1, G1, B1, Wds, A2, G2, B2, Wos, Wss)
    return out


def _ref_tcn(mixture_w, params, B, Sc, P, X, R, eps=1e-8):
    """Literal numpy translation of the PyTorch TemporalConvNet forward (f64)."""
    x = np.asarray(mixture_w, dtype=np.float64)
    idx = 0
    for _r in range(R):
        for xi in range(X):
            dilation = 2 ** xi
            W1, a1, g1, b1, Wd, a2, g2, b2, Wo, Ws = [
                np.asarray(t, np.float64) for t in params[idx]]
            idx += 1
            if x.shape[1] != B:
                residual = x[:, B:, :]
                skipped = x[:, :B, :]
            else:
                residual = x
                skipped = None
            pad = (P - 1) * dilation // 2
            y = np.einsum('hb,nbt->nht', W1, residual)
            y = np.where(y >= 0, y, a1 * y)
            mean = y.mean(axis=(1, 2), keepdims=True)
            var = ((y - mean) ** 2).mean(axis=(1, 2), keepdims=True)
            y = (y - mean) / np.sqrt(var + eps) * g1[None, :, None] + b1[None, :, None]
            Bs_, H_, T_ = y.shape
            yp = np.pad(y, ((0, 0), (0, 0), (pad, pad)))
            dw = np.zeros_like(y)
            for p in range(P):
                dw += Wd[None, :, p:p + 1] * yp[:, :, p * dilation:p * dilation + T_]
            y = dw
            y = np.where(y >= 0, y, a2 * y)
            mean = y.mean(axis=(1, 2), keepdims=True)
            var = ((y - mean) ** 2).mean(axis=(1, 2), keepdims=True)
            y = (y - mean) / np.sqrt(var + eps) * g2[None, :, None] + b2[None, :, None]
            output = np.einsum('bh,nht->nbt', Wo, y) + residual
            skip = np.einsum('sh,nht->nst', Ws, y)
            if skipped is not None:
                skip = skip + skipped
            x = np.concatenate([output, skip], axis=1)
    return x[:, B:, :]


if __name__ == "__main__":
    # Small shapes consistent with the module: batch=2, bottleneck B=Sc=8,
    # hidden H=32, depthwise kernel P=3, X=2 dilation stages, R=2 repeats,
    # T=128 time frames (lane-aligned).
    Bs, Bc, Sc, H, P, X, R, T = 2, 8, 8, 32, 3, 2, 2, 128
    RX = R * X

    key = jax.random.PRNGKey(0)
    keys = jax.random.split(key, 1 + RX)
    mixture_w = jax.random.normal(keys[0], (Bs, Bc, T), dtype=jnp.float32)

    params = []
    for i in range(RX):
        ks = jax.random.split(keys[1 + i], 8)
        W1 = jax.random.normal(ks[0], (H, Bc), dtype=jnp.float32) / np.sqrt(Bc)
        a1 = jnp.asarray(0.25, jnp.float32)
        g1 = 1.0 + 0.1 * jax.random.normal(ks[1], (H,), dtype=jnp.float32)
        b1 = 0.1 * jax.random.normal(ks[2], (H,), dtype=jnp.float32)
        Wd = jax.random.normal(ks[3], (H, P), dtype=jnp.float32) / np.sqrt(P)
        a2 = jnp.asarray(0.2, jnp.float32)
        g2 = 1.0 + 0.1 * jax.random.normal(ks[4], (H,), dtype=jnp.float32)
        b2 = 0.1 * jax.random.normal(ks[5], (H,), dtype=jnp.float32)
        Wo = jax.random.normal(ks[6], (Bc, H), dtype=jnp.float32) / np.sqrt(H)
        Ws = jax.random.normal(ks[7], (Sc, H), dtype=jnp.float32) / np.sqrt(H)
        params.append((W1, a1, g1, b1, Wd, a2, g2, b2, Wo, Ws))

    tcn_out = tcn_forward(mixture_w, params, B=Bc, Sc=Sc, H=H, P=P, X=X, R=R)
    tcn_out = jax.block_until_ready(tcn_out)
    assert tcn_out.shape == (Bs, Sc, T), tcn_out.shape

    ref = _ref_tcn(np.asarray(mixture_w), params, Bc, Sc, P, X, R)
    np.testing.assert_allclose(np.asarray(tcn_out), ref, rtol=1e-3, atol=1e-3)

    print("KERNEL_OK")
</pallas_src>

<mosaic_0001>
module attributes {stable_mosaic.version = 11 : i64} {
  func.func @kernel(%arg0: i32, %arg1: memref<1x8x128xf32, #tpu.memory_space<vmem>>, %arg2: memref<4x32x8xf32, #tpu.memory_space<vmem>>, %arg3: memref<4xf32, #tpu.memory_space<smem>>, %arg4: memref<4x32x1xf32, #tpu.memory_space<vmem>>, %arg5: memref<4x32x1xf32, #tpu.memory_space<vmem>>, %arg6: memref<4x32x3xf32, #tpu.memory_space<vmem>>, %arg7: memref<4xf32, #tpu.memory_space<smem>>, %arg8: memref<4x32x1xf32, #tpu.memory_space<vmem>>, %arg9: memref<4x32x1xf32, #tpu.memory_space<vmem>>, %arg10: memref<4x8x32xf32, #tpu.memory_space<vmem>>, %arg11: memref<4x8x32xf32, #tpu.memory_space<vmem>>, %arg12: memref<1x8x128xf32, #tpu.memory_space<vmem>>) attributes {dimension_semantics = [#tpu.dimension_semantics<parallel>], iteration_bounds = array<i64: 2>, scalar_prefetch = 0 : i64, scratch_operands = 0 : i64, tpu.core_type = #tpu.core_type<tc>, window_params = [{transform_indices = @transform_0, window_bounds = array<i64: 1, 8, 128>}, {pipeline_mode = #tpu.pipeline_mode<synchronous>, transform_indices = @transform_1, window_bounds = array<i64: 4, 32, 8>}, {transform_indices = @transform_2, window_bounds = array<i64: 4>}, {pipeline_mode = #tpu.pipeline_mode<synchronous>, transform_indices = @transform_3, window_bounds = array<i64: 4, 32, 1>}, {pipeline_mode = #tpu.pipeline_mode<synchronous>, transform_indices = @transform_4, window_bounds = array<i64: 4, 32, 1>}, {pipeline_mode = #tpu.pipeline_mode<synchronous>, transform_indices = @transform_5, window_bounds = array<i64: 4, 32, 3>}, {transform_indices = @transform_6, window_bounds = array<i64: 4>}, {pipeline_mode = #tpu.pipeline_mode<synchronous>, transform_indices = @transform_7, window_bounds = array<i64: 4, 32, 1>}, {pipeline_mode = #tpu.pipeline_mode<synchronous>, transform_indices = @transform_8, window_bounds = array<i64: 4, 32, 1>}, {pipeline_mode = #tpu.pipeline_mode<synchronous>, transform_indices = @transform_9, window_bounds = array<i64: 4, 8, 32>}, {pipeline_mode = #tpu.pipeline_mode<synchronous>, transform_indices = @transform_10, window_bounds = array<i64: 4, 8, 32>}, {transform_indices = @transform_11, window_bounds = array<i64: 1, 8, 128>}]} {
    %c0 = arith.constant 0 : index
    %c0_0 = arith.constant 0 : index
    %c0_1 = arith.constant 0 : index
    %0 = vector.load %arg1[%c0, %c0_0, %c0_1] : memref<1x8x128xf32, #tpu.memory_space<vmem>>, vector<1x8x128xf32>
    %1 = vector.shape_cast %0 : vector<1x8x128xf32> to vector<8x128xf32>
    %c0_2 = arith.constant 0 : index
    %c0_3 = arith.constant 0 : index
    %c0_4 = arith.constant 0 : index
    %2 = vector.load %arg2[%c0_2, %c0_3, %c0_4] : memref<4x32x8xf32, #tpu.memory_space<vmem>>, vector<1x32x8xf32>
    %3 = vector.shape_cast %2 : vector<1x32x8xf32> to vector<32x8xf32>
    %cst = arith.constant dense<0.000000e+00> : vector<32x128xf32>
    %4 = tpu.matmul %3, %1, %cst {dimension_numbers = #tpu.dot_dimension_numbers<[1], [0], [0], [1], [0, 0, 1, 1], [], []>} : vector<32x8xf32>, vector<8x128xf32>, vector<32x128xf32> -> vector<32x128xf32>
    %c0_5 = arith.constant 0 : index
    %5 = memref.load %arg3[%c0_5] : memref<4xf32, #tpu.memory_space<smem>>
    %cst_6 = arith.constant 0.000000e+00 : f32
    %6 = vector.broadcast %cst_6 : f32 to vector<32x128xf32>
    %7 = arith.cmpf oge, %4, %6 : vector<32x128xf32>
    %8 = vector.broadcast %5 : f32 to vector<32x128xf32>
    %9 = arith.mulf %8, %4 : vector<32x128xf32>
    %10 = arith.select %7, %4, %9 : vector<32x128xi1>, vector<32x128xf32>
    %11 = vector.shape_cast %10 : vector<32x128xf32> to vector<1x32x128xf32>
    %cst_7 = arith.constant dense<0.000000e+00> : vector<1xf32>
    %12 = vector.multi_reduction <add>, %11, %cst_7 [1, 2] : vector<1x32x128xf32> to vector<1xf32>
    %13 = vector.shape_cast %12 : vector<1xf32> to vector<1x1x1xf32>
    %14 = vector.extract %13[0, 0, 0] : f32 from vector<1x1x1xf32>
    %cst_8 = arith.constant 4.096000e+03 : f32
    %15 = arith.divf %14, %cst_8 : f32
    %16 = vector.broadcast %15 : f32 to vector<32x128xf32>
    %17 = arith.subf %10, %16 : vector<32x128xf32>
    %18 = arith.mulf %17, %17 : vector<32x128xf32>
    %19 = vector.shape_cast %18 : vector<32x128xf32> to vector<1x32x128xf32>
    %cst_9 = arith.constant dense<0.000000e+00> : vector<1xf32>
    %20 = vector.multi_reduction <add>, %19, %cst_9 [1, 2] : vector<1x32x128xf32> to vector<1xf32>
    %21 = vector.shape_cast %20 : vector<1xf32> to vector<1x1x1xf32>
    %22 = vector.extract %21[0, 0, 0] : f32 from vector<1x1x1xf32>
    %cst_10 = arith.constant 4.096000e+03 : f32
    %23 = arith.divf %22, %cst_10 : f32
    %cst_11 = arith.constant 9.99999993E-9 : f32
    %24 = arith.addf %23, %cst_11 : f32
    %25 = math.rsqrt %24 : f32
    %26 = vector.broadcast %25 : f32 to vector<32x128xf32>
    %27 = arith.mulf %17, %26 : vector<32x128xf32>
    %c0_12 = arith.constant 0 : index
    %c0_13 = arith.constant 0 : index
    %c0_14 = arith.constant 0 : index
    %28 = vector.load %arg4[%c0_12, %c0_13, %c0_14] : memref<4x32x1xf32, #tpu.memory_space<vmem>>, vector<1x32x1xf32>
    %29 = vector.shape_cast %28 : vector<1x32x1xf32> to vector<32x1xf32>
    %30 = vector.broadcast %29 : vector<32x1xf32> to vector<32x128xf32>
    %31 = arith.mulf %27, %30 : vector<32x128xf32>
    %c0_15 = arith.constant 0 : index
    %c0_16 = arith.constant 0 : index
    %c0_17 = arith.constant 0 : index
    %32 = vector.load %arg5[%c0_15, %c0_16, %c0_17] : memref<4x32x1xf32, #tpu.memory_space<vmem>>, vector<1x32x1xf32>
    %33 = vector.shape_cast %32 : vector<1x32x1xf32> to vector<32x1xf32>
    %34 = vector.broadcast %33 : vector<32x1xf32> to vector<32x128xf32>
    %35 = arith.addf %31, %34 : vector<32x128xf32>
    %cst_18 = arith.constant 0.000000e+00 : f32
    %36 = vector.broadcast %cst_18 : f32 to vector<32x1xf32>
    %37 = tpu.concatenate %36, %35, %36 in 1 : vector<32x1xf32>, vector<32x128xf32>, vector<32x1xf32> -> vector<32x130xf32>
    %c0_19 = arith.constant 0 : index
    %c0_20 = arith.constant 0 : index
    %c0_21 = arith.constant 0 : index
    %38 = vector.load %arg6[%c0_19, %c0_20, %c0_21] : memref<4x32x3xf32, #tpu.memory_space<vmem>>, vector<1x32x3xf32>
    %39 = vector.shape_cast %38 : vector<1x32x3xf32> to vector<32x3xf32>
    %40 = vector.extract_strided_slice %39 {offsets = [0, 0], sizes = [32, 1], strides = [1, 1]} : vector<32x3xf32> to vector<32x1xf32>
    %41 = vector.extract_strided_slice %37 {offsets = [0, 0], sizes = [32, 128], strides = [1, 1]} : vector<32x130xf32> to vector<32x128xf32>
    %42 = vector.broadcast %40 : vector<32x1xf32> to vector<32x128xf32>
    %43 = arith.mulf %42, %41 : vector<32x128xf32>
    %44 = vector.extract_strided_slice %39 {offsets = [0, 1], sizes = [32, 1], strides = [1, 1]} : vector<32x3xf32> to vector<32x1xf32>
    %45 = vector.extract_strided_slice %37 {offsets = [0, 1], sizes = [32, 128], strides = [1, 1]} : vector<32x130xf32> to vector<32x128xf32>
    %46 = vector.broadcast %44 : vector<32x1xf32> to vector<32x128xf32>
    %47 = arith.mulf %46, %45 : vector<32x128xf32>
    %48 = arith.addf %43, %47 : vector<32x128xf32>
    %49 = vector.extract_strided_slice %39 {offsets = [0, 2], sizes = [32, 1], strides = [1, 1]} : vector<32x3xf32> to vector<32x1xf32>
    %50 = vector.extract_strided_slice %37 {offsets = [0, 2], sizes = [32, 128], strides = [1, 1]} : vector<32x130xf32> to vector<32x128xf32>
    %51 = vector.broadcast %49 : vector<32x1xf32> to vector<32x128xf32>
    %52 = arith.mulf %51, %50 : vector<32x128xf32>
    %53 = arith.addf %48, %52 : vector<32x128xf32>
    %c0_22 = arith.constant 0 : index
    %54 = memref.load %arg7[%c0_22] : memref<4xf32, #tpu.memory_space<smem>>
    %cst_23 = arith.constant 0.000000e+00 : f32
    %55 = vector.broadcast %cst_23 : f32 to vector<32x128xf32>
    %56 = arith.cmpf oge, %53, %55 : vector<32x128xf32>
    %57 = vector.broadcast %54 : f32 to vector<32x128xf32>
    %58 = arith.mulf %57, %53 : vector<32x128xf32>
    %59 = arith.select %56, %53, %58 : vector<32x128xi1>, vector<32x128xf32>
    %60 = vector.shape_cast %59 : vector<32x128xf32> to vector<1x32x128xf32>
    %cst_24 = arith.constant dense<0.000000e+00> : vector<1xf32>
    %61 = vector.multi_reduction <add>, %60, %cst_24 [1, 2] : vector<1x32x128xf32> to vector<1xf32>
    %62 = vector.shape_cast %61 : vector<1xf32> to vector<1x1x1xf32>
    %63 = vector.extract %62[0, 0, 0] : f32 from vector<1x1x1xf32>
    %cst_25 = arith.constant 4.096000e+03 : f32
    %64 = arith.divf %63, %cst_25 : f32
    %65 = vector.broadcast %64 : f32 to vector<32x128xf32>
    %66 = arith.subf %59, %65 : vector<32x128xf32>
    %67 = arith.mulf %66, %66 : vector<32x128xf32>
    %68 = vector.shape_cast %67 : vector<32x128xf32> to vector<1x32x128xf32>
    %cst_26 = arith.constant dense<0.000000e+00> : vector<1xf32>
    %69 = vector.multi_reduction <add>, %68, %cst_26 [1, 2] : vector<1x32x128xf32> to vector<1xf32>
    %70 = vector.shape_cast %69 : vector<1xf32> to vector<1x1x1xf32>
    %71 = vector.extract %70[0, 0, 0] : f32 from vector<1x1x1xf32>
    %cst_27 = arith.constant 4.096000e+03 : f32
    %72 = arith.divf %71, %cst_27 : f32
    %cst_28 = arith.constant 9.99999993E-9 : f32
    %73 = arith.addf %72, %cst_28 : f32
    %74 = math.rsqrt %73 : f32
    %75 = vector.broadcast %74 : f32 to vector<32x128xf32>
    %76 = arith.mulf %66, %75 : vector<32x128xf32>
    %c0_29 = arith.constant 0 : index
    %c0_30 = arith.constant 0 : index
    %c0_31 = arith.constant 0 : index
    %77 = vector.load %arg8[%c0_29, %c0_30, %c0_31] : memref<4x32x1xf32, #tpu.memory_space<vmem>>, vector<1x32x1xf32>
    %78 = vector.shape_cast %77 : vector<1x32x1xf32> to vector<32x1xf32>
    %79 = vector.broadcast %78 : vector<32x1xf32> to vector<32x128xf32>
    %80 = arith.mulf %76, %79 : vector<32x128xf32>
    %c0_32 = arith.constant 0 : index
    %c0_33 = arith.constant 0 : index
    %c0_34 = arith.constant 0 : index
    %81 = vector.load %arg9[%c0_32, %c0_33, %c0_34] : memref<4x32x1xf32, #tpu.memory_space<vmem>>, vector<1x32x1xf32>
    %82 = vector.shape_cast %81 : vector<1x32x1xf32> to vector<32x1xf32>
    %83 = vector.broadcast %82 : vector<32x1xf32> to vector<32x128xf32>
    %84 = arith.addf %80, %83 : vector<32x128xf32>
    %c0_35 = arith.constant 0 : index
    %c0_36 = arith.constant 0 : index
    %c0_37 = arith.constant 0 : index
    %85 = vector.load %arg10[%c0_35, %c0_36, %c0_37] : memref<4x8x32xf32, #tpu.memory_space<vmem>>, vector<1x8x32xf32>
    %86 = vector.shape_cast %85 : vector<1x8x32xf32> to vector<8x32xf32>
    %cst_38 = arith.constant dense<0.000000e+00> : vector<8x128xf32>
    %87 = tpu.matmul %86, %84, %cst_38 {dimension_numbers = #tpu.dot_dimension_numbers<[1], [0], [0], [1], [0, 0, 1, 1], [], []>} : vector<8x32xf32>, vector<32x128xf32>, vector<8x128xf32> -> vector<8x128xf32>
    %88 = arith.addf %87, %1 : vector<8x128xf32>
    %c0_39 = arith.constant 0 : index
    %c0_40 = arith.constant 0 : index
    %c0_41 = arith.constant 0 : index
    %89 = vector.load %arg11[%c0_39, %c0_40, %c0_41] : memref<4x8x32xf32, #tpu.memory_space<vmem>>, vector<1x8x32xf32>
    %90 = vector.shape_cast %89 : vector<1x8x32xf32> to vector<8x32xf32>
    %cst_42 = arith.constant dense<0.000000e+00> : vector<8x128xf32>
    %91 = tpu.matmul %90, %84, %cst_42 {dimension_numbers = #tpu.dot_dimension_numbers<[1], [0], [0], [1], [0, 0, 1, 1], [], []>} : vector<8x32xf32>, vector<32x128xf32>, vector<8x128xf32> -> vector<8x128xf32>
    %c1 = arith.constant 1 : index
    %c0_43 = arith.constant 0 : index
    %c0_44 = arith.constant 0 : index
    %92 = vector.load %arg2[%c1, %c0_43, %c0_44] : memref<4x32x8xf32, #tpu.memory_space<vmem>>, vector<1x32x8xf32>
    %93 = vector.shape_cast %92 : vector<1x32x8xf32> to vector<32x8xf32>
    %cst_45 = arith.constant dense<0.000000e+00> : vector<32x128xf32>
    %94 = tpu.matmul %93, %91, %cst_45 {dimension_numbers = #tpu.dot_dimension_numbers<[1], [0], [0], [1], [0, 0, 1, 1], [], []>} : vector<32x8xf32>, vector<8x128xf32>, vector<32x128xf32> -> vector<32x128xf32>
    %c1_46 = arith.constant 1 : index
    %95 = memref.load %arg3[%c1_46] : memref<4xf32, #tpu.memory_space<smem>>
    %cst_47 = arith.constant 0.000000e+00 : f32
    %96 = vector.broadcast %cst_47 : f32 to vector<32x128xf32>
    %97 = arith.cmpf oge, %94, %96 : vector<32x128xf32>
    %98 = vector.broadcast %95 : f32 to vector<32x128xf32>
    %99 = arith.mulf %98, %94 : vector<32x128xf32>
    %100 = arith.select %97, %94, %99 : vector<32x128xi1>, vector<32x128xf32>
    %101 = vector.shape_cast %100 : vector<32x128xf32> to vector<1x32x128xf32>
    %cst_48 = arith.constant dense<0.000000e+00> : vector<1xf32>
    %102 = vector.multi_reduction <add>, %101, %cst_48 [1, 2] : vector<1x32x128xf32> to vector<1xf32>
    %103 = vector.shape_cast %102 : vector<1xf32> to vector<1x1x1xf32>
    %104 = vector.extract %103[0, 0, 0] : f32 from vector<1x1x1xf32>
    %cst_49 = arith.constant 4.096000e+03 : f32
    %105 = arith.divf %104, %cst_49 : f32
    %106 = vector.broadcast %105 : f32 to vector<32x128xf32>
    %107 = arith.subf %100, %106 : vector<32x128xf32>
    %108 = arith.mulf %107, %107 : vector<32x128xf32>
    %109 = vector.shape_cast %108 : vector<32x128xf32> to vector<1x32x128xf32>
    %cst_50 = arith.constant dense<0.000000e+00> : vector<1xf32>
    %110 = vector.multi_reduction <add>, %109, %cst_50 [1, 2] : vector<1x32x128xf32> to vector<1xf32>
    %111 = vector.shape_cast %110 : vector<1xf32> to vector<1x1x1xf32>
    %112 = vector.extract %111[0, 0, 0] : f32 from vector<1x1x1xf32>
    %cst_51 = arith.constant 4.096000e+03 : f32
    %113 = arith.divf %112, %cst_51 : f32
    %cst_52 = arith.constant 9.99999993E-9 : f32
    %114 = arith.addf %113, %cst_52 : f32
    %115 = math.rsqrt %114 : f32
    %116 = vector.broadcast %115 : f32 to vector<32x128xf32>
    %117 = arith.mulf %107, %116 : vector<32x128xf32>
    %c1_53 = arith.constant 1 : index
    %c0_54 = arith.constant 0 : index
    %c0_55 = arith.constant 0 : index
    %118 = vector.load %arg4[%c1_53, %c0_54, %c0_55] : memref<4x32x1xf32, #tpu.memory_space<vmem>>, vector<1x32x1xf32>
    %119 = vector.shape_cast %118 : vector<1x32x1xf32> to vector<32x1xf32>
    %120 = vector.broadcast %119 : vector<32x1xf32> to vector<32x128xf32>
    %121 = arith.mulf %117, %120 : vector<32x128xf32>
    %c1_56 = arith.constant 1 : index
    %c0_57 = arith.constant 0 : index
    %c0_58 = arith.constant 0 : index
    %122 = vector.load %arg5[%c1_56, %c0_57, %c0_58] : memref<4x32x1xf32, #tpu.memory_space<vmem>>, vector<1x32x1xf32>
    %123 = vector.shape_cast %122 : vector<1x32x1xf32> to vector<32x1xf32>
    %124 = vector.broadcast %123 : vector<32x1xf32> to vector<32x128xf32>
    %125 = arith.addf %121, %124 : vector<32x128xf32>
    %cst_59 = arith.constant 0.000000e+00 : f32
    %126 = vector.broadcast %cst_59 : f32 to vector<32x2xf32>
    %127 = tpu.concatenate %126, %125, %126 in 1 : vector<32x2xf32>, vector<32x128xf32>, vector<32x2xf32> -> vector<32x132xf32>
    %c1_60 = arith.constant 1 : index
    %c0_61 = arith.constant 0 : index
    %c0_62 = arith.constant 0 : index
    %128 = vector.load %arg6[%c1_60, %c0_61, %c0_62] : memref<4x32x3xf32, #tpu.memory_space<vmem>>, vector<1x32x3xf32>
    %129 = vector.shape_cast %128 : vector<1x32x3xf32> to vector<32x3xf32>
    %130 = vector.extract_strided_slice %129 {offsets = [0, 0], sizes = [32, 1], strides = [1, 1]} : vector<32x3xf32> to vector<32x1xf32>
    %131 = vector.extract_strided_slice %127 {offsets = [0, 0], sizes = [32, 128], strides = [1, 1]} : vector<32x132xf32> to vector<32x128xf32>
    %132 = vector.broadcast %130 : vector<32x1xf32> to vector<32x128xf32>
    %133 = arith.mulf %132, %131 : vector<32x128xf32>
    %134 = vector.extract_strided_slice %129 {offsets = [0, 1], sizes = [32, 1], strides = [1, 1]} : vector<32x3xf32> to vector<32x1xf32>
    %135 = vector.extract_strided_slice %127 {offsets = [0, 2], sizes = [32, 128], strides = [1, 1]} : vector<32x132xf32> to vector<32x128xf32>
    %136 = vector.broadcast %134 : vector<32x1xf32> to vector<32x128xf32>
    %137 = arith.mulf %136, %135 : vector<32x128xf32>
    %138 = arith.addf %133, %137 : vector<32x128xf32>
    %139 = vector.extract_strided_slice %129 {offsets = [0, 2], sizes = [32, 1], strides = [1, 1]} : vector<32x3xf32> to vector<32x1xf32>
    %140 = vector.extract_strided_slice %127 {offsets = [0, 4], sizes = [32, 128], strides = [1, 1]} : vector<32x132xf32> to vector<32x128xf32>
    %141 = vector.broadcast %139 : vector<32x1xf32> to vector<32x128xf32>
    %142 = arith.mulf %141, %140 : vector<32x128xf32>
    %143 = arith.addf %138, %142 : vector<32x128xf32>
    %c1_63 = arith.constant 1 : index
    %144 = memref.load %arg7[%c1_63] : memref<4xf32, #tpu.memory_space<smem>>
    %cst_64 = arith.constant 0.000000e+00 : f32
    %145 = vector.broadcast %cst_64 : f32 to vector<32x128xf32>
    %146 = arith.cmpf oge, %143, %145 : vector<32x128xf32>
    %147 = vector.broadcast %144 : f32 to vector<32x128xf32>
    %148 = arith.mulf %147, %143 : vector<32x128xf32>
    %149 = arith.select %146, %143, %148 : vector<32x128xi1>, vector<32x128xf32>
    %150 = vector.shape_cast %149 : vector<32x128xf32> to vector<1x32x128xf32>
    %cst_65 = arith.constant dense<0.000000e+00> : vector<1xf32>
    %151 = vector.multi_reduction <add>, %150, %cst_65 [1, 2] : vector<1x32x128xf32> to vector<1xf32>
    %152 = vector.shape_cast %151 : vector<1xf32> to vector<1x1x1xf32>
    %153 = vector.extract %152[0, 0, 0] : f32 from vector<1x1x1xf32>
    %cst_66 = arith.constant 4.096000e+03 : f32
    %154 = arith.divf %153, %cst_66 : f32
    %155 = vector.broadcast %154 : f32 to vector<32x128xf32>
    %156 = arith.subf %149, %155 : vector<32x128xf32>
    %157 = arith.mulf %156, %156 : vector<32x128xf32>
    %158 = vector.shape_cast %157 : vector<32x128xf32> to vector<1x32x128xf32>
    %cst_67 = arith.constant dense<0.000000e+00> : vector<1xf32>
    %159 = vector.multi_reduction <add>, %158, %cst_67 [1, 2] : vector<1x32x128xf32> to vector<1xf32>
    %160 = vector.shape_cast %159 : vector<1xf32> to vector<1x1x1xf32>
    %161 = vector.extract %160[0, 0, 0] : f32 from vector<1x1x1xf32>
    %cst_68 = arith.constant 4.096000e+03 : f32
    %162 = arith.divf %161, %cst_68 : f32
    %cst_69 = arith.constant 9.99999993E-9 : f32
    %163 = arith.addf %162, %cst_69 : f32
    %164 = math.rsqrt %163 : f32
    %165 = vector.broadcast %164 : f32 to vector<32x128xf32>
    %166 = arith.mulf %156, %165 : vector<32x128xf32>
    %c1_70 = arith.constant 1 : index
    %c0_71 = arith.constant 0 : index
    %c0_72 = arith.constant 0 : index
    %167 = vector.load %arg8[%c1_70, %c0_71, %c0_72] : memref<4x32x1xf32, #tpu.memory_space<vmem>>, vector<1x32x1xf32>
    %168 = vector.shape_cast %167 : vector<1x32x1xf32> to vector<32x1xf32>
    %169 = vector.broadcast %168 : vector<32x1xf32> to vector<32x128xf32>
    %170 = arith.mulf %166, %169 : vector<32x128xf32>
    %c1_73 = arith.constant 1 : index
    %c0_74 = arith.constant 0 : index
    %c0_75 = arith.constant 0 : index
    %171 = vector.load %arg9[%c1_73, %c0_74, %c0_75] : memref<4x32x1xf32, #tpu.memory_space<vmem>>, vector<1x32x1xf32>
    %172 = vector.shape_cast %171 : vector<1x32x1xf32> to vector<32x1xf32>
    %173 = vector.broadcast %172 : vector<32x1xf32> to vector<32x128xf32>
    %174 = arith.addf %170, %173 : vector<32x128xf32>
    %c1_76 = arith.constant 1 : index
    %c0_77 = arith.constant 0 : index
    %c0_78 = arith.constant 0 : index
    %175 = vector.load %arg10[%c1_76, %c0_77, %c0_78] : memref<4x8x32xf32, #tpu.memory_space<vmem>>, vector<1x8x32xf32>
    %176 = vector.shape_cast %175 : vector<1x8x32xf32> to vector<8x32xf32>
    %cst_79 = arith.constant dense<0.000000e+00> : vector<8x128xf32>
    %177 = tpu.matmul %176, %174, %cst_79 {dimension_numbers = #tpu.dot_dimension_numbers<[1], [0], [0], [1], [0, 0, 1, 1], [], []>} : vector<8x32xf32>, vector<32x128xf32>, vector<8x128xf32> -> vector<8x128xf32>
    %178 = arith.addf %177, %91 : vector<8x128xf32>
    %c1_80 = arith.constant 1 : index
    %c0_81 = arith.constant 0 : index
    %c0_82 = arith.constant 0 : index
    %179 = vector.load %arg11[%c1_80, %c0_81, %c0_82] : memref<4x8x32xf32, #tpu.memory_space<vmem>>, vector<1x8x32xf32>
    %180 = vector.shape_cast %179 : vector<1x8x32xf32> to vector<8x32xf32>
    %cst_83 = arith.constant dense<0.000000e+00> : vector<8x128xf32>
    %181 = tpu.matmul %180, %174, %cst_83 {dimension_numbers = #tpu.dot_dimension_numbers<[1], [0], [0], [1], [0, 0, 1, 1], [], []>} : vector<8x32xf32>, vector<32x128xf32>, vector<8x128xf32> -> vector<8x128xf32>
    %182 = arith.addf %181, %88 : vector<8x128xf32>
    %c2 = arith.constant 2 : index
    %c0_84 = arith.constant 0 : index
    %c0_85 = arith.constant 0 : index
    %183 = vector.load %arg2[%c2, %c0_84, %c0_85] : memref<4x32x8xf32, #tpu.memory_space<vmem>>, vector<1x32x8xf32>
    %184 = vector.shape_cast %183 : vector<1x32x8xf32> to vector<32x8xf32>
    %cst_86 = arith.constant dense<0.000000e+00> : vector<32x128xf32>
    %185 = tpu.matmul %184, %182, %cst_86 {dimension_numbers = #tpu.dot_dimension_numbers<[1], [0], [0], [1], [0, 0, 1, 1], [], []>} : vector<32x8xf32>, vector<8x128xf32>, vector<32x128xf32> -> vector<32x128xf32>
    %c2_87 = arith.constant 2 : index
    %186 = memref.load %arg3[%c2_87] : memref<4xf32, #tpu.memory_space<smem>>
    %cst_88 = arith.constant 0.000000e+00 : f32
    %187 = vector.broadcast %cst_88 : f32 to vector<32x128xf32>
    %188 = arith.cmpf oge, %185, %187 : vector<32x128xf32>
    %189 = vector.broadcast %186 : f32 to vector<32x128xf32>
    %190 = arith.mulf %189, %185 : vector<32x128xf32>
    %191 = arith.select %188, %185, %190 : vector<32x128xi1>, vector<32x128xf32>
    %192 = vector.shape_cast %191 : vector<32x128xf32> to vector<1x32x128xf32>
    %cst_89 = arith.constant dense<0.000000e+00> : vector<1xf32>
    %193 = vector.multi_reduction <add>, %192, %cst_89 [1, 2] : vector<1x32x128xf32> to vector<1xf32>
    %194 = vector.shape_cast %193 : vector<1xf32> to vector<1x1x1xf32>
    %195 = vector.extract %194[0, 0, 0] : f32 from vector<1x1x1xf32>
    %cst_90 = arith.constant 4.096000e+03 : f32
    %196 = arith.divf %195, %cst_90 : f32
    %197 = vector.broadcast %196 : f32 to vector<32x128xf32>
    %198 = arith.subf %191, %197 : vector<32x128xf32>
    %199 = arith.mulf %198, %198 : vector<32x128xf32>
    %200 = vector.shape_cast %199 : vector<32x128xf32> to vector<1x32x128xf32>
    %cst_91 = arith.constant dense<0.000000e+00> : vector<1xf32>
    %201 = vector.multi_reduction <add>, %200, %cst_91 [1, 2] : vector<1x32x128xf32> to vector<1xf32>
    %202 = vector.shape_cast %201 : vector<1xf32> to vector<1x1x1xf32>
    %203 = vector.extract %202[0, 0, 0] : f32 from vector<1x1x1xf32>
    %cst_92 = arith.constant 4.096000e+03 : f32
    %204 = arith.divf %203, %cst_92 : f32
    %cst_93 = arith.constant 9.99999993E-9 : f32
    %205 = arith.addf %204, %cst_93 : f32
    %206 = math.rsqrt %205 : f32
    %207 = vector.broadcast %206 : f32 to vector<32x128xf32>
    %208 = arith.mulf %198, %207 : vector<32x128xf32>
    %c2_94 = arith.constant 2 : index
    %c0_95 = arith.constant 0 : index
    %c0_96 = arith.constant 0 : index
    %209 = vector.load %arg4[%c2_94, %c0_95, %c0_96] : memref<4x32x1xf32, #tpu.memory_space<vmem>>, vector<1x32x1xf32>
    %210 = vector.shape_cast %209 : vector<1x32x1xf32> to vector<32x1xf32>
    %211 = vector.broadcast %210 : vector<32x1xf32> to vector<32x128xf32>
    %212 = arith.mulf %208, %211 : vector<32x128xf32>
    %c2_97 = arith.constant 2 : index
    %c0_98 = arith.constant 0 : index
    %c0_99 = arith.constant 0 : index
    %213 = vector.load %arg5[%c2_97, %c0_98, %c0_99] : memref<4x32x1xf32, #tpu.memory_space<vmem>>, vector<1x32x1xf32>
    %214 = vector.shape_cast %213 : vector<1x32x1xf32> to vector<32x1xf32>
    %215 = vector.broadcast %214 : vector<32x1xf32> to vector<32x128xf32>
    %216 = arith.addf %212, %215 : vector<32x128xf32>
    %cst_100 = arith.constant 0.000000e+00 : f32
    %217 = vector.broadcast %cst_100 : f32 to vector<32x1xf32>
    %218 = tpu.concatenate %217, %216, %217 in 1 : vector<32x1xf32>, vector<32x128xf32>, vector<32x1xf32> -> vector<32x130xf32>
    %c2_101 = arith.constant 2 : index
    %c0_102 = arith.constant 0 : index
    %c0_103 = arith.constant 0 : index
    %219 = vector.load %arg6[%c2_101, %c0_102, %c0_103] : memref<4x32x3xf32, #tpu.memory_space<vmem>>, vector<1x32x3xf32>
    %220 = vector.shape_cast %219 : vector<1x32x3xf32> to vector<32x3xf32>
    %221 = vector.extract_strided_slice %220 {offsets = [0, 0], sizes = [32, 1], strides = [1, 1]} : vector<32x3xf32> to vector<32x1xf32>
    %222 = vector.extract_strided_slice %218 {offsets = [0, 0], sizes = [32, 128], strides = [1, 1]} : vector<32x130xf32> to vector<32x128xf32>
    %223 = vector.broadcast %221 : vector<32x1xf32> to vector<32x128xf32>
    %224 = arith.mulf %223, %222 : vector<32x128xf32>
    %225 = vector.extract_strided_slice %220 {offsets = [0, 1], sizes = [32, 1], strides = [1, 1]} : vector<32x3xf32> to vector<32x1xf32>
    %226 = vector.extract_strided_slice %218 {offsets = [0, 1], sizes = [32, 128], strides = [1, 1]} : vector<32x130xf32> to vector<32x128xf32>
    %227 = vector.broadcast %225 : vector<32x1xf32> to vector<32x128xf32>
    %228 = arith.mulf %227, %226 : vector<32x128xf32>
    %229 = arith.addf %224, %228 : vector<32x128xf32>
    %230 = vector.extract_strided_slice %220 {offsets = [0, 2], sizes = [32, 1], strides = [1, 1]} : vector<32x3xf32> to vector<32x1xf32>
    %231 = vector.extract_strided_slice %218 {offsets = [0, 2], sizes = [32, 128], strides = [1, 1]} : vector<32x130xf32> to vector<32x128xf32>
    %232 = vector.broadcast %230 : vector<32x1xf32> to vector<32x128xf32>
    %233 = arith.mulf %232, %231 : vector<32x128xf32>
    %234 = arith.addf %229, %233 : vector<32x128xf32>
    %c2_104 = arith.constant 2 : index
    %235 = memref.load %arg7[%c2_104] : memref<4xf32, #tpu.memory_space<smem>>
    %cst_105 = arith.constant 0.000000e+00 : f32
    %236 = vector.broadcast %cst_105 : f32 to vector<32x128xf32>
    %237 = arith.cmpf oge, %234, %236 : vector<32x128xf32>
    %238 = vector.broadcast %235 : f32 to vector<32x128xf32>
    %239 = arith.mulf %238, %234 : vector<32x128xf32>
    %240 = arith.select %237, %234, %239 : vector<32x128xi1>, vector<32x128xf32>
    %241 = vector.shape_cast %240 : vector<32x128xf32> to vector<1x32x128xf32>
    %cst_106 = arith.constant dense<0.000000e+00> : vector<1xf32>
    %242 = vector.multi_reduction <add>, %241, %cst_106 [1, 2] : vector<1x32x128xf32> to vector<1xf32>
    %243 = vector.shape_cast %242 : vector<1xf32> to vector<1x1x1xf32>
    %244 = vector.extract %243[0, 0, 0] : f32 from vector<1x1x1xf32>
    %cst_107 = arith.constant 4.096000e+03 : f32
    %245 = arith.divf %244, %cst_107 : f32
    %246 = vector.broadcast %245 : f32 to vector<32x128xf32>
    %247 = arith.subf %240, %246 : vector<32x128xf32>
    %248 = arith.mulf %247, %247 : vector<32x128xf32>
    %249 = vector.shape_cast %248 : vector<32x128xf32> to vector<1x32x128xf32>
    %cst_108 = arith.constant dense<0.000000e+00> : vector<1xf32>
    %250 = vector.multi_reduction <add>, %249, %cst_108 [1, 2] : vector<1x32x128xf32> to vector<1xf32>
    %251 = vector.shape_cast %250 : vector<1xf32> to vector<1x1x1xf32>
    %252 = vector.extract %251[0, 0, 0] : f32 from vector<1x1x1xf32>
    %cst_109 = arith.constant 4.096000e+03 : f32
    %253 = arith.divf %252, %cst_109 : f32
    %cst_110 = arith.constant 9.99999993E-9 : f32
    %254 = arith.addf %253, %cst_110 : f32
    %255 = math.rsqrt %254 : f32
    %256 = vector.broadcast %255 : f32 to vector<32x128xf32>
    %257 = arith.mulf %247, %256 : vector<32x128xf32>
    %c2_111 = arith.constant 2 : index
    %c0_112 = arith.constant 0 : index
    %c0_113 = arith.constant 0 : index
    %258 = vector.load %arg8[%c2_111, %c0_112, %c0_113] : memref<4x32x1xf32, #tpu.memory_space<vmem>>, vector<1x32x1xf32>
    %259 = vector.shape_cast %258 : vector<1x32x1xf32> to vector<32x1xf32>
    %260 = vector.broadcast %259 : vector<32x1xf32> to vector<32x128xf32>
    %261 = arith.mulf %257, %260 : vector<32x128xf32>
    %c2_114 = arith.constant 2 : index
    %c0_115 = arith.constant 0 : index
    %c0_116 = arith.constant 0 : index
    %262 = vector.load %arg9[%c2_114, %c0_115, %c0_116] : memref<4x32x1xf32, #tpu.memory_space<vmem>>, vector<1x32x1xf32>
    %263 = vector.shape_cast %262 : vector<1x32x1xf32> to vector<32x1xf32>
    %264 = vector.broadcast %263 : vector<32x1xf32> to vector<32x128xf32>
    %265 = arith.addf %261, %264 : vector<32x128xf32>
    %c2_117 = arith.constant 2 : index
    %c0_118 = arith.constant 0 : index
    %c0_119 = arith.constant 0 : index
    %266 = vector.load %arg10[%c2_117, %c0_118, %c0_119] : memref<4x8x32xf32, #tpu.memory_space<vmem>>, vector<1x8x32xf32>
    %267 = vector.shape_cast %266 : vector<1x8x32xf32> to vector<8x32xf32>
    %cst_120 = arith.constant dense<0.000000e+00> : vector<8x128xf32>
    %268 = tpu.matmul %267, %265, %cst_120 {dimension_numbers = #tpu.dot_dimension_numbers<[1], [0], [0], [1], [0, 0, 1, 1], [], []>} : vector<8x32xf32>, vector<32x128xf32>, vector<8x128xf32> -> vector<8x128xf32>
    %269 = arith.addf %268, %182 : vector<8x128xf32>
    %c2_121 = arith.constant 2 : index
    %c0_122 = arith.constant 0 : index
    %c0_123 = arith.constant 0 : index
    %270 = vector.load %arg11[%c2_121, %c0_122, %c0_123] : memref<4x8x32xf32, #tpu.memory_space<vmem>>, vector<1x8x32xf32>
    %271 = vector.shape_cast %270 : vector<1x8x32xf32> to vector<8x32xf32>
    %cst_124 = arith.constant dense<0.000000e+00> : vector<8x128xf32>
    %272 = tpu.matmul %271, %265, %cst_124 {dimension_numbers = #tpu.dot_dimension_numbers<[1], [0], [0], [1], [0, 0, 1, 1], [], []>} : vector<8x32xf32>, vector<32x128xf32>, vector<8x128xf32> -> vector<8x128xf32>
    %273 = arith.addf %272, %178 : vector<8x128xf32>
    %c3 = arith.constant 3 : index
    %c0_125 = arith.constant 0 : index
    %c0_126 = arith.constant 0 : index
    %274 = vector.load %arg2[%c3, %c0_125, %c0_126] : memref<4x32x8xf32, #tpu.memory_space<vmem>>, vector<1x32x8xf32>
    %275 = vector.shape_cast %274 : vector<1x32x8xf32> to vector<32x8xf32>
    %cst_127 = arith.constant dense<0.000000e+00> : vector<32x128xf32>
    %276 = tpu.matmul %275, %273, %cst_127 {dimension_numbers = #tpu.dot_dimension_numbers<[1], [0], [0], [1], [0, 0, 1, 1], [], []>} : vector<32x8xf32>, vector<8x128xf32>, vector<32x128xf32> -> vector<32x128xf32>
    %c3_128 = arith.constant 3 : index
    %277 = memref.load %arg3[%c3_128] : memref<4xf32, #tpu.memory_space<smem>>
    %cst_129 = arith.constant 0.000000e+00 : f32
    %278 = vector.broadcast %cst_129 : f32 to vector<32x128xf32>
    %279 = arith.cmpf oge, %276, %278 : vector<32x128xf32>
    %280 = vector.broadcast %277 : f32 to vector<32x128xf32>
    %281 = arith.mulf %280, %276 : vector<32x128xf32>
    %282 = arith.select %279, %276, %281 : vector<32x128xi1>, vector<32x128xf32>
    %283 = vector.shape_cast %282 : vector<32x128xf32> to vector<1x32x128xf32>
    %cst_130 = arith.constant dense<0.000000e+00> : vector<1xf32>
    %284 = vector.multi_reduction <add>, %283, %cst_130 [1, 2] : vector<1x32x128xf32> to vector<1xf32>
    %285 = vector.shape_cast %284 : vector<1xf32> to vector<1x1x1xf32>
    %286 = vector.extract %285[0, 0, 0] : f32 from vector<1x1x1xf32>
    %cst_131 = arith.constant 4.096000e+03 : f32
    %287 = arith.divf %286, %cst_131 : f32
    %288 = vector.broadcast %287 : f32 to vector<32x128xf32>
    %289 = arith.subf %282, %288 : vector<32x128xf32>
    %290 = arith.mulf %289, %289 : vector<32x128xf32>
    %291 = vector.shape_cast %290 : vector<32x128xf32> to vector<1x32x128xf32>
    %cst_132 = arith.constant dense<0.000000e+00> : vector<1xf32>
    %292 = vector.multi_reduction <add>, %291, %cst_132 [1, 2] : vector<1x32x128xf32> to vector<1xf32>
    %293 = vector.shape_cast %292 : vector<1xf32> to vector<1x1x1xf32>
    %294 = vector.extract %293[0, 0, 0] : f32 from vector<1x1x1xf32>
    %cst_133 = arith.constant 4.096000e+03 : f32
    %295 = arith.divf %294, %cst_133 : f32
    %cst_134 = arith.constant 9.99999993E-9 : f32
    %296 = arith.addf %295, %cst_134 : f32
    %297 = math.rsqrt %296 : f32
    %298 = vector.broadcast %297 : f32 to vector<32x128xf32>
    %299 = arith.mulf %289, %298 : vector<32x128xf32>
    %c3_135 = arith.constant 3 : index
    %c0_136 = arith.constant 0 : index
    %c0_137 = arith.constant 0 : index
    %300 = vector.load %arg4[%c3_135, %c0_136, %c0_137] : memref<4x32x1xf32, #tpu.memory_space<vmem>>, vector<1x32x1xf32>
    %301 = vector.shape_cast %300 : vector<1x32x1xf32> to vector<32x1xf32>
    %302 = vector.broadcast %301 : vector<32x1xf32> to vector<32x128xf32>
    %303 = arith.mulf %299, %302 : vector<32x128xf32>
    %c3_138 = arith.constant 3 : index
    %c0_139 = arith.constant 0 : index
    %c0_140 = arith.constant 0 : index
    %304 = vector.load %arg5[%c3_138, %c0_139, %c0_140] : memref<4x32x1xf32, #tpu.memory_space<vmem>>, vector<1x32x1xf32>
    %305 = vector.shape_cast %304 : vector<1x32x1xf32> to vector<32x1xf32>
    %306 = vector.broadcast %305 : vector<32x1xf32> to vector<32x128xf32>
    %307 = arith.addf %303, %306 : vector<32x128xf32>
    %cst_141 = arith.constant 0.000000e+00 : f32
    %308 = vector.broadcast %cst_141 : f32 to vector<32x2xf32>
    %309 = tpu.concatenate %308, %307, %308 in 1 : vector<32x2xf32>, vector<32x128xf32>, vector<32x2xf32> -> vector<32x132xf32>
    %c3_142 = arith.constant 3 : index
    %c0_143 = arith.constant 0 : index
    %c0_144 = arith.constant 0 : index
    %310 = vector.load %arg6[%c3_142, %c0_143, %c0_144] : memref<4x32x3xf32, #tpu.memory_space<vmem>>, vector<1x32x3xf32>
    %311 = vector.shape_cast %310 : vector<1x32x3xf32> to vector<32x3xf32>
    %312 = vector.extract_strided_slice %311 {offsets = [0, 0], sizes = [32, 1], strides = [1, 1]} : vector<32x3xf32> to vector<32x1xf32>
    %313 = vector.extract_strided_slice %309 {offsets = [0, 0], sizes = [32, 128], strides = [1, 1]} : vector<32x132xf32> to vector<32x128xf32>
    %314 = vector.broadcast %312 : vector<32x1xf32> to vector<32x128xf32>
    %315 = arith.mulf %314, %313 : vector<32x128xf32>
    %316 = vector.extract_strided_slice %311 {offsets = [0, 1], sizes = [32, 1], strides = [1, 1]} : vector<32x3xf32> to vector<32x1xf32>
    %317 = vector.extract_strided_slice %309 {offsets = [0, 2], sizes = [32, 128], strides = [1, 1]} : vector<32x132xf32> to vector<32x128xf32>
    %318 = vector.broadcast %316 : vector<32x1xf32> to vector<32x128xf32>
    %319 = arith.mulf %318, %317 : vector<32x128xf32>
    %320 = arith.addf %315, %319 : vector<32x128xf32>
    %321 = vector.extract_strided_slice %311 {offsets = [0, 2], sizes = [32, 1], strides = [1, 1]} : vector<32x3xf32> to vector<32x1xf32>
    %322 = vector.extract_strided_slice %309 {offsets = [0, 4], sizes = [32, 128], strides = [1, 1]} : vector<32x132xf32> to vector<32x128xf32>
    %323 = vector.broadcast %321 : vector<32x1xf32> to vector<32x128xf32>
    %324 = arith.mulf %323, %322 : vector<32x128xf32>
    %325 = arith.addf %320, %324 : vector<32x128xf32>
    %c3_145 = arith.constant 3 : index
    %326 = memref.load %arg7[%c3_145] : memref<4xf32, #tpu.memory_space<smem>>
    %cst_146 = arith.constant 0.000000e+00 : f32
    %327 = vector.broadcast %cst_146 : f32 to vector<32x128xf32>
    %328 = arith.cmpf oge, %325, %327 : vector<32x128xf32>
    %329 = vector.broadcast %326 : f32 to vector<32x128xf32>
    %330 = arith.mulf %329, %325 : vector<32x128xf32>
    %331 = arith.select %328, %325, %330 : vector<32x128xi1>, vector<32x128xf32>
    %332 = vector.shape_cast %331 : vector<32x128xf32> to vector<1x32x128xf32>
    %cst_147 = arith.constant dense<0.000000e+00> : vector<1xf32>
    %333 = vector.multi_reduction <add>, %332, %cst_147 [1, 2] : vector<1x32x128xf32> to vector<1xf32>
    %334 = vector.shape_cast %333 : vector<1xf32> to vector<1x1x1xf32>
    %335 = vector.extract %334[0, 0, 0] : f32 from vector<1x1x1xf32>
    %cst_148 = arith.constant 4.096000e+03 : f32
    %336 = arith.divf %335, %cst_148 : f32
    %337 = vector.broadcast %336 : f32 to vector<32x128xf32>
    %338 = arith.subf %331, %337 : vector<32x128xf32>
    %339 = arith.mulf %338, %338 : vector<32x128xf32>
    %340 = vector.shape_cast %339 : vector<32x128xf32> to vector<1x32x128xf32>
    %cst_149 = arith.constant dense<0.000000e+00> : vector<1xf32>
    %341 = vector.multi_reduction <add>, %340, %cst_149 [1, 2] : vector<1x32x128xf32> to vector<1xf32>
    %342 = vector.shape_cast %341 : vector<1xf32> to vector<1x1x1xf32>
    %343 = vector.extract %342[0, 0, 0] : f32 from vector<1x1x1xf32>
    %cst_150 = arith.constant 4.096000e+03 : f32
    %344 = arith.divf %343, %cst_150 : f32
    %cst_151 = arith.constant 9.99999993E-9 : f32
    %345 = arith.addf %344, %cst_151 : f32
    %346 = math.rsqrt %345 : f32
    %347 = vector.broadcast %346 : f32 to vector<32x128xf32>
    %348 = arith.mulf %338, %347 : vector<32x128xf32>
    %c3_152 = arith.constant 3 : index
    %c0_153 = arith.constant 0 : index
    %c0_154 = arith.constant 0 : index
    %349 = vector.load %arg8[%c3_152, %c0_153, %c0_154] : memref<4x32x1xf32, #tpu.memory_space<vmem>>, vector<1x32x1xf32>
    %350 = vector.shape_cast %349 : vector<1x32x1xf32> to vector<32x1xf32>
    %351 = vector.broadcast %350 : vector<32x1xf32> to vector<32x128xf32>
    %352 = arith.mulf %348, %351 : vector<32x128xf32>
    %c3_155 = arith.constant 3 : index
    %c0_156 = arith.constant 0 : index
    %c0_157 = arith.constant 0 : index
    %353 = vector.load %arg9[%c3_155, %c0_156, %c0_157] : memref<4x32x1xf32, #tpu.memory_space<vmem>>, vector<1x32x1xf32>
    %354 = vector.shape_cast %353 : vector<1x32x1xf32> to vector<32x1xf32>
    %355 = vector.broadcast %354 : vector<32x1xf32> to vector<32x128xf32>
    %356 = arith.addf %352, %355 : vector<32x128xf32>
    %c3_158 = arith.constant 3 : index
    %c0_159 = arith.constant 0 : index
    %c0_160 = arith.constant 0 : index
    %357 = vector.load %arg11[%c3_158, %c0_159, %c0_160] : memref<4x8x32xf32, #tpu.memory_space<vmem>>, vector<1x8x32xf32>
    %358 = vector.shape_cast %357 : vector<1x8x32xf32> to vector<8x32xf32>
    %cst_161 = arith.constant dense<0.000000e+00> : vector<8x128xf32>
    %359 = tpu.matmul %358, %356, %cst_161 {dimension_numbers = #tpu.dot_dimension_numbers<[1], [0], [0], [1], [0, 0, 1, 1], [], []>} : vector<8x32xf32>, vector<32x128xf32>, vector<8x128xf32> -> vector<8x128xf32>
    %360 = arith.addf %359, %269 : vector<8x128xf32>
    %c0_162 = arith.constant 0 : index
    %c0_163 = arith.constant 0 : index
    %c0_164 = arith.constant 0 : index
    %361 = vector.load %arg12[%c0_162, %c0_163, %c0_164] : memref<1x8x128xf32, #tpu.memory_space<vmem>>, vector<1x8x128xf32>
    %362 = vector.shape_cast %361 : vector<1x8x128xf32> to vector<8x128xf32>
    %363 = vector.shape_cast %360 : vector<8x128xf32> to vector<1x8x128xf32>
    tpu.vector_store %arg12[%c0_162, %c0_163, %c0_164], %363 {strides = array<i32>} : memref<1x8x128xf32, #tpu.memory_space<vmem>>, vector<1x8x128xf32>,
    return
  }
  func.func @transform_0(%arg0: i32) -> (i32, i32, i32) {
    %c0_i32 = arith.constant 0 : i32
    %c0_i32_0 = arith.constant 0 : i32
    %c0_i32_1 = arith.constant 0 : i32
    return %arg0, %c0_i32, %c0_i32_0 : i32, i32, i32
  }
  func.func @transform_1(%arg0: i32) -> (i32, i32, i32) {
    %c0_i32 = arith.constant 0 : i32
    %c0_i32_0 = arith.constant 0 : i32
    %c0_i32_1 = arith.constant 0 : i32
    %c0_i32_2 = arith.constant 0 : i32
    return %c0_i32, %c0_i32_0, %c0_i32_1 : i32, i32, i32
  }
  func.func @transform_2(%arg0: i32) -> i32 {
    %c0_i32 = arith.constant 0 : i32
    %c0_i32_0 = arith.constant 0 : i32
    return %c0_i32 : i32
  }
  func.func @transform_3(%arg0: i32) -> (i32, i32, i32) {
    %c0_i32 = arith.constant 0 : i32
    %c0_i32_0 = arith.constant 0 : i32
    %c0_i32_1 = arith.constant 0 : i32
    %c0_i32_2 = arith.constant 0 : i32
    return %c0_i32, %c0_i32_0, %c0_i32_1 : i32, i32, i32
  }
  func.func @transform_4(%arg0: i32) -> (i32, i32, i32) {
    %c0_i32 = arith.constant 0 : i32
    %c0_i32_0 = arith.constant 0 : i32
    %c0_i32_1 = arith.constant 0 : i32
    %c0_i32_2 = arith.constant 0 : i32
    return %c0_i32, %c0_i32_0, %c0_i32_1 : i32, i32, i32
  }
  func.func @transform_5(%arg0: i32) -> (i32, i32, i32) {
    %c0_i32 = arith.constant 0 : i32
    %c0_i32_0 = arith.constant 0 : i32
    %c0_i32_1 = arith.constant 0 : i32
    %c0_i32_2 = arith.constant 0 : i32
    return %c0_i32, %c0_i32_0, %c0_i32_1 : i32, i32, i32
  }
  func.func @transform_6(%arg0: i32) -> i32 {
    %c0_i32 = arith.constant 0 : i32
    %c0_i32_0 = arith.constant 0 : i32
    return %c0_i32 : i32
  }
  func.func @transform_7(%arg0: i32) -> (i32, i32, i32) {
    %c0_i32 = arith.constant 0 : i32
    %c0_i32_0 = arith.constant 0 : i32
    %c0_i32_1 = arith.constant 0 : i32
    %c0_i32_2 = arith.constant 0 : i32
    return %c0_i32, %c0_i32_0, %c0_i32_1 : i32, i32, i32
  }
  func.func @transform_8(%arg0: i32) -> (i32, i32, i32) {
    %c0_i32 = arith.constant 0 : i32
    %c0_i32_0 = arith.constant 0 : i32
    %c0_i32_1 = arith.constant 0 : i32
    %c0_i32_2 = arith.constant 0 : i32
    return %c0_i32, %c0_i32_0, %c0_i32_1 : i32, i32, i32
  }
  func.func @transform_9(%arg0: i32) -> (i32, i32, i32) {
    %c0_i32 = arith.constant 0 : i32
    %c0_i32_0 = arith.constant 0 : i32
    %c0_i32_1 = arith.constant 0 : i32
    %c0_i32_2 = arith.constant 0 : i32
    return %c0_i32, %c0_i32_0, %c0_i32_1 : i32, i32, i32
  }
  func.func @transform_10(%arg0: i32) -> (i32, i32, i32) {
    %c0_i32 = arith.constant 0 : i32
    %c0_i32_0 = arith.constant 0 : i32
    %c0_i32_1 = arith.constant 0 : i32
    %c0_i32_2 = arith.constant 0 : i32
    return %c0_i32, %c0_i32_0, %c0_i32_1 : i32, i32, i32
  }
  func.func @transform_11(%arg0: i32) -> (i32, i32, i32) {
    %c0_i32 = arith.constant 0 : i32
    %c0_i32_0 = arith.constant 0 : i32
    %c0_i32_1 = arith.constant 0 : i32
    return %arg0, %c0_i32, %c0_i32_0 : i32, i32, i32
  }
}

</mosaic_0001>

<llo_original>
// kernel: tpu_custom_call.1
$region0: #{tpu_custom_call.1}
  #allocation0 [shape = 'u32[]', space=smem, size = 0x4, offset = 0x4, fixed_abs, tag = 'smem constant byte address 0x4 - core index']
  #allocation1 [shape = 'u32[144,128]{1,0:T(1,128)}', space=vmem, size = 0x12000, scoped, tag = 'internal scratch']
  %s0 = inlined_call_operand.vmem [shape: f32[2,8,128], index: 0, kind: input, shape index: {}]
  %s1 = inlined_call_operand.vmem [shape: f32[4,32,8], index: 1, kind: input, shape index: {}]
  %s2 = inlined_call_operand.vmem [shape: f32[4], index: 2, kind: input, shape index: {}]
  %s3 = inlined_call_operand.vmem [shape: f32[4,32,1], index: 3, kind: input, shape index: {}]
  %s4 = inlined_call_operand.vmem [shape: f32[4,32,1], index: 4, kind: input, shape index: {}]
  %s5 = inlined_call_operand.vmem [shape: f32[4,32,3], index: 5, kind: input, shape index: {}]
  %s6 = inlined_call_operand.vmem [shape: f32[4], index: 6, kind: input, shape index: {}]
  %s7 = inlined_call_operand.vmem [shape: f32[4,32,1], index: 7, kind: input, shape index: {}]
  %s8 = inlined_call_operand.vmem [shape: f32[4,32,1], index: 8, kind: input, shape index: {}]
  %s9 = inlined_call_operand.vmem [shape: f32[4,8,32], index: 9, kind: input, shape index: {}]
  %s10 = inlined_call_operand.vmem [shape: f32[4,8,32], index: 10, kind: input, shape index: {}]
  %s11 = inlined_call_operand.hbm [shape: f32[2,8,128], index: 11, kind: output, shape index: {}]
  %s12 = sld [smem:[#allocation0]]
  $region85: #{tpu_custom_call.1} parent=0
    _
  %s14 = ssub.s32 1, %s12
  %s15 = scalar_select 0, %s14, %s12
  $region1: #{tpu_custom_call.1} parent=0
    #allocation2 [shape = 'u8[512]{0}', space=smem, size = 0x200, scoped, tag = 'input window, operand 2, single buffered']
    #allocation3 [shape = 's32[2]{0}', space=sflag, size = 0x8, scoped, tag = 'scoped memory for tpu_custom_call.1']
    #allocation4 [shape = 's32[2]{0}', space=sflag, size = 0x8, scoped, tag = 'scoped memory for tpu_custom_call.1']
    #allocation5 [shape = 'u8[512]{0}', space=smem, size = 0x200, scoped, tag = 'input window, operand 6, single buffered']
    #allocation6 [shape = 's32[1]{0}', space=sflag, size = 0x4, scoped, tag = 'scoped memory for tpu_custom_call.1']
    #allocation7 [shape = 'u8[8192]{0}', space=vmem, size = 0x2000, scoped, tag = 'output window, operand 0']
    %16 = vsyncpa [#allocation4], 0
    %17 = vsyncpa [#allocation6], 0
    %18 = vsyncpa [#allocation3], 0
    %s19 = scalar_lea.sflag [#allocation3], 1
    %20 = vsyncpa %s19, 0
    loop: start=0, step=1, limit=4
    $region2: #{tpu_custom_call.1} parent=1 // loop_pre_header
      _
    $region3: #{tpu_custom_call.1} parent=1 // loop_header
      %s22 = sphi 0, %s26
      %p23 = scmp.ge.s32.totalorder %s22, 4
      %s32 = sphi 0, %s34
      %s35 = sphi 0, %s32
      %s36 = sphi 0, %s35
      %s52 = sphi 0, %s36
      %s56 = sphi 0, %s56
      %s58 = sphi 0, %s56
      %s59 = sphi 0, %s58
      %s73 = sphi 0, %s59
      %s77 = sphi 0, %s77
      %s79 = sphi 0, %s77
      %s80 = sphi 0, %s79
      %s94 = sphi 0, %s80
      %s98 = sphi 0, %s98
      %s100 = sphi 0, %s98
      %s101 = sphi 0, %s100
      %s115 = sphi 0, %s101
      %s119 = sphi 0, %s119
      %s121 = sphi 0, %s119
      %s122 = sphi 0, %s121
      %s136 = sphi 0, %s122
      %s140 = sphi 0, %s140
      %s142 = sphi 0, %s140
      %s143 = sphi 0, %s142
      %s157 = sphi 0, %s143
      %s161 = sphi 0, %s161
      %s163 = sphi 0, %s161
      %s164 = sphi 0, %s163
      %s178 = sphi 0, %s164
      %s182 = sphi 0, %s182
      %s184 = sphi 0, %s182
      %s185 = sphi 0, %s184
      %s199 = sphi 0, %s185
      %s203 = sphi 0, %s203
      %s205 = sphi 0, %s203
      %s206 = sphi 0, %s205
      %s220 = sphi 0, %s206
      %s224 = sphi 0, %s224
      %s226 = sphi 0, %s224
      %s227 = sphi 0, %s226
      %s241 = sphi 0, %s227
      %s245 = sphi 0, %s245
      %s247 = sphi 0, %s245
      %s248 = sphi 0, %s247
      %s262 = sphi 0, %s248
      %s268 = sphi 0, %s270
      %s271 = sphi 0, %s268
      %s272 = sphi 0, %s271
      %s288 = sphi 0, %s272
    $region4: #{tpu_custom_call.1} parent=1 // loop_header_branch
      %25 = sbr.rel (%p23) target = $region8
    $region5: #{tpu_custom_call.1} parent=1 // loop_body
      %s27 = ssub.s32 %s22, 1
      %s28 = ssub.s32 %s22, 2
      %s29 = sadd.s32 %s22, 1
      %s30 = ssub.s32 %s22, %s29
      %p31 = scmp.eq.s32.totalorder %s30, 0
      %s33 = sadd.s32 %s32, 1
      %s34 = scalar_select %p31, %s32, %s33
      %p37 = pneg %p31
      %p38 = scmp.eq.s32.totalorder %s22, 1
      %p39 = por %p37, %p38
      %p40 = scmp.ne.s32.totalorder %s32, %s35
      %p41 = scmp.eq.s32.totalorder %s22, 0
      %p42 = por %p40, %p41
      %p43 = scmp.ne.s32.totalorder %s32, %s35
      %p44 = scmp.eq.s32.totalorder %s27, 1
      %p45 = por %p43, %p44
      %p46 = scmp.ne.s32.totalorder %s35, %s36
      %p47 = scmp.eq.s32.totalorder %s27, 0
      %p48 = por %p46, %p47
      %p49 = scmp.ne.s32.totalorder %s35, %s36
      %p50 = scmp.eq.s32.totalorder %s28, 1
      %p51 = por %p49, %p50
      %p53 = scmp.ne.s32.totalorder %s36, %s52
      %p54 = scmp.eq.s32.totalorder %s28, 0
      %p55 = por %p53, %p54
      %s57 = sadd.s32 %s56, 1
      %p60 = scmp.eq.s32.totalorder %s22, 1
      %p61 = scmp.ne.s32.totalorder %s56, %s58
      %p62 = scmp.eq.s32.totalorder %s22, 0
      %p63 = por %p61, %p62
      %p64 = scmp.ne.s32.totalorder %s56, %s58
      %p65 = scmp.eq.s32.totalorder %s27, 1
      %p66 = por %p64, %p65
      %p67 = scmp.ne.s32.totalorder %s58, %s59
      %p68 = scmp.eq.s32.totalorder %s27, 0
      %p69 = por %p67, %p68
      %p70 = scmp.ne.s32.totalorder %s58, %s59
      %p71 = scmp.eq.s32.totalorder %s28, 1
      %p72 = por %p70, %p71
      %p74 = scmp.ne.s32.totalorder %s59, %s73
      %p75 = scmp.eq.s32.totalorder %s28, 0
      %p76 = por %p74, %p75
      %s78 = sadd.s32 %s77, 1
      %p81 = scmp.eq.s32.totalorder %s22, 1
      %p82 = scmp.ne.s32.totalorder %s77, %s79
      %p83 = scmp.eq.s32.totalorder %s22, 0
      %p84 = por %p82, %p83
      %p85 = scmp.ne.s32.totalorder %s77, %s79
      %p86 = scmp.eq.s32.totalorder %s27, 1
      %p87 = por %p85, %p86
      %p88 = scmp.ne.s32.totalorder %s79, %s80
      %p89 = scmp.eq.s32.totalorder %s27, 0
      %p90 = por %p88, %p89
      %p91 = scmp.ne.s32.totalorder %s79, %s80
      %p92 = scmp.eq.s32.totalorder %s28, 1
      %p93 = por %p91, %p92
      %p95 = scmp.ne.s32.totalorder %s80, %s94
      %p96 = scmp.eq.s32.totalorder %s28, 0
      %p97 = por %p95, %p96
      %s99 = sadd.s32 %s98, 1
      %p102 = scmp.eq.s32.totalorder %s22, 1
      %p103 = scmp.ne.s32.totalorder %s98, %s100
      %p104 = scmp.eq.s32.totalorder %s22, 0
      %p105 = por %p103, %p104
      %p106 = scmp.ne.s32.totalorder %s98, %s100
      %p107 = scmp.eq.s32.totalorder %s27, 1
      %p108 = por %p106, %p107
      %p109 = scmp.ne.s32.totalorder %s100, %s101
      %p110 = scmp.eq.s32.totalorder %s27, 0
      %p111 = por %p109, %p110
      %p112 = scmp.ne.s32.totalorder %s100, %s101
      %p113 = scmp.eq.s32.totalorder %s28, 1
      %p114 = por %p112, %p113
      %p116 = scmp.ne.s32.totalorder %s101, %s115
      %p117 = scmp.eq.s32.totalorder %s28, 0
      %p118 = por %p116, %p117
      %s120 = sadd.s32 %s119, 1
      %p123 = scmp.eq.s32.totalorder %s22, 1
      %p124 = scmp.ne.s32.totalorder %s119, %s121
      %p125 = scmp.eq.s32.totalorder %s22, 0
      %p126 = por %p124, %p125
      %p127 = scmp.ne.s32.totalorder %s119, %s121
      %p128 = scmp.eq.s32.totalorder %s27, 1
      %p129 = por %p127, %p128
      %p130 = scmp.ne.s32.totalorder %s121, %s122
      %p131 = scmp.eq.s32.totalorder %s27, 0
      %p132 = por %p130, %p131
      %p133 = scmp.ne.s32.totalorder %s121, %s122
      %p134 = scmp.eq.s32.totalorder %s28, 1
      %p135 = por %p133, %p134
      %p137 = scmp.ne.s32.totalorder %s122, %s136
      %p138 = scmp.eq.s32.totalorder %s28, 0
      %p139 = por %p137, %p138
      %s141 = sadd.s32 %s140, 1
      %p144 = scmp.eq.s32.totalorder %s22, 1
      %p145 = scmp.ne.s32.totalorder %s140, %s142
      %p146 = scmp.eq.s32.totalorder %s22, 0
      %p147 = por %p145, %p146
      %p148 = scmp.ne.s32.totalorder %s140, %s142
      %p149 = scmp.eq.s32.totalorder %s27, 1
      %p150 = por %p148, %p149
      %p151 = scmp.ne.s32.totalorder %s142, %s143
      %p152 = scmp.eq.s32.totalorder %s27, 0
      %p153 = por %p151, %p152
      %p154 = scmp.ne.s32.totalorder %s142, %s143
      %p155 = scmp.eq.s32.totalorder %s28, 1
      %p156 = por %p154, %p155
      %p158 = scmp.ne.s32.totalorder %s143, %s157
      %p159 = scmp.eq.s32.totalorder %s28, 0
      %p160 = por %p158, %p159
      %s162 = sadd.s32 %s161, 1
      %p165 = scmp.eq.s32.totalorder %s22, 1
      %p166 = scmp.ne.s32.totalorder %s161, %s163
      %p167 = scmp.eq.s32.totalorder %s22, 0
      %p168 = por %p166, %p167
      %p169 = scmp.ne.s32.totalorder %s161, %s163
      %p170 = scmp.eq.s32.totalorder %s27, 1
      %p171 = por %p169, %p170
      %p172 = scmp.ne.s32.totalorder %s163, %s164
      %p173 = scmp.eq.s32.totalorder %s27, 0
      %p174 = por %p172, %p173
      %p175 = scmp.ne.s32.totalorder %s163, %s164
      %p176 = scmp.eq.s32.totalorder %s28, 1
      %p177 = por %p175, %p176
      %p179 = scmp.ne.s32.totalorder %s164, %s178
      %p180 = scmp.eq.s32.totalorder %s28, 0
      %p181 = por %p179, %p180
      %s183 = sadd.s32 %s182, 1
      %p186 = scmp.eq.s32.totalorder %s22, 1
      %p187 = scmp.ne.s32.totalorder %s182, %s184
      %p188 = scmp.eq.s32.totalorder %s22, 0
      %p189 = por %p187, %p188
      %p190 = scmp.ne.s32.totalorder %s182, %s184
      %p191 = scmp.eq.s32.totalorder %s27, 1
      %p192 = por %p190, %p191
      %p193 = scmp.ne.s32.totalorder %s184, %s185
      %p194 = scmp.eq.s32.totalorder %s27, 0
      %p195 = por %p193, %p194
      %p196 = scmp.ne.s32.totalorder %s184, %s185
      %p197 = scmp.eq.s32.totalorder %s28, 1
      %p198 = por %p196, %p197
      %p200 = scmp.ne.s32.totalorder %s185, %s199
      %p201 = scmp.eq.s32.totalorder %s28, 0
      %p202 = por %p200, %p201
      %s204 = sadd.s32 %s203, 1
      %p207 = scmp.eq.s32.totalorder %s22, 1
      %p208 = scmp.ne.s32.totalorder %s203, %s205
      %p209 = scmp.eq.s32.totalorder %s22, 0
      %p210 = por %p208, %p209
      %p211 = scmp.ne.s32.totalorder %s203, %s205
      %p212 = scmp.eq.s32.totalorder %s27, 1
      %p213 = por %p211, %p212
      %p214 = scmp.ne.s32.totalorder %s205, %s206
      %p215 = scmp.eq.s32.totalorder %s27, 0
      %p216 = por %p214, %p215
      %p217 = scmp.ne.s32.totalorder %s205, %s206
      %p218 = scmp.eq.s32.totalorder %s28, 1
      %p219 = por %p217, %p218
      %p221 = scmp.ne.s32.totalorder %s206, %s220
      %p222 = scmp.eq.s32.totalorder %s28, 0
      %p223 = por %p221, %p222
      %s225 = sadd.s32 %s224, 1
      %p228 = scmp.eq.s32.totalorder %s22, 1
      %p229 = scmp.ne.s32.totalorder %s224, %s226
      %p230 = scmp.eq.s32.totalorder %s22, 0
      %p231 = por %p229, %p230
      %p232 = scmp.ne.s32.totalorder %s224, %s226
      %p233 = scmp.eq.s32.totalorder %s27, 1
      %p234 = por %p232, %p233
      %p235 = scmp.ne.s32.totalorder %s226, %s227
      %p236 = scmp.eq.s32.totalorder %s27, 0
      %p237 = por %p235, %p236
      %p238 = scmp.ne.s32.totalorder %s226, %s227
      %p239 = scmp.eq.s32.totalorder %s28, 1
      %p240 = por %p238, %p239
      %p242 = scmp.ne.s32.totalorder %s227, %s241
      %p243 = scmp.eq.s32.totalorder %s28, 0
      %p244 = por %p242, %p243
      %s246 = sadd.s32 %s245, 1
      %p249 = scmp.eq.s32.totalorder %s22, 1
      %p250 = scmp.ne.s32.totalorder %s245, %s247
      %p251 = scmp.eq.s32.totalorder %s22, 0
      %p252 = por %p250, %p251
      %p253 = scmp.ne.s32.totalorder %s245, %s247
      %p254 = scmp.eq.s32.totalorder %s27, 1
      %p255 = por %p253, %p254
      %p256 = scmp.ne.s32.totalorder %s247, %s248
      %p257 = scmp.eq.s32.totalorder %s27, 0
      %p258 = por %p256, %p257
      %p259 = scmp.ne.s32.totalorder %s247, %s248
      %p260 = scmp.eq.s32.totalorder %s28, 1
      %p261 = por %p259, %p260
      %p263 = scmp.ne.s32.totalorder %s248, %s262
      %p264 = scmp.eq.s32.totalorder %s28, 0
      %p265 = por %p263, %p264
      %s266 = ssub.s32 %s22, %s29
      %p267 = scmp.eq.s32.totalorder %s266, 0
      %s269 = sadd.s32 %s268, 1
      %s270 = scalar_select %p267, %s268, %s269
      %p273 = pneg %p267
      %p274 = scmp.eq.s32.totalorder %s22, 1
      %p275 = por %p273, %p274
      %p276 = scmp.ne.s32.totalorder %s268, %s271
      %p277 = scmp.eq.s32.totalorder %s22, 0
      %p278 = por %p276, %p277
      %p279 = scmp.ne.s32.totalorder %s268, %s271
      %p280 = scmp.eq.s32.totalorder %s27, 1
      %p281 = por %p279, %p280
      %p282 = scmp.ne.s32.totalorder %s271, %s272
      %p283 = scmp.eq.s32.totalorder %s27, 0
      %p284 = por %p282, %p283
      %p285 = scmp.ne.s32.totalorder %s271, %s272
      %p286 = scmp.eq.s32.totalorder %s28, 1
      %p287 = por %p285, %p286
      %p289 = scmp.ne.s32.totalorder %s272, %s288
      %p290 = scmp.eq.s32.totalorder %s28, 0
      %p291 = por %p289, %p290
      %p292 = scmp.le.s32.totalorder 1, %s22
      %p293 = scmp.lt.s32.totalorder %s22, 3
      %p294 = pnand %p292, %p293
      %p295 = pneg %p294
      // Predicated region
      $region9: #{tpu_custom_call.1} parent=5 // pred_check
        _
      $region10: #{tpu_custom_call.1} parent=5 // pred_check_branch
        %297 = sbr.rel (%p294) target = $region12
      $region11: #{tpu_custom_call.1} parent=5 // pred_region
        %s298 = ssub.s32 %s22, 1
        // Predicated region
        $region13: #{tpu_custom_call.1} parent=11 // pred_check
          %p299 = pneg %p69
        $region14: #{tpu_custom_call.1} parent=11 // pred_check_branch
          %301 = sbr.rel (%p299) target = $region16
        $region15: #{tpu_custom_call.1} parent=11 // pred_region
          _
        $region16: #{tpu_custom_call.1} parent=11 // pred_fallthru
          _
        // Predicated region
        $region17: #{tpu_custom_call.1} parent=11 // pred_check
          %p302 = pneg %p90
        $region18: #{tpu_custom_call.1} parent=11 // pred_check_branch
          %304 = sbr.rel (%p302) target = $region20
        $region19: #{tpu_custom_call.1} parent=11 // pred_region
          %s306 = ssub.s32 16, 16
          %307 = vsyncadd [#allocation4], %s306
          %s309 = sshll.u32 %s2, 4
          %s310 = int_to_ptr.vmem [resolvable:$true] %s309
          %312 = dma.vmem_to_smem %s310, 16, [#allocation2], [#allocation4]
        $region20: #{tpu_custom_call.1} parent=11 // pred_fallthru
          _
        // Predicated region
        $region21: #{tpu_custom_call.1} parent=11 // pred_check
          %p313 = pneg %p111
        $region22: #{tpu_custom_call.1} parent=11 // pred_check_branch
          %315 = sbr.rel (%p313) target = $region24
        $region23: #{tpu_custom_call.1} parent=11 // pred_region
          _
        $region24: #{tpu_custom_call.1} parent=11 // pred_fallthru
          _
        // Predicated region
        $region25: #{tpu_custom_call.1} parent=11 // pred_check
          %p316 = pneg %p132
        $region26: #{tpu_custom_call.1} parent=11 // pred_check_branch
          %318 = sbr.rel (%p316) target = $region28
        $region27: #{tpu_custom_call.1} parent=11 // pred_region
          _
        $region28: #{tpu_custom_call.1} parent=11 // pred_fallthru
          _
        // Predicated region
        $region29: #{tpu_custom_call.1} parent=11 // pred_check
          %p319 = pneg %p153
        $region30: #{tpu_custom_call.1} parent=11 // pred_check_branch
          %321 = sbr.rel (%p319) target = $region32
        $region31: #{tpu_custom_call.1} parent=11 // pred_region
          _
        $region32: #{tpu_custom_call.1} parent=11 // pred_fallthru
          _
        // Predicated region
        $region33: #{tpu_custom_call.1} parent=11 // pred_check
          %p322 = pneg %p174
        $region34: #{tpu_custom_call.1} parent=11 // pred_check_branch
          %324 = sbr.rel (%p322) target = $region36
        $region35: #{tpu_custom_call.1} parent=11 // pred_region
          %s326 = ssub.s32 16, 16
          %327 = vsyncadd [#allocation6], %s326
          %s329 = sshll.u32 %s6, 4
          %s330 = int_to_ptr.vmem [resolvable:$true] %s329
          %332 = dma.vmem_to_smem %s330, 16, [#allocation5], [#allocation6]
        $region36: #{tpu_custom_call.1} parent=11 // pred_fallthru
          _
        // Predicated region
        $region37: #{tpu_custom_call.1} parent=11 // pred_check
          %p333 = pneg %p195
        $region38: #{tpu_custom_call.1} parent=11 // pred_check_branch
          %335 = sbr.rel (%p333) target = $region40
        $region39: #{tpu_custom_call.1} parent=11 // pred_region
          _
        $region40: #{tpu_custom_call.1} parent=11 // pred_fallthru
          _
        // Predicated region
        $region41: #{tpu_custom_call.1} parent=11 // pred_check
          %p336 = pneg %p216
        $region42: #{tpu_custom_call.1} parent=11 // pred_check_branch
          %338 = sbr.rel (%p336) target = $region44
        $region43: #{tpu_custom_call.1} parent=11 // pred_region
          _
        $region44: #{tpu_custom_call.1} parent=11 // pred_fallthru
          _
        // Predicated region
        $region45: #{tpu_custom_call.1} parent=11 // pred_check
          %p339 = pneg %p237
        $region46: #{tpu_custom_call.1} parent=11 // pred_check_branch
          %341 = sbr.rel (%p339) target = $region48
        $region47: #{tpu_custom_call.1} parent=11 // pred_region
          _
        $region48: #{tpu_custom_call.1} parent=11 // pred_fallthru
          _
        // Predicated region
        $region49: #{tpu_custom_call.1} parent=11 // pred_check
          %p342 = pneg %p258
        $region50: #{tpu_custom_call.1} parent=11 // pred_check_branch
          %344 = sbr.rel (%p342) target = $region52
        $region51: #{tpu_custom_call.1} parent=11 // pred_region
          _
        $region52: #{tpu_custom_call.1} parent=11 // pred_fallthru
          _
      $region12: #{tpu_custom_call.1} parent=5 // pred_fallthru
        _
      %p345 = scmp.lt.s32.totalorder %s22, 2
      // Predicated region
      $region53: #{tpu_custom_call.1} parent=5 // pred_check
        %p346 = pneg %p345
      $region54: #{tpu_custom_call.1} parent=5 // pred_check_branch
        %348 = sbr.rel (%p346) target = $region56
      $region55: #{tpu_custom_call.1} parent=5 // pred_region
        // Predicated region
        $region57: #{tpu_custom_call.1} parent=55 // pred_check
          %p349 = pneg %p42
        $region58: #{tpu_custom_call.1} parent=55 // pred_check_branch
          %351 = sbr.rel (%p349) target = $region60
        $region59: #{tpu_custom_call.1} parent=55 // pred_region
          %p352 = scmp.lt.s32.totalorder %s22, 1
          %s353 = scalar_select %p352, %s22, 1
          %s354 = smul.addr %s353, 8
          %s355 = scalar_lea.vmem %s0, %s354
        $region60: #{tpu_custom_call.1} parent=55 // pred_fallthru
          _
      $region56: #{tpu_custom_call.1} parent=5 // pred_fallthru
        _
      %p356 = scmp.le.s32.totalorder 1, %s22
      %p357 = scmp.lt.s32.totalorder %s22, 3
      %p358 = pnand %p356, %p357
      %p359 = pneg %p358
      // Predicated region
      $region61: #{tpu_custom_call.1} parent=5 // pred_check
        _
      $region62: #{tpu_custom_call.1} parent=5 // pred_check_branch
        %361 = sbr.rel (%p358) target = $region64
      $region63: #{tpu_custom_call.1} parent=5 // pred_region
        %s362 = ssub.s32 %s22, 1
        // Predicated region
        $region65: #{tpu_custom_call.1} parent=63 // pred_check
          %p363 = pneg %p90
        $region66: #{tpu_custom_call.1} parent=63 // pred_check_branch
          %365 = sbr.rel (%p363) target = $region68
        $region67: #{tpu_custom_call.1} parent=63 // pred_region
          %366 = dma.done [#allocation4], 16
        $region68: #{tpu_custom_call.1} parent=63 // pred_fallthru
          _
        // Predicated region
        $region69: #{tpu_custom_call.1} parent=63 // pred_check
          %p367 = pneg %p174
        $region70: #{tpu_custom_call.1} parent=63 // pred_check_branch
          %369 = sbr.rel (%p367) target = $region72
        $region71: #{tpu_custom_call.1} parent=63 // pred_region
          %370 = dma.done [#allocation6], 16
        $region72: #{tpu_custom_call.1} parent=63 // pred_fallthru
          _
        %371 = sfence
        %p372 = scmp.lt.s32.totalorder %s27, 1
        %s373 = scalar_select %p372, %s27, 1
        %s374 = smul.addr %s373, 8
        %s375 = scalar_lea.vmem %s0, %s374
        %p376 = pneg %p48
        %p377 = pneg %p45
        %p378 = pneg %p69
        %p379 = pneg %p66
        %p380 = pneg %p90
        %p381 = pneg %p87
        %p382 = pneg %p111
        %p383 = pneg %p108
        %p384 = pneg %p132
        %p385 = pneg %p129
        %p386 = pneg %p153
        %p387 = pneg %p150
        %p388 = pneg %p174
        %p389 = pneg %p171
        %p390 = pneg %p195
        %p391 = pneg %p192
        %p392 = pneg %p216
        %p393 = pneg %p213
        %p394 = pneg %p237
        %p395 = pneg %p234
        %p396 = pneg %p258
        %p397 = pneg %p255
        %p398 = pneg %p284
        %p399 = pneg %p281
        %s400 = sand.u32 %s271, 1
        %s401 = scalar_lea.sflag [#allocation3], %s400
        %s402 = sand.u32 %s271, 1
        %s403 = smul.addr %s402, 8
        %s404 = scalar_lea.vmem [#allocation7], %s403
        %p405 = scmp.lt.s32.totalorder %s27, 1
        %s406 = scalar_select %p405, %s27, 1
        %s407 = smul.addr %s406, 8
        %s408 = scalar_lea.vmem %s0, %s407
        %v409 = vld [vmem:[%s408] sm:$0xff]
        %v410 = vld [vmem:[%s1] sm:$0xff]
        %v411 = vld [vmem:[%s1 + $0x8] sm:$0xff]
        %v412 = vld [vmem:[%s1 + $0x10] sm:$0xff]
        %v413 = vld [vmem:[%s1 + $0x18] sm:$0xff]
        %vm414 = vcmask 64512
        %v416 = vsel %vm414, %v410, 0
        %v419 = vsel %vm414, %v411, 0
        %v422 = vsel %vm414, %v412, 0
        %v425 = vsel %vm414, %v413, 0
        %427 = vmatprep.subr.mxu0 0.0
        %428 = vmatpush1.msra.mxu0 0.0
        %429 = vmatprep.subr.mxu0 0.0
        %430 = vmatpush1.msra.mxu0 0.0
        %431 = vmatprep.subr.mxu0 0.0
        %432 = vmatpush1.msra.mxu0 0.0
        %433 = vmatprep.subr.mxu0 0.0
        %434 = vmatpush1.msra.mxu0 0.0
        %435 = vmatprep.subr.mxu0 0.0
        %436 = vmatpush1.msra.mxu0 0.0
        %437 = vmatprep.subr.mxu0 0.0
        %438 = vmatpush1.msra.mxu0 0.0
        %439 = vmatprep.subr.mxu0 0.0
        %440 = vmatpush1.msra.mxu0 0.0
        %441 = vmatprep.subr.mxu0 0.0
        %442 = vmatpush1.msra.mxu0 0.0
        %443 = vmatprep.subr.mxu0 0.0
        %444 = vmatpush1.msra.mxu0 0.0
        %445 = vmatprep.subr.mxu0 0.0
        %446 = vmatpush1.msra.mxu0 0.0
        %447 = vmatprep.subr.mxu0 0.0
        %448 = vmatpush1.msra.mxu0 0.0
        %449 = vmatprep.subr.mxu0 0.0
        %450 = vmatpush1.msra.mxu0 0.0
        %451 = vmatprep.subr.mxu0 0.0
        %452 = vmatpush1.msra.mxu0 0.0
        %453 = vmatprep.subr.mxu0 0.0
        %454 = vmatpush1.msra.mxu0 0.0
        %455 = vmatprep.subr.mxu0 0.0
        %456 = vmatpush1.msra.mxu0 0.0
        %457 = vmatprep.subr.mxu0 0.0
        %458 = vmatpush1.msra.mxu0 %v409
        %459 = vmatprep.subr.mxu0 0.0
        %460 = vmatpush2.msra.mxu0 0.0
        %461 = vmatprep.subr.mxu0 0.0
        %462 = vmatpush2.msra.mxu0 0.0
        %463 = vmatprep.subr.mxu0 0.0
        %464 = vmatpush2.msra.mxu0 0.0
        %465 = vmatprep.subr.mxu0 0.0
        %466 = vmatpush2.msra.mxu0 0.0
        %467 = vmatprep.subr.mxu0 0.0
        %468 = vmatpush2.msra.mxu0 0.0
        %469 = vmatprep.subr.mxu0 0.0
        %470 = vmatpush2.msra.mxu0 0.0
        %471 = vmatprep.subr.mxu0 0.0
        %472 = vmatpush2.msra.mxu0 0.0
        %473 = vmatprep.subr.mxu0 0.0
        %474 = vmatpush2.msra.mxu0 0.0
        %475 = vmatprep.subr.mxu0 0.0
        %476 = vmatpush2.msra.mxu0 0.0
        %477 = vmatprep.subr.mxu0 0.0
        %478 = vmatpush2.msra.mxu0 0.0
        %479 = vmatprep.subr.mxu0 0.0
        %480 = vmatpush2.msra.mxu0 0.0
        %481 = vmatprep.subr.mxu0 0.0
        %482 = vmatpush2.msra.mxu0 0.0
        %483 = vmatprep.subr.mxu0 0.0
        %484 = vmatpush2.msra.mxu0 0.0
        %485 = vmatprep.subr.mxu0 0.0
        %486 = vmatpush2.msra.mxu0 0.0
        %487 = vmatprep.subr.mxu0 0.0
        %488 = vmatpush2.msra.mxu0 0.0
        %489 = vmatprep.subr.mxu0 0.0
        %490 = vmatpush2.msra.mxu0 0.0
        %491 = vmatprep.mubr.f32.mxu0 0.0
        %492 = vmatmul.mubr.f32.gmra.mxu0 %v416
        %v493 = vpop.f32.mrf.mxu0
        %v494 = vadd.f32 0.0, %v493
        %v495 = vpop.f32.mrf.mxu0
        %496 = vmatprep.mubr.f32.mxu0 0.0
        %497 = vmatmul.mubr.f32.gmra.mxu0 %v419
        %v498 = vpop.f32.mrf.mxu0
        %v499 = vadd.f32 0.0, %v498
        %v500 = vpop.f32.mrf.mxu0
        %501 = vmatprep.mubr.f32.mxu0 0.0
        %502 = vmatmul.mubr.f32.gmra.mxu0 %v422
        %v503 = vpop.f32.mrf.mxu0
        %v504 = vadd.f32 0.0, %v503
        %v505 = vpop.f32.mrf.mxu0
        %506 = vmatprep.mubr.f32.mxu0 0.0
        %507 = vmatmul.mubr.f32.gmra.mxu0 %v425
        %v508 = vpop.f32.mrf.mxu0
        %v509 = vadd.f32 0.0, %v508
        %v510 = vpop.f32.mrf.mxu0
        %511 = vdwg.mxu0
        %s512 = sld [smem:[#allocation2]]
        %vm513 = vcmp.ge.f32.partialorder %v494, 0.0
        %vm514 = vcmp.ge.f32.partialorder %v499, 0.0
        %vm515 = vcmp.ge.f32.partialorder %v504, 0.0
        %vm516 = vcmp.ge.f32.partialorder %v509, 0.0
        %v517 = vstv %s512
        %v518 = vmul.f32 %v517, %v494
        %v519 = vmul.f32 %v517, %v499
        %v520 = vmul.f32 %v517, %v504
        %v521 = vmul.f32 %v517, %v509
        %v522 = vsel %vm513, %v494, %v518
        %v523 = vsel %vm514, %v499, %v519
        %v524 = vsel %vm515, %v504, %v520
        %v525 = vsel %vm516, %v509, %v521
        %v526 = vadd.f32 %v522, %v523
        %v527 = vadd.f32 %v526, %v524
        %v528 = vadd.f32 %v527, %v525
        %529 = vadd.xlane.f32.xlu0 %v528
        %v530 = vpop.xlane.xlu0 %529
        %v531 = vrot.slane %v530, 4
        %v532 = vadd.f32 %v530, %v531
        %v533 = vrot.slane %v532, 2
        %v534 = vadd.f32 %v532, %v533
        %v535 = vrot.slane %v534, 1
        %v536 = vadd.f32 %v534, %v535
        %s537 = vtos %v536
        %v538 = vrcp.pop 4096.0
        %s539 = vtos %v538
        %s540 = smul.f32 %s537, %s539
        %v541 = vstv %s540
        %v542 = vsub.f32 %v522, %v541
        %v543 = vsub.f32 %v523, %v541
        %v544 = vsub.f32 %v524, %v541
        %v545 = vsub.f32 %v525, %v541
        %v546 = vmul.f32 %v542, %v542
        %v547 = vmul.f32 %v543, %v543
        %v548 = vmul.f32 %v544, %v544
        %v549 = vmul.f32 %v545, %v545
        %v550 = vadd.f32 %v546, %v547
        %v551 = vadd.f32 %v550, %v548
        %v552 = vadd.f32 %v551, %v549
        %553 = vadd.xlane.f32.xlu0 %v552
        %v554 = vpop.xlane.xlu0 %553
        %v555 = vrot.slane %v554, 4
        %v556 = vadd.f32 %v554, %v555
        %v557 = vrot.slane %v556, 2
        %v558 = vadd.f32 %v556, %v557
        %v559 = vrot.slane %v558, 1
        %v560 = vadd.f32 %v558, %v559
        %s561 = vtos %v560
        %v562 = vrcp.pop 4096.0
        %s563 = vtos %v562
        %s564 = smul.f32 %s561, %s563
        %s565 = sadd.f32 %s564, 1e-08
        %v566 = vstv %s565
        %v567 = vrsqrt.pop %v566
        %s568 = vtos %v567
        %v569 = vstv %s568
        %v570 = vmul.f32 %v542, %v569
        %v571 = vmul.f32 %v543, %v569
        %v572 = vmul.f32 %v544, %v569
        %v573 = vmul.f32 %v545, %v569
        %v574 = vld [vmem:[%s3] sm:$0xff]
        %v575 = vld [vmem:[%s3 + $0x8] sm:$0xff]
        %v576 = vld [vmem:[%s3 + $0x10] sm:$0xff]
        %v577 = vld [vmem:[%s3 + $0x18] sm:$0xff]
        %579 = vset.pattern.permute.xlu0 0
        %580 = vperm.xlu0 %579, %v574
        %v581 = vpop.permute.xlu0 %580
        %584 = vset.pattern.permute.xlu0 0
        %585 = vperm.xlu0 %584, %v575
        %v586 = vpop.permute.xlu0 %585
        %589 = vset.pattern.permute.xlu0 0
        %590 = vperm.xlu0 %589, %v576
        %v591 = vpop.permute.xlu0 %590
        %594 = vset.pattern.permute.xlu0 0
        %595 = vperm.xlu0 %594, %v577
        %v596 = vpop.permute.xlu0 %595
        %v598 = vmul.f32 %v570, %v581
        %v599 = vmul.f32 %v571, %v586
        %v600 = vmul.f32 %v572, %v591
        %v601 = vmul.f32 %v573, %v596
        %v602 = vld [vmem:[%s4] sm:$0xff]
        %v603 = vld [vmem:[%s4 + $0x8] sm:$0xff]
        %v604 = vld [vmem:[%s4 + $0x10] sm:$0xff]
        %v605 = vld [vmem:[%s4 + $0x18] sm:$0xff]
        %607 = vset.pattern.permute.xlu0 0
        %608 = vperm.xlu0 %607, %v602
        %v609 = vpop.permute.xlu0 %608
        %612 = vset.pattern.permute.xlu0 0
        %613 = vperm.xlu0 %612, %v603
        %v614 = vpop.permute.xlu0 %613
        %617 = vset.pattern.permute.xlu0 0
        %618 = vperm.xlu0 %617, %v604
        %v619 = vpop.permute.xlu0 %618
        %622 = vset.pattern.permute.xlu0 0
        %623 = vperm.xlu0 %622, %v605
        %v624 = vpop.permute.xlu0 %623
        %v626 = vadd.f32 %v598, %v609
        %v627 = vadd.f32 %v599, %v614
        %v628 = vadd.f32 %v600, %v619
        %v629 = vadd.f32 %v601, %v624
        %634 = vrot.lane.b32.xlu0 %v626, 1
        %v635 = vpop.permute.xlu0 %634
        %636 = vrot.lane.b32.xlu0 %v627, 1
        %v637 = vpop.permute.xlu0 %636
        %638 = vrot.lane.b32.xlu0 %v628, 1
        %v639 = vpop.permute.xlu0 %638
        %640 = vrot.lane.b32.xlu0 %v629, 1
        %v641 = vpop.permute.xlu0 %640
        %vm646 = vcmask 7168
        %v647 = vsel %vm646, 0.0, %v635
        %v648 = vsel %vm646, 0.0, %v637
        %v649 = vsel %vm646, 0.0, %v639
        %v650 = vsel %vm646, 0.0, %v641
        %v651 = vsel %vm646, %v635, 0.0
        %v652 = vsel %vm646, %v637, 0.0
        %v653 = vsel %vm646, %v639, 0.0
        %v654 = vsel %vm646, %v641, 0.0
        %v655 = vld [vmem:[%s5] sm:$0xff]
        %v656 = vld [vmem:[%s5 + $0x8] sm:$0xff]
        %v657 = vld [vmem:[%s5 + $0x10] sm:$0xff]
        %v658 = vld [vmem:[%s5 + $0x18] sm:$0xff]
        %660 = vset.pattern.permute.xlu0 0
        %661 = vperm.xlu0 %660, %v655
        %v662 = vpop.permute.xlu0 %661
        %665 = vset.pattern.permute.xlu0 0
        %666 = vperm.xlu0 %665, %v656
        %v667 = vpop.permute.xlu0 %666
        %670 = vset.pattern.permute.xlu0 0
        %671 = vperm.xlu0 %670, %v657
        %v672 = vpop.permute.xlu0 %671
        %675 = vset.pattern.permute.xlu0 0
        %676 = vperm.xlu0 %675, %v658
        %v677 = vpop.permute.xlu0 %676
        %v679 = vmul.f32 %v662, %v647
        %v680 = vmul.f32 %v667, %v648
        %v681 = vmul.f32 %v672, %v649
        %v682 = vmul.f32 %v677, %v650
        %683 = vset.pattern.permute.xlu0 1
        %684 = vperm.xlu0 %683, %v655
        %v685 = vpop.permute.xlu0 %684
        %687 = vset.pattern.permute.xlu0 1
        %688 = vperm.xlu0 %687, %v656
        %v689 = vpop.permute.xlu0 %688
        %691 = vset.pattern.permute.xlu0 1
        %692 = vperm.xlu0 %691, %v657
        %v693 = vpop.permute.xlu0 %692
        %695 = vset.pattern.permute.xlu0 1
        %696 = vperm.xlu0 %695, %v658
        %v697 = vpop.permute.xlu0 %696
        %v699 = vmul.f32 %v685, %v647
        %v700 = vmul.f32 %v685, %v651
        %v701 = vmul.f32 %v689, %v648
        %v702 = vmul.f32 %v689, %v652
        %v703 = vmul.f32 %v693, %v649
        %v704 = vmul.f32 %v693, %v653
        %v705 = vmul.f32 %v697, %v650
        %v706 = vmul.f32 %v697, %v654
        %715 = vrot.lane.b32.xlu0 %v699, 127
        %v716 = vpop.permute.xlu0 %715
        %717 = vrot.lane.b32.xlu0 %v700, 127
        %v718 = vpop.permute.xlu0 %717
        %719 = vrot.lane.b32.xlu0 %v701, 127
        %v720 = vpop.permute.xlu0 %719
        %721 = vrot.lane.b32.xlu0 %v702, 127
        %v722 = vpop.permute.xlu0 %721
        %723 = vrot.lane.b32.xlu0 %v703, 127
        %v724 = vpop.permute.xlu0 %723
        %725 = vrot.lane.b32.xlu0 %v704, 127
        %v726 = vpop.permute.xlu0 %725
        %727 = vrot.lane.b32.xlu0 %v705, 127
        %v728 = vpop.permute.xlu0 %727
        %729 = vrot.lane.b32.xlu0 %v706, 127
        %v730 = vpop.permute.xlu0 %729
        %vm731 = vcmask 1039360
        %v732 = vsel %vm731, %v716, %v718
        %v733 = vsel %vm731, %v720, %v722
        %v734 = vsel %vm731, %v724, %v726
        %v735 = vsel %vm731, %v728, %v730
        %v740 = vadd.f32 %v679, %v732
        %v741 = vadd.f32 %v680, %v733
        %v742 = vadd.f32 %v681, %v734
        %v743 = vadd.f32 %v682, %v735
        %744 = vset.pattern.permute.xlu0 2
        %745 = vperm.xlu0 %744, %v655
        %v746 = vpop.permute.xlu0 %745
        %748 = vset.pattern.permute.xlu0 2
        %749 = vperm.xlu0 %748, %v656
        %v750 = vpop.permute.xlu0 %749
        %752 = vset.pattern.permute.xlu0 2
        %753 = vperm.xlu0 %752, %v657
        %v754 = vpop.permute.xlu0 %753
        %756 = vset.pattern.permute.xlu0 2
        %757 = vperm.xlu0 %756, %v658
        %v758 = vpop.permute.xlu0 %757
        %v760 = vmul.f32 %v746, %v647
        %v761 = vmul.f32 %v746, %v651
        %v762 = vmul.f32 %v750, %v648
        %v763 = vmul.f32 %v750, %v652
        %v764 = vmul.f32 %v754, %v649
        %v765 = vmul.f32 %v754, %v653
        %v766 = vmul.f32 %v758, %v650
        %v767 = vmul.f32 %v758, %v654
        %776 = vrot.lane.b32.xlu0 %v760, 126
        %v777 = vpop.permute.xlu0 %776
        %778 = vrot.lane.b32.xlu0 %v761, 126
        %v779 = vpop.permute.xlu0 %778
        %780 = vrot.lane.b32.xlu0 %v762, 126
        %v781 = vpop.permute.xlu0 %780
        %782 = vrot.lane.b32.xlu0 %v763, 126
        %v783 = vpop.permute.xlu0 %782
        %784 = vrot.lane.b32.xlu0 %v764, 126
        %v785 = vpop.permute.xlu0 %784
        %786 = vrot.lane.b32.xlu0 %v765, 126
        %v787 = vpop.permute.xlu0 %786
        %788 = vrot.lane.b32.xlu0 %v766, 126
        %v789 = vpop.permute.xlu0 %788
        %790 = vrot.lane.b32.xlu0 %v767, 126
        %v791 = vpop.permute.xlu0 %790
        %vm792 = vcmask 1031168
        %v793 = vsel %vm792, %v777, %v779
        %v794 = vsel %vm792, %v781, %v783
        %v795 = vsel %vm792, %v785, %v787
        %v796 = vsel %vm792, %v789, %v791
        %v801 = vadd.f32 %v740, %v793
        %v802 = vadd.f32 %v741, %v794
        %v803 = vadd.f32 %v742, %v795
        %v804 = vadd.f32 %v743, %v796
        %s805 = sld [smem:[#allocation5]]
        %vm806 = vcmp.ge.f32.partialorder %v801, 0.0
        %vm807 = vcmp.ge.f32.partialorder %v802, 0.0
        %vm808 = vcmp.ge.f32.partialorder %v803, 0.0
        %vm809 = vcmp.ge.f32.partialorder %v804, 0.0
        %v810 = vstv %s805
        %v811 = vmul.f32 %v810, %v801
        %v812 = vmul.f32 %v810, %v802
        %v813 = vmul.f32 %v810, %v803
        %v814 = vmul.f32 %v810, %v804
        %v815 = vsel %vm806, %v801, %v811
        %v816 = vsel %vm807, %v802, %v812
        %v817 = vsel %vm808, %v803, %v813
        %v818 = vsel %vm809, %v804, %v814
        %v819 = vadd.f32 %v815, %v816
        %v820 = vadd.f32 %v819, %v817
        %v821 = vadd.f32 %v820, %v818
        %822 = vadd.xlane.f32.xlu0 %v821
        %v823 = vpop.xlane.xlu0 %822
        %v824 = vrot.slane %v823, 4
        %v825 = vadd.f32 %v823, %v824
        %v826 = vrot.slane %v825, 2
        %v827 = vadd.f32 %v825, %v826
        %v828 = vrot.slane %v827, 1
        %v829 = vadd.f32 %v827, %v828
        %s830 = vtos %v829
        %v831 = vrcp.pop 4096.0
        %s832 = vtos %v831
        %s833 = smul.f32 %s830, %s832
        %v834 = vstv %s833
        %v835 = vsub.f32 %v815, %v834
        %v836 = vsub.f32 %v816, %v834
        %v837 = vsub.f32 %v817, %v834
        %v838 = vsub.f32 %v818, %v834
        %v839 = vmul.f32 %v835, %v835
        %v840 = vmul.f32 %v836, %v836
        %v841 = vmul.f32 %v837, %v837
        %v842 = vmul.f32 %v838, %v838
        %v843 = vadd.f32 %v839, %v840
        %v844 = vadd.f32 %v843, %v841
        %v845 = vadd.f32 %v844, %v842
        %846 = vadd.xlane.f32.xlu0 %v845
        %v847 = vpop.xlane.xlu0 %846
        %v848 = vrot.slane %v847, 4
        %v849 = vadd.f32 %v847, %v848
        %v850 = vrot.slane %v849, 2
        %v851 = vadd.f32 %v849, %v850
        %v852 = vrot.slane %v851, 1
        %v853 = vadd.f32 %v851, %v852
        %s854 = vtos %v853
        %v855 = vrcp.pop 4096.0
        %s856 = vtos %v855
        %s857 = smul.f32 %s854, %s856
        %s858 = sadd.f32 %s857, 1e-08
        %v859 = vstv %s858
        %v860 = vrsqrt.pop %v859
        %s861 = vtos %v860
        %v862 = vstv %s861
        %v863 = vmul.f32 %v835, %v862
        %v864 = vmul.f32 %v836, %v862
        %v865 = vmul.f32 %v837, %v862
        %v866 = vmul.f32 %v838, %v862
        %v867 = vld [vmem:[%s7] sm:$0xff]
        %v868 = vld [vmem:[%s7 + $0x8] sm:$0xff]
        %v869 = vld [vmem:[%s7 + $0x10] sm:$0xff]
        %v870 = vld [vmem:[%s7 + $0x18] sm:$0xff]
        %872 = vset.pattern.permute.xlu0 0
        %873 = vperm.xlu0 %872, %v867
        %v874 = vpop.permute.xlu0 %873
        %877 = vset.pattern.permute.xlu0 0
        %878 = vperm.xlu0 %877, %v868
        %v879 = vpop.permute.xlu0 %878
        %882 = vset.pattern.permute.xlu0 0
        %883 = vperm.xlu0 %882, %v869
        %v884 = vpop.permute.xlu0 %883
        %887 = vset.pattern.permute.xlu0 0
        %888 = vperm.xlu0 %887, %v870
        %v889 = vpop.permute.xlu0 %888
        %v891 = vmul.f32 %v863, %v874
        %v892 = vmul.f32 %v864, %v879
        %v893 = vmul.f32 %v865, %v884
        %v894 = vmul.f32 %v866, %v889
        %v895 = vld [vmem:[%s8] sm:$0xff]
        %v896 = vld [vmem:[%s8 + $0x8] sm:$0xff]
        %v897 = vld [vmem:[%s8 + $0x10] sm:$0xff]
        %v898 = vld [vmem:[%s8 + $0x18] sm:$0xff]
        %900 = vset.pattern.permute.xlu0 0
        %901 = vperm.xlu0 %900, %v895
        %v902 = vpop.permute.xlu0 %901
        %905 = vset.pattern.permute.xlu0 0
        %906 = vperm.xlu0 %905, %v896
        %v907 = vpop.permute.xlu0 %906
        %910 = vset.pattern.permute.xlu0 0
        %911 = vperm.xlu0 %910, %v897
        %v912 = vpop.permute.xlu0 %911
        %915 = vset.pattern.permute.xlu0 0
        %916 = vperm.xlu0 %915, %v898
        %v917 = vpop.permute.xlu0 %916
        %v919 = vadd.f32 %v891, %v902
        %v920 = vadd.f32 %v892, %v907
        %v921 = vadd.f32 %v893, %v912
        %v922 = vadd.f32 %v894, %v917
        %v923 = vld [vmem:[%s9] sm:$0xff]
        %vm924 = vcmask 261120
        %v926 = vsel %vm924, %v923, 0
        %928 = vmatprep.subr.mxu0 0.0
        %929 = vmatpush1.msra.mxu0 0.0
        %930 = vmatprep.subr.mxu0 0.0
        %931 = vmatpush1.msra.mxu0 0.0
        %932 = vmatprep.subr.mxu0 0.0
        %933 = vmatpush1.msra.mxu0 0.0
        %934 = vmatprep.subr.mxu0 0.0
        %935 = vmatpush1.msra.mxu0 0.0
        %936 = vmatprep.subr.mxu0 0.0
        %937 = vmatpush1.msra.mxu0 0.0
        %938 = vmatprep.subr.mxu0 0.0
        %939 = vmatpush1.msra.mxu0 0.0
        %940 = vmatprep.subr.mxu0 0.0
        %941 = vmatpush1.msra.mxu0 0.0
        %942 = vmatprep.subr.mxu0 0.0
        %943 = vmatpush1.msra.mxu0 0.0
        %944 = vmatprep.subr.mxu0 0.0
        %945 = vmatpush1.msra.mxu0 0.0
        %946 = vmatprep.subr.mxu0 0.0
        %947 = vmatpush1.msra.mxu0 0.0
        %948 = vmatprep.subr.mxu0 0.0
        %949 = vmatpush1.msra.mxu0 0.0
        %950 = vmatprep.subr.mxu0 0.0
        %951 = vmatpush1.msra.mxu0 0.0
        %952 = vmatprep.subr.mxu0 0.0
        %953 = vmatpush1.msra.mxu0 %v922
        %954 = vmatprep.subr.mxu0 0.0
        %955 = vmatpush1.msra.mxu0 %v921
        %956 = vmatprep.subr.mxu0 0.0
        %957 = vmatpush1.msra.mxu0 %v920
        %958 = vmatprep.subr.mxu0 0.0
        %959 = vmatpush1.msra.mxu0 %v919
        %960 = vmatprep.subr.mxu0 0.0
        %961 = vmatpush2.msra.mxu0 0.0
        %962 = vmatprep.subr.mxu0 0.0
        %963 = vmatpush2.msra.mxu0 0.0
        %964 = vmatprep.subr.mxu0 0.0
        %965 = vmatpush2.msra.mxu0 0.0
        %966 = vmatprep.subr.mxu0 0.0
        %967 = vmatpush2.msra.mxu0 0.0
        %968 = vmatprep.subr.mxu0 0.0
        %969 = vmatpush2.msra.mxu0 0.0
        %970 = vmatprep.subr.mxu0 0.0
        %971 = vmatpush2.msra.mxu0 0.0
        %972 = vmatprep.subr.mxu0 0.0
        %973 = vmatpush2.msra.mxu0 0.0
        %974 = vmatprep.subr.mxu0 0.0
        %975 = vmatpush2.msra.mxu0 0.0
        %976 = vmatprep.subr.mxu0 0.0
        %977 = vmatpush2.msra.mxu0 0.0
        %978 = vmatprep.subr.mxu0 0.0
        %979 = vmatpush2.msra.mxu0 0.0
        %980 = vmatprep.subr.mxu0 0.0
        %981 = vmatpush2.msra.mxu0 0.0
        %982 = vmatprep.subr.mxu0 0.0
        %983 = vmatpush2.msra.mxu0 0.0
        %984 = vmatprep.subr.mxu0 0.0
        %985 = vmatpush2.msra.mxu0 0.0
        %986 = vmatprep.subr.mxu0 0.0
        %987 = vmatpush2.msra.mxu0 0.0
        %988 = vmatprep.subr.mxu0 0.0
        %989 = vmatpush2.msra.mxu0 0.0
        %990 = vmatprep.subr.mxu0 0.0
        %991 = vmatpush2.msra.mxu0 0.0
        %992 = vmatprep.mubr.f32.mxu0 0.0
        %993 = vmatmul.mubr.f32.gmra.mxu0 %v926
        %v994 = vpop.f32.mrf.mxu0
        %v995 = vadd.f32 %v409, %v994
        %v996 = vpop.f32.mrf.mxu0
        %997 = vdwg.mxu0
        %v998 = vld [vmem:[%s10] sm:$0xff]
        %v1000 = vsel %vm924, %v998, 0
        %1002 = vmatprep.subr.mxu0 0.0
        %1003 = vmatpush1.msra.mxu0 0.0
        %1004 = vmatprep.subr.mxu0 0.0
        %1005 = vmatpush1.msra.mxu0 0.0
        %1006 = vmatprep.subr.mxu0 0.0
        %1007 = vmatpush1.msra.mxu0 0.0
        %1008 = vmatprep.subr.mxu0 0.0
        %1009 = vmatpush1.msra.mxu0 0.0
        %1010 = vmatprep.subr.mxu0 0.0
        %1011 = vmatpush1.msra.mxu0 0.0
        %1012 = vmatprep.subr.mxu0 0.0
        %1013 = vmatpush1.msra.mxu0 0.0
        %1014 = vmatprep.subr.mxu0 0.0
        %1015 = vmatpush1.msra.mxu0 0.0
        %1016 = vmatprep.subr.mxu0 0.0
        %1017 = vmatpush1.msra.mxu0 0.0
        %1018 = vmatprep.subr.mxu0 0.0
        %1019 = vmatpush1.msra.mxu0 0.0
        %1020 = vmatprep.subr.mxu0 0.0
        %1021 = vmatpush1.msra.mxu0 0.0
        %1022 = vmatprep.subr.mxu0 0.0
        %1023 = vmatpush1.msra.mxu0 0.0
        %1024 = vmatprep.subr.mxu0 0.0
        %1025 = vmatpush1.msra.mxu0 0.0
        %1026 = vmatprep.subr.mxu0 0.0
        %1027 = vmatpush1.msra.mxu0 %v922
        %1028 = vmatprep.subr.mxu0 0.0
        %1029 = vmatpush1.msra.mxu0 %v921
        %1030 = vmatprep.subr.mxu0 0.0
        %1031 = vmatpush1.msra.mxu0 %v920
        %1032 = vmatprep.subr.mxu0 0.0
        %1033 = vmatpush1.msra.mxu0 %v919
        %1034 = vmatprep.subr.mxu0 0.0
        %1035 = vmatpush2.msra.mxu0 0.0
        %1036 = vmatprep.subr.mxu0 0.0
        %1037 = vmatpush2.msra.mxu0 0.0
        %1038 = vmatprep.subr.mxu0 0.0
        %1039 = vmatpush2.msra.mxu0 0.0
        %1040 = vmatprep.subr.mxu0 0.0
        %1041 = vmatpush2.msra.mxu0 0.0
        %1042 = vmatprep.subr.mxu0 0.0
        %1043 = vmatpush2.msra.mxu0 0.0
        %1044 = vmatprep.subr.mxu0 0.0
        %1045 = vmatpush2.msra.mxu0 0.0
        %1046 = vmatprep.subr.mxu0 0.0
        %1047 = vmatpush2.msra.mxu0 0.0
        %1048 = vmatprep.subr.mxu0 0.0
        %1049 = vmatpush2.msra.mxu0 0.0
        %1050 = vmatprep.subr.mxu0 0.0
        %1051 = vmatpush2.msra.mxu0 0.0
        %1052 = vmatprep.subr.mxu0 0.0
        %1053 = vmatpush2.msra.mxu0 0.0
        %1054 = vmatprep.subr.mxu0 0.0
        %1055 = vmatpush2.msra.mxu0 0.0
        %1056 = vmatprep.subr.mxu0 0.0
        %1057 = vmatpush2.msra.mxu0 0.0
        %1058 = vmatprep.subr.mxu0 0.0
        %1059 = vmatpush2.msra.mxu0 0.0
        %1060 = vmatprep.subr.mxu0 0.0
        %1061 = vmatpush2.msra.mxu0 0.0
        %1062 = vmatprep.subr.mxu0 0.0
        %1063 = vmatpush2.msra.mxu0 0.0
        %1064 = vmatprep.subr.mxu0 0.0
        %1065 = vmatpush2.msra.mxu0 0.0
        %1066 = vmatprep.mubr.f32.mxu0 0.0
        %1067 = vmatmul.mubr.f32.gmra.mxu0 %v1000
        %v1068 = vpop.f32.mrf.mxu0
        %v1069 = vadd.f32 0.0, %v1068
        %v1070 = vpop.f32.mrf.mxu0
        %1071 = vdwg.mxu0
        %s1072 = scalar_lea.vmem %s1, 32
        %v1073 = vld [vmem:[%s1072] sm:$0xff]
        %v1074 = vld [vmem:[%s1072 + $0x8] sm:$0xff]
        %v1075 = vld [vmem:[%s1072 + $0x10] sm:$0xff]
        %v1076 = vld [vmem:[%s1072 + $0x18] sm:$0xff]
        %v1078 = vsel %vm414, %v1073, 0
        %v1081 = vsel %vm414, %v1074, 0
        %v1084 = vsel %vm414, %v1075, 0
        %v1087 = vsel %vm414, %v1076, 0
        %1089 = vmatprep.subr.mxu0 0.0
        %1090 = vmatpush1.msra.mxu0 0.0
        %1091 = vmatprep.subr.mxu0 0.0
        %1092 = vmatpush1.msra.mxu0 0.0
        %1093 = vmatprep.subr.mxu0 0.0
        %1094 = vmatpush1.msra.mxu0 0.0
        %1095 = vmatprep.subr.mxu0 0.0
        %1096 = vmatpush1.msra.mxu0 0.0
        %1097 = vmatprep.subr.mxu0 0.0
        %1098 = vmatpush1.msra.mxu0 0.0
        %1099 = vmatprep.subr.mxu0 0.0
        %1100 = vmatpush1.msra.mxu0 0.0
        %1101 = vmatprep.subr.mxu0 0.0
        %1102 = vmatpush1.msra.mxu0 0.0
        %1103 = vmatprep.subr.mxu0 0.0
        %1104 = vmatpush1.msra.mxu0 0.0
        %1105 = vmatprep.subr.mxu0 0.0
        %1106 = vmatpush1.msra.mxu0 0.0
        %1107 = vmatprep.subr.mxu0 0.0
        %1108 = vmatpush1.msra.mxu0 0.0
        %1109 = vmatprep.subr.mxu0 0.0
        %1110 = vmatpush1.msra.mxu0 0.0
        %1111 = vmatprep.subr.mxu0 0.0
        %1112 = vmatpush1.msra.mxu0 0.0
        %1113 = vmatprep.subr.mxu0 0.0
        %1114 = vmatpush1.msra.mxu0 0.0
        %1115 = vmatprep.subr.mxu0 0.0
        %1116 = vmatpush1.msra.mxu0 0.0
        %1117 = vmatprep.subr.mxu0 0.0
        %1118 = vmatpush1.msra.mxu0 0.0
        %1119 = vmatprep.subr.mxu0 0.0
        %1120 = vmatpush1.msra.mxu0 %v1069
        %1121 = vmatprep.subr.mxu0 0.0
        %1122 = vmatpush2.msra.mxu0 0.0
        %1123 = vmatprep.subr.mxu0 0.0
        %1124 = vmatpush2.msra.mxu0 0.0
        %1125 = vmatprep.subr.mxu0 0.0
        %1126 = vmatpush2.msra.mxu0 0.0
        %1127 = vmatprep.subr.mxu0 0.0
        %1128 = vmatpush2.msra.mxu0 0.0
        %1129 = vmatprep.subr.mxu0 0.0
        %1130 = vmatpush2.msra.mxu0 0.0
        %1131 = vmatprep.subr.mxu0 0.0
        %1132 = vmatpush2.msra.mxu0 0.0
        %1133 = vmatprep.subr.mxu0 0.0
        %1134 = vmatpush2.msra.mxu0 0.0
        %1135 = vmatprep.subr.mxu0 0.0
        %1136 = vmatpush2.msra.mxu0 0.0
        %1137 = vmatprep.subr.mxu0 0.0
        %1138 = vmatpush2.msra.mxu0 0.0
        %1139 = vmatprep.subr.mxu0 0.0
        %1140 = vmatpush2.msra.mxu0 0.0
        %1141 = vmatprep.subr.mxu0 0.0
        %1142 = vmatpush2.msra.mxu0 0.0
        %1143 = vmatprep.subr.mxu0 0.0
        %1144 = vmatpush2.msra.mxu0 0.0
        %1145 = vmatprep.subr.mxu0 0.0
        %1146 = vmatpush2.msra.mxu0 0.0
        %1147 = vmatprep.subr.mxu0 0.0
        %1148 = vmatpush2.msra.mxu0 0.0
        %1149 = vmatprep.subr.mxu0 0.0
        %1150 = vmatpush2.msra.mxu0 0.0
        %1151 = vmatprep.subr.mxu0 0.0
        %1152 = vmatpush2.msra.mxu0 0.0
        %1153 = vmatprep.mubr.f32.mxu0 0.0
        %1154 = vmatmul.mubr.f32.gmra.mxu0 %v1078
        %v1155 = vpop.f32.mrf.mxu0
        %v1156 = vadd.f32 0.0, %v1155
        %v1157 = vpop.f32.mrf.mxu0
        %1158 = vmatprep.mubr.f32.mxu0 0.0
        %1159 = vmatmul.mubr.f32.gmra.mxu0 %v1081
        %v1160 = vpop.f32.mrf.mxu0
        %v1161 = vadd.f32 0.0, %v1160
        %v1162 = vpop.f32.mrf.mxu0
        %1163 = vmatprep.mubr.f32.mxu0 0.0
        %1164 = vmatmul.mubr.f32.gmra.mxu0 %v1084
        %v1165 = vpop.f32.mrf.mxu0
        %v1166 = vadd.f32 0.0, %v1165
        %v1167 = vpop.f32.mrf.mxu0
        %1168 = vmatprep.mubr.f32.mxu0 0.0
        %1169 = vmatmul.mubr.f32.gmra.mxu0 %v1087
        %v1170 = vpop.f32.mrf.mxu0
        %v1171 = vadd.f32 0.0, %v1170
        %v1172 = vpop.f32.mrf.mxu0
        %1173 = vdwg.mxu0
        %s1174 = sld [smem:[#allocation2 + $0x1]]
        %vm1175 = vcmp.ge.f32.partialorder %v1156, 0.0
        %vm1176 = vcmp.ge.f32.partialorder %v1161, 0.0
        %vm1177 = vcmp.ge.f32.partialorder %v1166, 0.0
        %vm1178 = vcmp.ge.f32.partialorder %v1171, 0.0
        %v1179 = vstv %s1174
        %v1180 = vmul.f32 %v1179, %v1156
        %v1181 = vmul.f32 %v1179, %v1161
        %v1182 = vmul.f32 %v1179, %v1166
        %v1183 = vmul.f32 %v1179, %v1171
        %v1184 = vsel %vm1175, %v1156, %v1180
        %v1185 = vsel %vm1176, %v1161, %v1181
        %v1186 = vsel %vm1177, %v1166, %v1182
        %v1187 = vsel %vm1178, %v1171, %v1183
        %v1188 = vadd.f32 %v1184, %v1185
        %v1189 = vadd.f32 %v1188, %v1186
        %v1190 = vadd.f32 %v1189, %v1187
        %1191 = vadd.xlane.f32.xlu0 %v1190
        %v1192 = vpop.xlane.xlu0 %1191
        %v1193 = vrot.slane %v1192, 4
        %v1194 = vadd.f32 %v1192, %v1193
        %v1195 = vrot.slane %v1194, 2
        %v1196 = vadd.f32 %v1194, %v1195
        %v1197 = vrot.slane %v1196, 1
        %v1198 = vadd.f32 %v1196, %v1197
        %s1199 = vtos %v1198
        %v1200 = vrcp.pop 4096.0
        %s1201 = vtos %v1200
        %s1202 = smul.f32 %s1199, %s1201
        %v1203 = vstv %s1202
        %v1204 = vsub.f32 %v1184, %v1203
        %v1205 = vsub.f32 %v1185, %v1203
        %v1206 = vsub.f32 %v1186, %v1203
        %v1207 = vsub.f32 %v1187, %v1203
        %v1208 = vmul.f32 %v1204, %v1204
        %v1209 = vmul.f32 %v1205, %v1205
        %v1210 = vmul.f32 %v1206, %v1206
        %v1211 = vmul.f32 %v1207, %v1207
        %v1212 = vadd.f32 %v1208, %v1209
        %v1213 = vadd.f32 %v1212, %v1210
        %v1214 = vadd.f32 %v1213, %v1211
        %1215 = vadd.xlane.f32.xlu0 %v1214
        %v1216 = vpop.xlane.xlu0 %1215
        %v1217 = vrot.slane %v1216, 4
        %v1218 = vadd.f32 %v1216, %v1217
        %v1219 = vrot.slane %v1218, 2
        %v1220 = vadd.f32 %v1218, %v1219
        %v1221 = vrot.slane %v1220, 1
        %v1222 = vadd.f32 %v1220, %v1221
        %s1223 = vtos %v1222
        %v1224 = vrcp.pop 4096.0
        %s1225 = vtos %v1224
        %s1226 = smul.f32 %s1223, %s1225
        %s1227 = sadd.f32 %s1226, 1e-08
        %v1228 = vstv %s1227
        %v1229 = vrsqrt.pop %v1228
        %s1230 = vtos %v1229
        %v1231 = vstv %s1230
        %v1232 = vmul.f32 %v1204, %v1231
        %v1233 = vmul.f32 %v1205, %v1231
        %v1234 = vmul.f32 %v1206, %v1231
        %v1235 = vmul.f32 %v1207, %v1231
        %s1236 = scalar_lea.vmem %s3, 32
        %v1237 = vld [vmem:[%s1236] sm:$0xff]
        %v1238 = vld [vmem:[%s1236 + $0x8] sm:$0xff]
        %v1239 = vld [vmem:[%s1236 + $0x10] sm:$0xff]
        %v1240 = vld [vmem:[%s1236 + $0x18] sm:$0xff]
        %1242 = vset.pattern.permute.xlu0 0
        %1243 = vperm.xlu0 %1242, %v1237
        %v1244 = vpop.permute.xlu0 %1243
        %1247 = vset.pattern.permute.xlu0 0
        %1248 = vperm.xlu0 %1247, %v1238
        %v1249 = vpop.permute.xlu0 %1248
        %1252 = vset.pattern.permute.xlu0 0
        %1253 = vperm.xlu0 %1252, %v1239
        %v1254 = vpop.permute.xlu0 %1253
        %1257 = vset.pattern.permute.xlu0 0
        %1258 = vperm.xlu0 %1257, %v1240
        %v1259 = vpop.permute.xlu0 %1258
        %v1261 = vmul.f32 %v1232, %v1244
        %v1262 = vmul.f32 %v1233, %v1249
        %v1263 = vmul.f32 %v1234, %v1254
        %v1264 = vmul.f32 %v1235, %v1259
        %s1265 = scalar_lea.vmem %s4, 32
        %v1266 = vld [vmem:[%s1265] sm:$0xff]
        %v1267 = vld [vmem:[%s1265 + $0x8] sm:$0xff]
        %v1268 = vld [vmem:[%s1265 + $0x10] sm:$0xff]
        %v1269 = vld [vmem:[%s1265 + $0x18] sm:$0xff]
        %1271 = vset.pattern.permute.xlu0 0
        %1272 = vperm.xlu0 %1271, %v1266
        %v1273 = vpop.permute.xlu0 %1272
        %1276 = vset.pattern.permute.xlu0 0
        %1277 = vperm.xlu0 %1276, %v1267
        %v1278 = vpop.permute.xlu0 %1277
        %1281 = vset.pattern.permute.xlu0 0
        %1282 = vperm.xlu0 %1281, %v1268
        %v1283 = vpop.permute.xlu0 %1282
        %1286 = vset.pattern.permute.xlu0 0
        %1287 = vperm.xlu0 %1286, %v1269
        %v1288 = vpop.permute.xlu0 %1287
        %v1290 = vadd.f32 %v1261, %v1273
        %v1291 = vadd.f32 %v1262, %v1278
        %v1292 = vadd.f32 %v1263, %v1283
        %v1293 = vadd.f32 %v1264, %v1288
        %1298 = vrot.lane.b32.xlu0 %v1290, 2
        %v1299 = vpop.permute.xlu0 %1298
        %1300 = vrot.lane.b32.xlu0 %v1291, 2
        %v1301 = vpop.permute.xlu0 %1300
        %1302 = vrot.lane.b32.xlu0 %v1292, 2
        %v1303 = vpop.permute.xlu0 %1302
        %1304 = vrot.lane.b32.xlu0 %v1293, 2
        %v1305 = vpop.permute.xlu0 %1304
        %vm1310 = vcmask 15360
        %v1311 = vsel %vm1310, 0.0, %v1299
        %v1312 = vsel %vm1310, 0.0, %v1301
        %v1313 = vsel %vm1310, 0.0, %v1303
        %v1314 = vsel %vm1310, 0.0, %v1305
        %v1315 = vsel %vm1310, %v1299, 0.0
        %v1316 = vsel %vm1310, %v1301, 0.0
        %v1317 = vsel %vm1310, %v1303, 0.0
        %v1318 = vsel %vm1310, %v1305, 0.0
        %s1319 = scalar_lea.vmem %s5, 32
        %v1320 = vld [vmem:[%s1319] sm:$0xff]
        %v1321 = vld [vmem:[%s1319 + $0x8] sm:$0xff]
        %v1322 = vld [vmem:[%s1319 + $0x10] sm:$0xff]
        %v1323 = vld [vmem:[%s1319 + $0x18] sm:$0xff]
        %1325 = vset.pattern.permute.xlu0 0
        %1326 = vperm.xlu0 %1325, %v1320
        %v1327 = vpop.permute.xlu0 %1326
        %1330 = vset.pattern.permute.xlu0 0
        %1331 = vperm.xlu0 %1330, %v1321
        %v1332 = vpop.permute.xlu0 %1331
        %1335 = vset.pattern.permute.xlu0 0
        %1336 = vperm.xlu0 %1335, %v1322
        %v1337 = vpop.permute.xlu0 %1336
        %1340 = vset.pattern.permute.xlu0 0
        %1341 = vperm.xlu0 %1340, %v1323
        %v1342 = vpop.permute.xlu0 %1341
        %v1344 = vmul.f32 %v1327, %v1311
        %v1345 = vmul.f32 %v1332, %v1312
        %v1346 = vmul.f32 %v1337, %v1313
        %v1347 = vmul.f32 %v1342, %v1314
        %1348 = vset.pattern.permute.xlu0 1
        %1349 = vperm.xlu0 %1348, %v1320
        %v1350 = vpop.permute.xlu0 %1349
        %1352 = vset.pattern.permute.xlu0 1
        %1353 = vperm.xlu0 %1352, %v1321
        %v1354 = vpop.permute.xlu0 %1353
        %1356 = vset.pattern.permute.xlu0 1
        %1357 = vperm.xlu0 %1356, %v1322
        %v1358 = vpop.permute.xlu0 %1357
        %1360 = vset.pattern.permute.xlu0 1
        %1361 = vperm.xlu0 %1360, %v1323
        %v1362 = vpop.permute.xlu0 %1361
        %v1364 = vmul.f32 %v1350, %v1311
        %v1365 = vmul.f32 %v1350, %v1315
        %v1366 = vmul.f32 %v1354, %v1312
        %v1367 = vmul.f32 %v1354, %v1316
        %v1368 = vmul.f32 %v1358, %v1313
        %v1369 = vmul.f32 %v1358, %v1317
        %v1370 = vmul.f32 %v1362, %v1314
        %v1371 = vmul.f32 %v1362, %v1318
        %1380 = vrot.lane.b32.xlu0 %v1364, 126
        %v1381 = vpop.permute.xlu0 %1380
        %1382 = vrot.lane.b32.xlu0 %v1365, 126
        %v1383 = vpop.permute.xlu0 %1382
        %1384 = vrot.lane.b32.xlu0 %v1366, 126
        %v1385 = vpop.permute.xlu0 %1384
        %1386 = vrot.lane.b32.xlu0 %v1367, 126
        %v1387 = vpop.permute.xlu0 %1386
        %1388 = vrot.lane.b32.xlu0 %v1368, 126
        %v1389 = vpop.permute.xlu0 %1388
        %1390 = vrot.lane.b32.xlu0 %v1369, 126
        %v1391 = vpop.permute.xlu0 %1390
        %1392 = vrot.lane.b32.xlu0 %v1370, 126
        %v1393 = vpop.permute.xlu0 %1392
        %1394 = vrot.lane.b32.xlu0 %v1371, 126
        %v1395 = vpop.permute.xlu0 %1394
        %v1396 = vsel %vm792, %v1381, %v1383
        %v1397 = vsel %vm792, %v1385, %v1387
        %v1398 = vsel %vm792, %v1389, %v1391
        %v1399 = vsel %vm792, %v1393, %v1395
        %v1404 = vadd.f32 %v1344, %v1396
        %v1405 = vadd.f32 %v1345, %v1397
        %v1406 = vadd.f32 %v1346, %v1398
        %v1407 = vadd.f32 %v1347, %v1399
        %1408 = vset.pattern.permute.xlu0 2
        %1409 = vperm.xlu0 %1408, %v1320
        %v1410 = vpop.permute.xlu0 %1409
        %1412 = vset.pattern.permute.xlu0 2
        %1413 = vperm.xlu0 %1412, %v1321
        %v1414 = vpop.permute.xlu0 %1413
        %1416 = vset.pattern.permute.xlu0 2
        %1417 = vperm.xlu0 %1416, %v1322
        %v1418 = vpop.permute.xlu0 %1417
        %1420 = vset.pattern.permute.xlu0 2
        %1421 = vperm.xlu0 %1420, %v1323
        %v1422 = vpop.permute.xlu0 %1421
        %v1424 = vmul.f32 %v1410, %v1311
        %v1425 = vmul.f32 %v1410, %v1315
        %v1426 = vmul.f32 %v1414, %v1312
        %v1427 = vmul.f32 %v1414, %v1316
        %v1428 = vmul.f32 %v1418, %v1313
        %v1429 = vmul.f32 %v1418, %v1317
        %v1430 = vmul.f32 %v1422, %v1314
        %v1431 = vmul.f32 %v1422, %v1318
        %1440 = vrot.lane.b32.xlu0 %v1424, 124
        %v1441 = vpop.permute.xlu0 %1440
        %1442 = vrot.lane.b32.xlu0 %v1425, 124
        %v1443 = vpop.permute.xlu0 %1442
        %1444 = vrot.lane.b32.xlu0 %v1426, 124
        %v1445 = vpop.permute.xlu0 %1444
        %1446 = vrot.lane.b32.xlu0 %v1427, 124
        %v1447 = vpop.permute.xlu0 %1446
        %1448 = vrot.lane.b32.xlu0 %v1428, 124
        %v1449 = vpop.permute.xlu0 %1448
        %1450 = vrot.lane.b32.xlu0 %v1429, 124
        %v1451 = vpop.permute.xlu0 %1450
        %1452 = vrot.lane.b32.xlu0 %v1430, 124
        %v1453 = vpop.permute.xlu0 %1452
        %1454 = vrot.lane.b32.xlu0 %v1431, 124
        %v1455 = vpop.permute.xlu0 %1454
        %vm1456 = vcmask 1014784
        %v1457 = vsel %vm1456, %v1441, %v1443
        %v1458 = vsel %vm1456, %v1445, %v1447
        %v1459 = vsel %vm1456, %v1449, %v1451
        %v1460 = vsel %vm1456, %v1453, %v1455
        %v1465 = vadd.f32 %v1404, %v1457
        %v1466 = vadd.f32 %v1405, %v1458
        %v1467 = vadd.f32 %v1406, %v1459
        %v1468 = vadd.f32 %v1407, %v1460
        %s1469 = sld [smem:[#allocation5 + $0x1]]
        %vm1470 = vcmp.ge.f32.partialorder %v1465, 0.0
        %vm1471 = vcmp.ge.f32.partialorder %v1466, 0.0
        %vm1472 = vcmp.ge.f32.partialorder %v1467, 0.0
        %vm1473 = vcmp.ge.f32.partialorder %v1468, 0.0
        %v1474 = vstv %s1469
        %v1475 = vmul.f32 %v1474, %v1465
        %v1476 = vmul.f32 %v1474, %v1466
        %v1477 = vmul.f32 %v1474, %v1467
        %v1478 = vmul.f32 %v1474, %v1468
        %v1479 = vsel %vm1470, %v1465, %v1475
        %v1480 = vsel %vm1471, %v1466, %v1476
        %v1481 = vsel %vm1472, %v1467, %v1477
        %v1482 = vsel %vm1473, %v1468, %v1478
        %v1483 = vadd.f32 %v1479, %v1480
        %v1484 = vadd.f32 %v1483, %v1481
        %v1485 = vadd.f32 %v1484, %v1482
        %1486 = vadd.xlane.f32.xlu0 %v1485
        %v1487 = vpop.xlane.xlu0 %1486
        %v1488 = vrot.slane %v1487, 4
        %v1489 = vadd.f32 %v1487, %v1488
        %v1490 = vrot.slane %v1489, 2
        %v1491 = vadd.f32 %v1489, %v1490
        %v1492 = vrot.slane %v1491, 1
        %v1493 = vadd.f32 %v1491, %v1492
        %s1494 = vtos %v1493
        %v1495 = vrcp.pop 4096.0
        %s1496 = vtos %v1495
        %s1497 = smul.f32 %s1494, %s1496
        %v1498 = vstv %s1497
        %v1499 = vsub.f32 %v1479, %v1498
        %v1500 = vsub.f32 %v1480, %v1498
        %v1501 = vsub.f32 %v1481, %v1498
        %v1502 = vsub.f32 %v1482, %v1498
        %v1503 = vmul.f32 %v1499, %v1499
        %v1504 = vmul.f32 %v1500, %v1500
        %v1505 = vmul.f32 %v1501, %v1501
        %v1506 = vmul.f32 %v1502, %v1502
        %v1507 = vadd.f32 %v1503, %v1504
        %v1508 = vadd.f32 %v1507, %v1505
        %v1509 = vadd.f32 %v1508, %v1506
        %1510 = vadd.xlane.f32.xlu0 %v1509
        %v1511 = vpop.xlane.xlu0 %1510
        %v1512 = vrot.slane %v1511, 4
        %v1513 = vadd.f32 %v1511, %v1512
        %v1514 = vrot.slane %v1513, 2
        %v1515 = vadd.f32 %v1513, %v1514
        %v1516 = vrot.slane %v1515, 1
        %v1517 = vadd.f32 %v1515, %v1516
        %s1518 = vtos %v1517
        %v1519 = vrcp.pop 4096.0
        %s1520 = vtos %v1519
        %s1521 = smul.f32 %s1518, %s1520
        %s1522 = sadd.f32 %s1521, 1e-08
        %v1523 = vstv %s1522
        %v1524 = vrsqrt.pop %v1523
        %s1525 = vtos %v1524
        %v1526 = vstv %s1525
        %v1527 = vmul.f32 %v1499, %v1526
        %v1528 = vmul.f32 %v1500, %v1526
        %v1529 = vmul.f32 %v1501, %v1526
        %v1530 = vmul.f32 %v1502, %v1526
        %s1531 = scalar_lea.vmem %s7, 32
        %v1532 = vld [vmem:[%s1531] sm:$0xff]
        %v1533 = vld [vmem:[%s1531 + $0x8] sm:$0xff]
        %v1534 = vld [vmem:[%s1531 + $0x10] sm:$0xff]
        %v1535 = vld [vmem:[%s1531 + $0x18] sm:$0xff]
        %1537 = vset.pattern.permute.xlu0 0
        %1538 = vperm.xlu0 %1537, %v1532
        %v1539 = vpop.permute.xlu0 %1538
        %1542 = vset.pattern.permute.xlu0 0
        %1543 = vperm.xlu0 %1542, %v1533
        %v1544 = vpop.permute.xlu0 %1543
        %1547 = vset.pattern.permute.xlu0 0
        %1548 = vperm.xlu0 %1547, %v1534
        %v1549 = vpop.permute.xlu0 %1548
        %1552 = vset.pattern.permute.xlu0 0
        %1553 = vperm.xlu0 %1552, %v1535
        %v1554 = vpop.permute.xlu0 %1553
        %v1556 = vmul.f32 %v1527, %v1539
        %v1557 = vmul.f32 %v1528, %v1544
        %v1558 = vmul.f32 %v1529, %v1549
        %v1559 = vmul.f32 %v1530, %v1554
        %s1560 = scalar_lea.vmem %s8, 32
        %v1561 = vld [vmem:[%s1560] sm:$0xff]
        %v1562 = vld [vmem:[%s1560 + $0x8] sm:$0xff]
        %v1563 = vld [vmem:[%s1560 + $0x10] sm:$0xff]
        %v1564 = vld [vmem:[%s1560 + $0x18] sm:$0xff]
        %1566 = vset.pattern.permute.xlu0 0
        %1567 = vperm.xlu0 %1566, %v1561
        %v1568 = vpop.permute.xlu0 %1567
        %1571 = vset.pattern.permute.xlu0 0
        %1572 = vperm.xlu0 %1571, %v1562
        %v1573 = vpop.permute.xlu0 %1572
        %1576 = vset.pattern.permute.xlu0 0
        %1577 = vperm.xlu0 %1576, %v1563
        %v1578 = vpop.permute.xlu0 %1577
        %1581 = vset.pattern.permute.xlu0 0
        %1582 = vperm.xlu0 %1581, %v1564
        %v1583 = vpop.permute.xlu0 %1582
        %v1585 = vadd.f32 %v1556, %v1568
        %v1586 = vadd.f32 %v1557, %v1573
        %v1587 = vadd.f32 %v1558, %v1578
        %v1588 = vadd.f32 %v1559, %v1583
        %s1589 = scalar_lea.vmem %s9, 8
        %v1590 = vld [vmem:[%s1589] sm:$0xff]
        %v1592 = vsel %vm924, %v1590, 0
        %1594 = vmatprep.subr.mxu0 0.0
        %1595 = vmatpush1.msra.mxu0 0.0
        %1596 = vmatprep.subr.mxu0 0.0
        %1597 = vmatpush1.msra.mxu0 0.0
        %1598 = vmatprep.subr.mxu0 0.0
        %1599 = vmatpush1.msra.mxu0 0.0
        %1600 = vmatprep.subr.mxu0 0.0
        %1601 = vmatpush1.msra.mxu0 0.0
        %1602 = vmatprep.subr.mxu0 0.0
        %1603 = vmatpush1.msra.mxu0 0.0
        %1604 = vmatprep.subr.mxu0 0.0
        %1605 = vmatpush1.msra.mxu0 0.0
        %1606 = vmatprep.subr.mxu0 0.0
        %1607 = vmatpush1.msra.mxu0 0.0
        %1608 = vmatprep.subr.mxu0 0.0
        %1609 = vmatpush1.msra.mxu0 0.0
        %1610 = vmatprep.subr.mxu0 0.0
        %1611 = vmatpush1.msra.mxu0 0.0
        %1612 = vmatprep.subr.mxu0 0.0
        %1613 = vmatpush1.msra.mxu0 0.0
        %1614 = vmatprep.subr.mxu0 0.0
        %1615 = vmatpush1.msra.mxu0 0.0
        %1616 = vmatprep.subr.mxu0 0.0
        %1617 = vmatpush1.msra.mxu0 0.0
        %1618 = vmatprep.subr.mxu0 0.0
        %1619 = vmatpush1.msra.mxu0 %v1588
        %1620 = vmatprep.subr.mxu0 0.0
        %1621 = vmatpush1.msra.mxu0 %v1587
        %1622 = vmatprep.subr.mxu0 0.0
        %1623 = vmatpush1.msra.mxu0 %v1586
        %1624 = vmatprep.subr.mxu0 0.0
        %1625 = vmatpush1.msra.mxu0 %v1585
        %1626 = vmatprep.subr.mxu0 0.0
        %1627 = vmatpush2.msra.mxu0 0.0
        %1628 = vmatprep.subr.mxu0 0.0
        %1629 = vmatpush2.msra.mxu0 0.0
        %1630 = vmatprep.subr.mxu0 0.0
        %1631 = vmatpush2.msra.mxu0 0.0
        %1632 = vmatprep.subr.mxu0 0.0
        %1633 = vmatpush2.msra.mxu0 0.0
        %1634 = vmatprep.subr.mxu0 0.0
        %1635 = vmatpush2.msra.mxu0 0.0
        %1636 = vmatprep.subr.mxu0 0.0
        %1637 = vmatpush2.msra.mxu0 0.0
        %1638 = vmatprep.subr.mxu0 0.0
        %1639 = vmatpush2.msra.mxu0 0.0
        %1640 = vmatprep.subr.mxu0 0.0
        %1641 = vmatpush2.msra.mxu0 0.0
        %1642 = vmatprep.subr.mxu0 0.0
        %1643 = vmatpush2.msra.mxu0 0.0
        %1644 = vmatprep.subr.mxu0 0.0
        %1645 = vmatpush2.msra.mxu0 0.0
        %1646 = vmatprep.subr.mxu0 0.0
        %1647 = vmatpush2.msra.mxu0 0.0
        %1648 = vmatprep.subr.mxu0 0.0
        %1649 = vmatpush2.msra.mxu0 0.0
        %1650 = vmatprep.subr.mxu0 0.0
        %1651 = vmatpush2.msra.mxu0 0.0
        %1652 = vmatprep.subr.mxu0 0.0
        %1653 = vmatpush2.msra.mxu0 0.0
        %1654 = vmatprep.subr.mxu0 0.0
        %1655 = vmatpush2.msra.mxu0 0.0
        %1656 = vmatprep.subr.mxu0 0.0
        %1657 = vmatpush2.msra.mxu0 0.0
        %1658 = vmatprep.mubr.f32.mxu0 0.0
        %1659 = vmatmul.mubr.f32.gmra.mxu0 %v1592
        %v1660 = vpop.f32.mrf.mxu0
        %v1661 = vadd.f32 %v1069, %v1660
        %v1662 = vpop.f32.mrf.mxu0
        %1663 = vdwg.mxu0
        %s1664 = scalar_lea.vmem %s10, 8
        %v1665 = vld [vmem:[%s1664] sm:$0xff]
        %v1667 = vsel %vm924, %v1665, 0
        %1669 = vmatprep.subr.mxu0 0.0
        %1670 = vmatpush1.msra.mxu0 0.0
        %1671 = vmatprep.subr.mxu0 0.0
        %1672 = vmatpush1.msra.mxu0 0.0
        %1673 = vmatprep.subr.mxu0 0.0
        %1674 = vmatpush1.msra.mxu0 0.0
        %1675 = vmatprep.subr.mxu0 0.0
        %1676 = vmatpush1.msra.mxu0 0.0
        %1677 = vmatprep.subr.mxu0 0.0
        %1678 = vmatpush1.msra.mxu0 0.0
        %1679 = vmatprep.subr.mxu0 0.0
        %1680 = vmatpush1.msra.mxu0 0.0
        %1681 = vmatprep.subr.mxu0 0.0
        %1682 = vmatpush1.msra.mxu0 0.0
        %1683 = vmatprep.subr.mxu0 0.0
        %1684 = vmatpush1.msra.mxu0 0.0
        %1685 = vmatprep.subr.mxu0 0.0
        %1686 = vmatpush1.msra.mxu0 0.0
        %1687 = vmatprep.subr.mxu0 0.0
        %1688 = vmatpush1.msra.mxu0 0.0
        %1689 = vmatprep.subr.mxu0 0.0
        %1690 = vmatpush1.msra.mxu0 0.0
        %1691 = vmatprep.subr.mxu0 0.0
        %1692 = vmatpush1.msra.mxu0 0.0
        %1693 = vmatprep.subr.mxu0 0.0
        %1694 = vmatpush1.msra.mxu0 %v1588
        %1695 = vmatprep.subr.mxu0 0.0
        %1696 = vmatpush1.msra.mxu0 %v1587
        %1697 = vmatprep.subr.mxu0 0.0
        %1698 = vmatpush1.msra.mxu0 %v1586
        %1699 = vmatprep.subr.mxu0 0.0
        %1700 = vmatpush1.msra.mxu0 %v1585
        %1701 = vmatprep.subr.mxu0 0.0
        %1702 = vmatpush2.msra.mxu0 0.0
        %1703 = vmatprep.subr.mxu0 0.0
        %1704 = vmatpush2.msra.mxu0 0.0
        %1705 = vmatprep.subr.mxu0 0.0
        %1706 = vmatpush2.msra.mxu0 0.0
        %1707 = vmatprep.subr.mxu0 0.0
        %1708 = vmatpush2.msra.mxu0 0.0
        %1709 = vmatprep.subr.mxu0 0.0
        %1710 = vmatpush2.msra.mxu0 0.0
        %1711 = vmatprep.subr.mxu0 0.0
        %1712 = vmatpush2.msra.mxu0 0.0
        %1713 = vmatprep.subr.mxu0 0.0
        %1714 = vmatpush2.msra.mxu0 0.0
        %1715 = vmatprep.subr.mxu0 0.0
        %1716 = vmatpush2.msra.mxu0 0.0
        %1717 = vmatprep.subr.mxu0 0.0
        %1718 = vmatpush2.msra.mxu0 0.0
        %1719 = vmatprep.subr.mxu0 0.0
        %1720 = vmatpush2.msra.mxu0 0.0
        %1721 = vmatprep.subr.mxu0 0.0
        %1722 = vmatpush2.msra.mxu0 0.0
        %1723 = vmatprep.subr.mxu0 0.0
        %1724 = vmatpush2.msra.mxu0 0.0
        %1725 = vmatprep.subr.mxu0 0.0
        %1726 = vmatpush2.msra.mxu0 0.0
        %1727 = vmatprep.subr.mxu0 0.0
        %1728 = vmatpush2.msra.mxu0 0.0
        %1729 = vmatprep.subr.mxu0 0.0
        %1730 = vmatpush2.msra.mxu0 0.0
        %1731 = vmatprep.subr.mxu0 0.0
        %1732 = vmatpush2.msra.mxu0 0.0
        %1733 = vmatprep.mubr.f32.mxu0 0.0
        %1734 = vmatmul.mubr.f32.gmra.mxu0 %v1667
        %v1735 = vpop.f32.mrf.mxu0
        %v1736 = vadd.f32 %v995, %v1735
        %v1737 = vpop.f32.mrf.mxu0
        %1738 = vdwg.mxu0
        %s1739 = scalar_lea.vmem %s1, 64
        %v1740 = vld [vmem:[%s1739] sm:$0xff]
        %v1741 = vld [vmem:[%s1739 + $0x8] sm:$0xff]
        %v1742 = vld [vmem:[%s1739 + $0x10] sm:$0xff]
        %v1743 = vld [vmem:[%s1739 + $0x18] sm:$0xff]
        %v1745 = vsel %vm414, %v1740, 0
        %v1748 = vsel %vm414, %v1741, 0
        %v1751 = vsel %vm414, %v1742, 0
        %v1754 = vsel %vm414, %v1743, 0
        %1756 = vmatprep.subr.mxu0 0.0
        %1757 = vmatpush1.msra.mxu0 0.0
        %1758 = vmatprep.subr.mxu0 0.0
        %1759 = vmatpush1.msra.mxu0 0.0
        %1760 = vmatprep.subr.mxu0 0.0
        %1761 = vmatpush1.msra.mxu0 0.0
        %1762 = vmatprep.subr.mxu0 0.0
        %1763 = vmatpush1.msra.mxu0 0.0
        %1764 = vmatprep.subr.mxu0 0.0
        %1765 = vmatpush1.msra.mxu0 0.0
        %1766 = vmatprep.subr.mxu0 0.0
        %1767 = vmatpush1.msra.mxu0 0.0
        %1768 = vmatprep.subr.mxu0 0.0
        %1769 = vmatpush1.msra.mxu0 0.0
        %1770 = vmatprep.subr.mxu0 0.0
        %1771 = vmatpush1.msra.mxu0 0.0
        %1772 = vmatprep.subr.mxu0 0.0
        %1773 = vmatpush1.msra.mxu0 0.0
        %1774 = vmatprep.subr.mxu0 0.0
        %1775 = vmatpush1.msra.mxu0 0.0
        %1776 = vmatprep.subr.mxu0 0.0
        %1777 = vmatpush1.msra.mxu0 0.0
        %1778 = vmatprep.subr.mxu0 0.0
        %1779 = vmatpush1.msra.mxu0 0.0
        %1780 = vmatprep.subr.mxu0 0.0
        %1781 = vmatpush1.msra.mxu0 0.0
        %1782 = vmatprep.subr.mxu0 0.0
        %1783 = vmatpush1.msra.mxu0 0.0
        %1784 = vmatprep.subr.mxu0 0.0
        %1785 = vmatpush1.msra.mxu0 0.0
        %1786 = vmatprep.subr.mxu0 0.0
        %1787 = vmatpush1.msra.mxu0 %v1736
        %1788 = vmatprep.subr.mxu0 0.0
        %1789 = vmatpush2.msra.mxu0 0.0
        %1790 = vmatprep.subr.mxu0 0.0
        %1791 = vmatpush2.msra.mxu0 0.0
        %1792 = vmatprep.subr.mxu0 0.0
        %1793 = vmatpush2.msra.mxu0 0.0
        %1794 = vmatprep.subr.mxu0 0.0
        %1795 = vmatpush2.msra.mxu0 0.0
        %1796 = vmatprep.subr.mxu0 0.0
        %1797 = vmatpush2.msra.mxu0 0.0
        %1798 = vmatprep.subr.mxu0 0.0
        %1799 = vmatpush2.msra.mxu0 0.0
        %1800 = vmatprep.subr.mxu0 0.0
        %1801 = vmatpush2.msra.mxu0 0.0
        %1802 = vmatprep.subr.mxu0 0.0
        %1803 = vmatpush2.msra.mxu0 0.0
        %1804 = vmatprep.subr.mxu0 0.0
        %1805 = vmatpush2.msra.mxu0 0.0
        %1806 = vmatprep.subr.mxu0 0.0
        %1807 = vmatpush2.msra.mxu0 0.0
        %1808 = vmatprep.subr.mxu0 0.0
        %1809 = vmatpush2.msra.mxu0 0.0
        %1810 = vmatprep.subr.mxu0 0.0
        %1811 = vmatpush2.msra.mxu0 0.0
        %1812 = vmatprep.subr.mxu0 0.0
        %1813 = vmatpush2.msra.mxu0 0.0
        %1814 = vmatprep.subr.mxu0 0.0
        %1815 = vmatpush2.msra.mxu0 0.0
        %1816 = vmatprep.subr.mxu0 0.0
        %1817 = vmatpush2.msra.mxu0 0.0
        %1818 = vmatprep.subr.mxu0 0.0
        %1819 = vmatpush2.msra.mxu0 0.0
        %1820 = vmatprep.mubr.f32.mxu0 0.0
        %1821 = vmatmul.mubr.f32.gmra.mxu0 %v1745
        %v1822 = vpop.f32.mrf.mxu0
        %v1823 = vadd.f32 0.0, %v1822
        %v1824 = vpop.f32.mrf.mxu0
        %1825 = vmatprep.mubr.f32.mxu0 0.0
        %1826 = vmatmul.mubr.f32.gmra.mxu0 %v1748
        %v1827 = vpop.f32.mrf.mxu0
        %v1828 = vadd.f32 0.0, %v1827
        %v1829 = vpop.f32.mrf.mxu0
        %1830 = vmatprep.mubr.f32.mxu0 0.0
        %1831 = vmatmul.mubr.f32.gmra.mxu0 %v1751
        %v1832 = vpop.f32.mrf.mxu0
        %v1833 = vadd.f32 0.0, %v1832
        %v1834 = vpop.f32.mrf.mxu0
        %1835 = vmatprep.mubr.f32.mxu0 0.0
        %1836 = vmatmul.mubr.f32.gmra.mxu0 %v1754
        %v1837 = vpop.f32.mrf.mxu0
        %v1838 = vadd.f32 0.0, %v1837
        %v1839 = vpop.f32.mrf.mxu0
        %1840 = vdwg.mxu0
        %s1841 = sld [smem:[#allocation2 + $0x2]]
        %vm1842 = vcmp.ge.f32.partialorder %v1823, 0.0
        %vm1843 = vcmp.ge.f32.partialorder %v1828, 0.0
        %vm1844 = vcmp.ge.f32.partialorder %v1833, 0.0
        %vm1845 = vcmp.ge.f32.partialorder %v1838, 0.0
        %v1846 = vstv %s1841
        %v1847 = vmul.f32 %v1846, %v1823
        %v1848 = vmul.f32 %v1846, %v1828
        %v1849 = vmul.f32 %v1846, %v1833
        %v1850 = vmul.f32 %v1846, %v1838
        %v1851 = vsel %vm1842, %v1823, %v1847
        %v1852 = vsel %vm1843, %v1828, %v1848
        %v1853 = vsel %vm1844, %v1833, %v1849
        %v1854 = vsel %vm1845, %v1838, %v1850
        %v1855 = vadd.f32 %v1851, %v1852
        %v1856 = vadd.f32 %v1855, %v1853
        %v1857 = vadd.f32 %v1856, %v1854
        %1858 = vadd.xlane.f32.xlu0 %v1857
        %v1859 = vpop.xlane.xlu0 %1858
        %v1860 = vrot.slane %v1859, 4
        %v1861 = vadd.f32 %v1859, %v1860
        %v1862 = vrot.slane %v1861, 2
        %v1863 = vadd.f32 %v1861, %v1862
        %v1864 = vrot.slane %v1863, 1
        %v1865 = vadd.f32 %v1863, %v1864
        %s1866 = vtos %v1865
        %v1867 = vrcp.pop 4096.0
        %s1868 = vtos %v1867
        %s1869 = smul.f32 %s1866, %s1868
        %v1870 = vstv %s1869
        %v1871 = vsub.f32 %v1851, %v1870
        %v1872 = vsub.f32 %v1852, %v1870
        %v1873 = vsub.f32 %v1853, %v1870
        %v1874 = vsub.f32 %v1854, %v1870
        %v1875 = vmul.f32 %v1871, %v1871
        %v1876 = vmul.f32 %v1872, %v1872
        %v1877 = vmul.f32 %v1873, %v1873
        %v1878 = vmul.f32 %v1874, %v1874
        %v1879 = vadd.f32 %v1875, %v1876
        %v1880 = vadd.f32 %v1879, %v1877
        %v1881 = vadd.f32 %v1880, %v1878
        %1882 = vadd.xlane.f32.xlu0 %v1881
        %v1883 = vpop.xlane.xlu0 %1882
        %v1884 = vrot.slane %v1883, 4
        %v1885 = vadd.f32 %v1883, %v1884
        %v1886 = vrot.slane %v1885, 2
        %v1887 = vadd.f32 %v1885, %v1886
        %v1888 = vrot.slane %v1887, 1
        %v1889 = vadd.f32 %v1887, %v1888
        %s1890 = vtos %v1889
        %v1891 = vrcp.pop 4096.0
        %s1892 = vtos %v1891
        %s1893 = smul.f32 %s1890, %s1892
        %s1894 = sadd.f32 %s1893, 1e-08
        %v1895 = vstv %s1894
        %v1896 = vrsqrt.pop %v1895
        %s1897 = vtos %v1896
        %v1898 = vstv %s1897
        %v1899 = vmul.f32 %v1871, %v1898
        %v1900 = vmul.f32 %v1872, %v1898
        %v1901 = vmul.f32 %v1873, %v1898
        %v1902 = vmul.f32 %v1874, %v1898
        %s1903 = scalar_lea.vmem %s3, 64
        %v1904 = vld [vmem:[%s1903] sm:$0xff]
        %v1905 = vld [vmem:[%s1903 + $0x8] sm:$0xff]
        %v1906 = vld [vmem:[%s1903 + $0x10] sm:$0xff]
        %v1907 = vld [vmem:[%s1903 + $0x18] sm:$0xff]
        %1909 = vset.pattern.permute.xlu0 0
        %1910 = vperm.xlu0 %1909, %v1904
        %v1911 = vpop.permute.xlu0 %1910
        %1914 = vset.pattern.permute.xlu0 0
        %1915 = vperm.xlu0 %1914, %v1905
        %v1916 = vpop.permute.xlu0 %1915
        %1919 = vset.pattern.permute.xlu0 0
        %1920 = vperm.xlu0 %1919, %v1906
        %v1921 = vpop.permute.xlu0 %1920
        %1924 = vset.pattern.permute.xlu0 0
        %1925 = vperm.xlu0 %1924, %v1907
        %v1926 = vpop.permute.xlu0 %1925
        %v1928 = vmul.f32 %v1899, %v1911
        %v1929 = vmul.f32 %v1900, %v1916
        %v1930 = vmul.f32 %v1901, %v1921
        %v1931 = vmul.f32 %v1902, %v1926
        %s1932 = scalar_lea.vmem %s4, 64
        %v1933 = vld [vmem:[%s1932] sm:$0xff]
        %v1934 = vld [vmem:[%s1932 + $0x8] sm:$0xff]
        %v1935 = vld [vmem:[%s1932 + $0x10] sm:$0xff]
        %v1936 = vld [vmem:[%s1932 + $0x18] sm:$0xff]
        %1938 = vset.pattern.permute.xlu0 0
        %1939 = vperm.xlu0 %1938, %v1933
        %v1940 = vpop.permute.xlu0 %1939
        %1943 = vset.pattern.permute.xlu0 0
        %1944 = vperm.xlu0 %1943, %v1934
        %v1945 = vpop.permute.xlu0 %1944
        %1948 = vset.pattern.permute.xlu0 0
        %1949 = vperm.xlu0 %1948, %v1935
        %v1950 = vpop.permute.xlu0 %1949
        %1953 = vset.pattern.permute.xlu0 0
        %1954 = vperm.xlu0 %1953, %v1936
        %v1955 = vpop.permute.xlu0 %1954
        %v1957 = vadd.f32 %v1928, %v1940
        %v1958 = vadd.f32 %v1929, %v1945
        %v1959 = vadd.f32 %v1930, %v1950
        %v1960 = vadd.f32 %v1931, %v1955
        %1965 = vrot.lane.b32.xlu0 %v1957, 1
        %v1966 = vpop.permute.xlu0 %1965
        %1967 = vrot.lane.b32.xlu0 %v1958, 1
        %v1968 = vpop.permute.xlu0 %1967
        %1969 = vrot.lane.b32.xlu0 %v1959, 1
        %v1970 = vpop.permute.xlu0 %1969
        %1971 = vrot.lane.b32.xlu0 %v1960, 1
        %v1972 = vpop.permute.xlu0 %1971
        %v1977 = vsel %vm646, 0.0, %v1966
        %v1978 = vsel %vm646, 0.0, %v1968
        %v1979 = vsel %vm646, 0.0, %v1970
        %v1980 = vsel %vm646, 0.0, %v1972
        %v1981 = vsel %vm646, %v1966, 0.0
        %v1982 = vsel %vm646, %v1968, 0.0
        %v1983 = vsel %vm646, %v1970, 0.0
        %v1984 = vsel %vm646, %v1972, 0.0
        %s1985 = scalar_lea.vmem %s5, 64
        %v1986 = vld [vmem:[%s1985] sm:$0xff]
        %v1987 = vld [vmem:[%s1985 + $0x8] sm:$0xff]
        %v1988 = vld [vmem:[%s1985 + $0x10] sm:$0xff]
        %v1989 = vld [vmem:[%s1985 + $0x18] sm:$0xff]
        %1991 = vset.pattern.permute.xlu0 0
        %1992 = vperm.xlu0 %1991, %v1986
        %v1993 = vpop.permute.xlu0 %1992
        %1996 = vset.pattern.permute.xlu0 0
        %1997 = vperm.xlu0 %1996, %v1987
        %v1998 = vpop.permute.xlu0 %1997
        %2001 = vset.pattern.permute.xlu0 0
        %2002 = vperm.xlu0 %2001, %v1988
        %v2003 = vpop.permute.xlu0 %2002
        %2006 = vset.pattern.permute.xlu0 0
        %2007 = vperm.xlu0 %2006, %v1989
        %v2008 = vpop.permute.xlu0 %2007
        %v2010 = vmul.f32 %v1993, %v1977
        %v2011 = vmul.f32 %v1998, %v1978
        %v2012 = vmul.f32 %v2003, %v1979
        %v2013 = vmul.f32 %v2008, %v1980
        %2014 = vset.pattern.permute.xlu0 1
        %2015 = vperm.xlu0 %2014, %v1986
        %v2016 = vpop.permute.xlu0 %2015
        %2018 = vset.pattern.permute.xlu0 1
        %2019 = vperm.xlu0 %2018, %v1987
        %v2020 = vpop.permute.xlu0 %2019
        %2022 = vset.pattern.permute.xlu0 1
        %2023 = vperm.xlu0 %2022, %v1988
        %v2024 = vpop.permute.xlu0 %2023
        %2026 = vset.pattern.permute.xlu0 1
        %2027 = vperm.xlu0 %2026, %v1989
        %v2028 = vpop.permute.xlu0 %2027
        %v2030 = vmul.f32 %v2016, %v1977
        %v2031 = vmul.f32 %v2016, %v1981
        %v2032 = vmul.f32 %v2020, %v1978
        %v2033 = vmul.f32 %v2020, %v1982
        %v2034 = vmul.f32 %v2024, %v1979
        %v2035 = vmul.f32 %v2024, %v1983
        %v2036 = vmul.f32 %v2028, %v1980
        %v2037 = vmul.f32 %v2028, %v1984
        %2046 = vrot.lane.b32.xlu0 %v2030, 127
        %v2047 = vpop.permute.xlu0 %2046
        %2048 = vrot.lane.b32.xlu0 %v2031, 127
        %v2049 = vpop.permute.xlu0 %2048
        %2050 = vrot.lane.b32.xlu0 %v2032, 127
        %v2051 = vpop.permute.xlu0 %2050
        %2052 = vrot.lane.b32.xlu0 %v2033, 127
        %v2053 = vpop.permute.xlu0 %2052
        %2054 = vrot.lane.b32.xlu0 %v2034, 127
        %v2055 = vpop.permute.xlu0 %2054
        %2056 = vrot.lane.b32.xlu0 %v2035, 127
        %v2057 = vpop.permute.xlu0 %2056
        %2058 = vrot.lane.b32.xlu0 %v2036, 127
        %v2059 = vpop.permute.xlu0 %2058
        %2060 = vrot.lane.b32.xlu0 %v2037, 127
        %v2061 = vpop.permute.xlu0 %2060
        %v2062 = vsel %vm731, %v2047, %v2049
        %v2063 = vsel %vm731, %v2051, %v2053
        %v2064 = vsel %vm731, %v2055, %v2057
        %v2065 = vsel %vm731, %v2059, %v2061
        %v2070 = vadd.f32 %v2010, %v2062
        %v2071 = vadd.f32 %v2011, %v2063
        %v2072 = vadd.f32 %v2012, %v2064
        %v2073 = vadd.f32 %v2013, %v2065
        %2074 = vset.pattern.permute.xlu0 2
        %2075 = vperm.xlu0 %2074, %v1986
        %v2076 = vpop.permute.xlu0 %2075
        %2078 = vset.pattern.permute.xlu0 2
        %2079 = vperm.xlu0 %2078, %v1987
        %v2080 = vpop.permute.xlu0 %2079
        %2082 = vset.pattern.permute.xlu0 2
        %2083 = vperm.xlu0 %2082, %v1988
        %v2084 = vpop.permute.xlu0 %2083
        %2086 = vset.pattern.permute.xlu0 2
        %2087 = vperm.xlu0 %2086, %v1989
        %v2088 = vpop.permute.xlu0 %2087
        %v2090 = vmul.f32 %v2076, %v1977
        %v2091 = vmul.f32 %v2076, %v1981
        %v2092 = vmul.f32 %v2080, %v1978
        %v2093 = vmul.f32 %v2080, %v1982
        %v2094 = vmul.f32 %v2084, %v1979
        %v2095 = vmul.f32 %v2084, %v1983
        %v2096 = vmul.f32 %v2088, %v1980
        %v2097 = vmul.f32 %v2088, %v1984
        %2106 = vrot.lane.b32.xlu0 %v2090, 126
        %v2107 = vpop.permute.xlu0 %2106
        %2108 = vrot.lane.b32.xlu0 %v2091, 126
        %v2109 = vpop.permute.xlu0 %2108
        %2110 = vrot.lane.b32.xlu0 %v2092, 126
        %v2111 = vpop.permute.xlu0 %2110
        %2112 = vrot.lane.b32.xlu0 %v2093, 126
        %v2113 = vpop.permute.xlu0 %2112
        %2114 = vrot.lane.b32.xlu0 %v2094, 126
        %v2115 = vpop.permute.xlu0 %2114
        %2116 = vrot.lane.b32.xlu0 %v2095, 126
        %v2117 = vpop.permute.xlu0 %2116
        %2118 = vrot.lane.b32.xlu0 %v2096, 126
        %v2119 = vpop.permute.xlu0 %2118
        %2120 = vrot.lane.b32.xlu0 %v2097, 126
        %v2121 = vpop.permute.xlu0 %2120
        %v2122 = vsel %vm792, %v2107, %v2109
        %v2123 = vsel %vm792, %v2111, %v2113
        %v2124 = vsel %vm792, %v2115, %v2117
        %v2125 = vsel %vm792, %v2119, %v2121
        %v2130 = vadd.f32 %v2070, %v2122
        %v2131 = vadd.f32 %v2071, %v2123
        %v2132 = vadd.f32 %v2072, %v2124
        %v2133 = vadd.f32 %v2073, %v2125
        %s2134 = sld [smem:[#allocation5 + $0x2]]
        %vm2135 = vcmp.ge.f32.partialorder %v2130, 0.0
        %vm2136 = vcmp.ge.f32.partialorder %v2131, 0.0
        %vm2137 = vcmp.ge.f32.partialorder %v2132, 0.0
        %vm2138 = vcmp.ge.f32.partialorder %v2133, 0.0
        %v2139 = vstv %s2134
        %v2140 = vmul.f32 %v2139, %v2130
        %v2141 = vmul.f32 %v2139, %v2131
        %v2142 = vmul.f32 %v2139, %v2132
        %v2143 = vmul.f32 %v2139, %v2133
        %v2144 = vsel %vm2135, %v2130, %v2140
        %v2145 = vsel %vm2136, %v2131, %v2141
        %v2146 = vsel %vm2137, %v2132, %v2142
        %v2147 = vsel %vm2138, %v2133, %v2143
        %v2148 = vadd.f32 %v2144, %v2145
        %v2149 = vadd.f32 %v2148, %v2146
        %v2150 = vadd.f32 %v2149, %v2147
        %2151 = vadd.xlane.f32.xlu0 %v2150
        %v2152 = vpop.xlane.xlu0 %2151
        %v2153 = vrot.slane %v2152, 4
        %v2154 = vadd.f32 %v2152, %v2153
        %v2155 = vrot.slane %v2154, 2
        %v2156 = vadd.f32 %v2154, %v2155
        %v2157 = vrot.slane %v2156, 1
        %v2158 = vadd.f32 %v2156, %v2157
        %s2159 = vtos %v2158
        %v2160 = vrcp.pop 4096.0
        %s2161 = vtos %v2160
        %s2162 = smul.f32 %s2159, %s2161
        %v2163 = vstv %s2162
        %v2164 = vsub.f32 %v2144, %v2163
        %v2165 = vsub.f32 %v2145, %v2163
        %v2166 = vsub.f32 %v2146, %v2163
        %v2167 = vsub.f32 %v2147, %v2163
        %v2168 = vmul.f32 %v2164, %v2164
        %v2169 = vmul.f32 %v2165, %v2165
        %v2170 = vmul.f32 %v2166, %v2166
        %v2171 = vmul.f32 %v2167, %v2167
        %v2172 = vadd.f32 %v2168, %v2169
        %v2173 = vadd.f32 %v2172, %v2170
        %v2174 = vadd.f32 %v2173, %v2171
        %2175 = vadd.xlane.f32.xlu0 %v2174
        %v2176 = vpop.xlane.xlu0 %2175
        %v2177 = vrot.slane %v2176, 4
        %v2178 = vadd.f32 %v2176, %v2177
        %v2179 = vrot.slane %v2178, 2
        %v2180 = vadd.f32 %v2178, %v2179
        %v2181 = vrot.slane %v2180, 1
        %v2182 = vadd.f32 %v2180, %v2181
        %s2183 = vtos %v2182
        %v2184 = vrcp.pop 4096.0
        %s2185 = vtos %v2184
        %s2186 = smul.f32 %s2183, %s2185
        %s2187 = sadd.f32 %s2186, 1e-08
        %v2188 = vstv %s2187
        %v2189 = vrsqrt.pop %v2188
        %s2190 = vtos %v2189
        %v2191 = vstv %s2190
        %v2192 = vmul.f32 %v2164, %v2191
        %v2193 = vmul.f32 %v2165, %v2191
        %v2194 = vmul.f32 %v2166, %v2191
        %v2195 = vmul.f32 %v2167, %v2191
        %s2196 = scalar_lea.vmem %s7, 64
        %v2197 = vld [vmem:[%s2196] sm:$0xff]
        %v2198 = vld [vmem:[%s2196 + $0x8] sm:$0xff]
        %v2199 = vld [vmem:[%s2196 + $0x10] sm:$0xff]
        %v2200 = vld [vmem:[%s2196 + $0x18] sm:$0xff]
        %2202 = vset.pattern.permute.xlu0 0
        %2203 = vperm.xlu0 %2202, %v2197
        %v2204 = vpop.permute.xlu0 %2203
        %2207 = vset.pattern.permute.xlu0 0
        %2208 = vperm.xlu0 %2207, %v2198
        %v2209 = vpop.permute.xlu0 %2208
        %2212 = vset.pattern.permute.xlu0 0
        %2213 = vperm.xlu0 %2212, %v2199
        %v2214 = vpop.permute.xlu0 %2213
        %2217 = vset.pattern.permute.xlu0 0
        %2218 = vperm.xlu0 %2217, %v2200
        %v2219 = vpop.permute.xlu0 %2218
        %v2221 = vmul.f32 %v2192, %v2204
        %v2222 = vmul.f32 %v2193, %v2209
        %v2223 = vmul.f32 %v2194, %v2214
        %v2224 = vmul.f32 %v2195, %v2219
        %s2225 = scalar_lea.vmem %s8, 64
        %v2226 = vld [vmem:[%s2225] sm:$0xff]
        %v2227 = vld [vmem:[%s2225 + $0x8] sm:$0xff]
        %v2228 = vld [vmem:[%s2225 + $0x10] sm:$0xff]
        %v2229 = vld [vmem:[%s2225 + $0x18] sm:$0xff]
        %2231 = vset.pattern.permute.xlu0 0
        %2232 = vperm.xlu0 %2231, %v2226
        %v2233 = vpop.permute.xlu0 %2232
        %2236 = vset.pattern.permute.xlu0 0
        %2237 = vperm.xlu0 %2236, %v2227
        %v2238 = vpop.permute.xlu0 %2237
        %2241 = vset.pattern.permute.xlu0 0
        %2242 = vperm.xlu0 %2241, %v2228
        %v2243 = vpop.permute.xlu0 %2242
        %2246 = vset.pattern.permute.xlu0 0
        %2247 = vperm.xlu0 %2246, %v2229
        %v2248 = vpop.permute.xlu0 %2247
        %v2250 = vadd.f32 %v2221, %v2233
        %v2251 = vadd.f32 %v2222, %v2238
        %v2252 = vadd.f32 %v2223, %v2243
        %v2253 = vadd.f32 %v2224, %v2248
        %s2254 = scalar_lea.vmem %s9, 16
        %v2255 = vld [vmem:[%s2254] sm:$0xff]
        %v2257 = vsel %vm924, %v2255, 0
        %2259 = vmatprep.subr.mxu0 0.0
        %2260 = vmatpush1.msra.mxu0 0.0
        %2261 = vmatprep.subr.mxu0 0.0
        %2262 = vmatpush1.msra.mxu0 0.0
        %2263 = vmatprep.subr.mxu0 0.0
        %2264 = vmatpush1.msra.mxu0 0.0
        %2265 = vmatprep.subr.mxu0 0.0
        %2266 = vmatpush1.msra.mxu0 0.0
        %2267 = vmatprep.subr.mxu0 0.0
        %2268 = vmatpush1.msra.mxu0 0.0
        %2269 = vmatprep.subr.mxu0 0.0
        %2270 = vmatpush1.msra.mxu0 0.0
        %2271 = vmatprep.subr.mxu0 0.0
        %2272 = vmatpush1.msra.mxu0 0.0
        %2273 = vmatprep.subr.mxu0 0.0
        %2274 = vmatpush1.msra.mxu0 0.0
        %2275 = vmatprep.subr.mxu0 0.0
        %2276 = vmatpush1.msra.mxu0 0.0
        %2277 = vmatprep.subr.mxu0 0.0
        %2278 = vmatpush1.msra.mxu0 0.0
        %2279 = vmatprep.subr.mxu0 0.0
        %2280 = vmatpush1.msra.mxu0 0.0
        %2281 = vmatprep.subr.mxu0 0.0
        %2282 = vmatpush1.msra.mxu0 0.0
        %2283 = vmatprep.subr.mxu0 0.0
        %2284 = vmatpush1.msra.mxu0 %v2253
        %2285 = vmatprep.subr.mxu0 0.0
        %2286 = vmatpush1.msra.mxu0 %v2252
        %2287 = vmatprep.subr.mxu0 0.0
        %2288 = vmatpush1.msra.mxu0 %v2251
        %2289 = vmatprep.subr.mxu0 0.0
        %2290 = vmatpush1.msra.mxu0 %v2250
        %2291 = vmatprep.subr.mxu0 0.0
        %2292 = vmatpush2.msra.mxu0 0.0
        %2293 = vmatprep.subr.mxu0 0.0
        %2294 = vmatpush2.msra.mxu0 0.0
        %2295 = vmatprep.subr.mxu0 0.0
        %2296 = vmatpush2.msra.mxu0 0.0
        %2297 = vmatprep.subr.mxu0 0.0
        %2298 = vmatpush2.msra.mxu0 0.0
        %2299 = vmatprep.subr.mxu0 0.0
        %2300 = vmatpush2.msra.mxu0 0.0
        %2301 = vmatprep.subr.mxu0 0.0
        %2302 = vmatpush2.msra.mxu0 0.0
        %2303 = vmatprep.subr.mxu0 0.0
        %2304 = vmatpush2.msra.mxu0 0.0
        %2305 = vmatprep.subr.mxu0 0.0
        %2306 = vmatpush2.msra.mxu0 0.0
        %2307 = vmatprep.subr.mxu0 0.0
        %2308 = vmatpush2.msra.mxu0 0.0
        %2309 = vmatprep.subr.mxu0 0.0
        %2310 = vmatpush2.msra.mxu0 0.0
        %2311 = vmatprep.subr.mxu0 0.0
        %2312 = vmatpush2.msra.mxu0 0.0
        %2313 = vmatprep.subr.mxu0 0.0
        %2314 = vmatpush2.msra.mxu0 0.0
        %2315 = vmatprep.subr.mxu0 0.0
        %2316 = vmatpush2.msra.mxu0 0.0
        %2317 = vmatprep.subr.mxu0 0.0
        %2318 = vmatpush2.msra.mxu0 0.0
        %2319 = vmatprep.subr.mxu0 0.0
        %2320 = vmatpush2.msra.mxu0 0.0
        %2321 = vmatprep.subr.mxu0 0.0
        %2322 = vmatpush2.msra.mxu0 0.0
        %2323 = vmatprep.mubr.f32.mxu0 0.0
        %2324 = vmatmul.mubr.f32.gmra.mxu0 %v2257
        %v2325 = vpop.f32.mrf.mxu0
        %v2326 = vadd.f32 %v1736, %v2325
        %v2327 = vpop.f32.mrf.mxu0
        %2328 = vdwg.mxu0
        %s2329 = scalar_lea.vmem %s10, 16
        %v2330 = vld [vmem:[%s2329] sm:$0xff]
        %v2332 = vsel %vm924, %v2330, 0
        %2334 = vmatprep.subr.mxu0 0.0
        %2335 = vmatpush1.msra.mxu0 0.0
        %2336 = vmatprep.subr.mxu0 0.0
        %2337 = vmatpush1.msra.mxu0 0.0
        %2338 = vmatprep.subr.mxu0 0.0
        %2339 = vmatpush1.msra.mxu0 0.0
        %2340 = vmatprep.subr.mxu0 0.0
        %2341 = vmatpush1.msra.mxu0 0.0
        %2342 = vmatprep.subr.mxu0 0.0
        %2343 = vmatpush1.msra.mxu0 0.0
        %2344 = vmatprep.subr.mxu0 0.0
        %2345 = vmatpush1.msra.mxu0 0.0
        %2346 = vmatprep.subr.mxu0 0.0
        %2347 = vmatpush1.msra.mxu0 0.0
        %2348 = vmatprep.subr.mxu0 0.0
        %2349 = vmatpush1.msra.mxu0 0.0
        %2350 = vmatprep.subr.mxu0 0.0
        %2351 = vmatpush1.msra.mxu0 0.0
        %2352 = vmatprep.subr.mxu0 0.0
        %2353 = vmatpush1.msra.mxu0 0.0
        %2354 = vmatprep.subr.mxu0 0.0
        %2355 = vmatpush1.msra.mxu0 0.0
        %2356 = vmatprep.subr.mxu0 0.0
        %2357 = vmatpush1.msra.mxu0 0.0
        %2358 = vmatprep.subr.mxu0 0.0
        %2359 = vmatpush1.msra.mxu0 %v2253
        %2360 = vmatprep.subr.mxu0 0.0
        %2361 = vmatpush1.msra.mxu0 %v2252
        %2362 = vmatprep.subr.mxu0 0.0
        %2363 = vmatpush1.msra.mxu0 %v2251
        %2364 = vmatprep.subr.mxu0 0.0
        %2365 = vmatpush1.msra.mxu0 %v2250
        %2366 = vmatprep.subr.mxu0 0.0
        %2367 = vmatpush2.msra.mxu0 0.0
        %2368 = vmatprep.subr.mxu0 0.0
        %2369 = vmatpush2.msra.mxu0 0.0
        %2370 = vmatprep.subr.mxu0 0.0
        %2371 = vmatpush2.msra.mxu0 0.0
        %2372 = vmatprep.subr.mxu0 0.0
        %2373 = vmatpush2.msra.mxu0 0.0
        %2374 = vmatprep.subr.mxu0 0.0
        %2375 = vmatpush2.msra.mxu0 0.0
        %2376 = vmatprep.subr.mxu0 0.0
        %2377 = vmatpush2.msra.mxu0 0.0
        %2378 = vmatprep.subr.mxu0 0.0
        %2379 = vmatpush2.msra.mxu0 0.0
        %2380 = vmatprep.subr.mxu0 0.0
        %2381 = vmatpush2.msra.mxu0 0.0
        %2382 = vmatprep.subr.mxu0 0.0
        %2383 = vmatpush2.msra.mxu0 0.0
        %2384 = vmatprep.subr.mxu0 0.0
        %2385 = vmatpush2.msra.mxu0 0.0
        %2386 = vmatprep.subr.mxu0 0.0
        %2387 = vmatpush2.msra.mxu0 0.0
        %2388 = vmatprep.subr.mxu0 0.0
        %2389 = vmatpush2.msra.mxu0 0.0
        %2390 = vmatprep.subr.mxu0 0.0
        %2391 = vmatpush2.msra.mxu0 0.0
        %2392 = vmatprep.subr.mxu0 0.0
        %2393 = vmatpush2.msra.mxu0 0.0
        %2394 = vmatprep.subr.mxu0 0.0
        %2395 = vmatpush2.msra.mxu0 0.0
        %2396 = vmatprep.subr.mxu0 0.0
        %2397 = vmatpush2.msra.mxu0 0.0
        %2398 = vmatprep.mubr.f32.mxu0 0.0
        %2399 = vmatmul.mubr.f32.gmra.mxu0 %v2332
        %v2400 = vpop.f32.mrf.mxu0
        %v2401 = vadd.f32 %v1661, %v2400
        %v2402 = vpop.f32.mrf.mxu0
        %2403 = vdwg.mxu0
        %s2404 = scalar_lea.vmem %s1, 96
        %v2405 = vld [vmem:[%s2404] sm:$0xff]
        %v2406 = vld [vmem:[%s2404 + $0x8] sm:$0xff]
        %v2407 = vld [vmem:[%s2404 + $0x10] sm:$0xff]
        %v2408 = vld [vmem:[%s2404 + $0x18] sm:$0xff]
        %v2410 = vsel %vm414, %v2405, 0
        %v2413 = vsel %vm414, %v2406, 0
        %v2416 = vsel %vm414, %v2407, 0
        %v2419 = vsel %vm414, %v2408, 0
        %2421 = vmatprep.subr.mxu0 0.0
        %2422 = vmatpush1.msra.mxu0 0.0
        %2423 = vmatprep.subr.mxu0 0.0
        %2424 = vmatpush1.msra.mxu0 0.0
        %2425 = vmatprep.subr.mxu0 0.0
        %2426 = vmatpush1.msra.mxu0 0.0
        %2427 = vmatprep.subr.mxu0 0.0
        %2428 = vmatpush1.msra.mxu0 0.0
        %2429 = vmatprep.subr.mxu0 0.0
        %2430 = vmatpush1.msra.mxu0 0.0
        %2431 = vmatprep.subr.mxu0 0.0
        %2432 = vmatpush1.msra.mxu0 0.0
        %2433 = vmatprep.subr.mxu0 0.0
        %2434 = vmatpush1.msra.mxu0 0.0
        %2435 = vmatprep.subr.mxu0 0.0
        %2436 = vmatpush1.msra.mxu0 0.0
        %2437 = vmatprep.subr.mxu0 0.0
        %2438 = vmatpush1.msra.mxu0 0.0
        %2439 = vmatprep.subr.mxu0 0.0
        %2440 = vmatpush1.msra.mxu0 0.0
        %2441 = vmatprep.subr.mxu0 0.0
        %2442 = vmatpush1.msra.mxu0 0.0
        %2443 = vmatprep.subr.mxu0 0.0
        %2444 = vmatpush1.msra.mxu0 0.0
        %2445 = vmatprep.subr.mxu0 0.0
        %2446 = vmatpush1.msra.mxu0 0.0
        %2447 = vmatprep.subr.mxu0 0.0
        %2448 = vmatpush1.msra.mxu0 0.0
        %2449 = vmatprep.subr.mxu0 0.0
        %2450 = vmatpush1.msra.mxu0 0.0
        %2451 = vmatprep.subr.mxu0 0.0
        %2452 = vmatpush1.msra.mxu0 %v2401
        %2453 = vmatprep.subr.mxu0 0.0
        %2454 = vmatpush2.msra.mxu0 0.0
        %2455 = vmatprep.subr.mxu0 0.0
        %2456 = vmatpush2.msra.mxu0 0.0
        %2457 = vmatprep.subr.mxu0 0.0
        %2458 = vmatpush2.msra.mxu0 0.0
        %2459 = vmatprep.subr.mxu0 0.0
        %2460 = vmatpush2.msra.mxu0 0.0
        %2461 = vmatprep.subr.mxu0 0.0
        %2462 = vmatpush2.msra.mxu0 0.0
        %2463 = vmatprep.subr.mxu0 0.0
        %2464 = vmatpush2.msra.mxu0 0.0
        %2465 = vmatprep.subr.mxu0 0.0
        %2466 = vmatpush2.msra.mxu0 0.0
        %2467 = vmatprep.subr.mxu0 0.0
        %2468 = vmatpush2.msra.mxu0 0.0
        %2469 = vmatprep.subr.mxu0 0.0
        %2470 = vmatpush2.msra.mxu0 0.0
        %2471 = vmatprep.subr.mxu0 0.0
        %2472 = vmatpush2.msra.mxu0 0.0
        %2473 = vmatprep.subr.mxu0 0.0
        %2474 = vmatpush2.msra.mxu0 0.0
        %2475 = vmatprep.subr.mxu0 0.0
        %2476 = vmatpush2.msra.mxu0 0.0
        %2477 = vmatprep.subr.mxu0 0.0
        %2478 = vmatpush2.msra.mxu0 0.0
        %2479 = vmatprep.subr.mxu0 0.0
        %2480 = vmatpush2.msra.mxu0 0.0
        %2481 = vmatprep.subr.mxu0 0.0
        %2482 = vmatpush2.msra.mxu0 0.0
        %2483 = vmatprep.subr.mxu0 0.0
        %2484 = vmatpush2.msra.mxu0 0.0
        %2485 = vmatprep.mubr.f32.mxu0 0.0
        %2486 = vmatmul.mubr.f32.gmra.mxu0 %v2410
        %v2487 = vpop.f32.mrf.mxu0
        %v2488 = vadd.f32 0.0, %v2487
        %v2489 = vpop.f32.mrf.mxu0
        %2490 = vmatprep.mubr.f32.mxu0 0.0
        %2491 = vmatmul.mubr.f32.gmra.mxu0 %v2413
        %v2492 = vpop.f32.mrf.mxu0
        %v2493 = vadd.f32 0.0, %v2492
        %v2494 = vpop.f32.mrf.mxu0
        %2495 = vmatprep.mubr.f32.mxu0 0.0
        %2496 = vmatmul.mubr.f32.gmra.mxu0 %v2416
        %v2497 = vpop.f32.mrf.mxu0
        %v2498 = vadd.f32 0.0, %v2497
        %v2499 = vpop.f32.mrf.mxu0
        %2500 = vmatprep.mubr.f32.mxu0 0.0
        %2501 = vmatmul.mubr.f32.gmra.mxu0 %v2419
        %v2502 = vpop.f32.mrf.mxu0
        %v2503 = vadd.f32 0.0, %v2502
        %v2504 = vpop.f32.mrf.mxu0
        %2505 = vdwg.mxu0
        %s2506 = sld [smem:[#allocation2 + $0x3]]
        %vm2507 = vcmp.ge.f32.partialorder %v2488, 0.0
        %vm2508 = vcmp.ge.f32.partialorder %v2493, 0.0
        %vm2509 = vcmp.ge.f32.partialorder %v2498, 0.0
        %vm2510 = vcmp.ge.f32.partialorder %v2503, 0.0
        %v2511 = vstv %s2506
        %v2512 = vmul.f32 %v2511, %v2488
        %v2513 = vmul.f32 %v2511, %v2493
        %v2514 = vmul.f32 %v2511, %v2498
        %v2515 = vmul.f32 %v2511, %v2503
        %v2516 = vsel %vm2507, %v2488, %v2512
        %v2517 = vsel %vm2508, %v2493, %v2513
        %v2518 = vsel %vm2509, %v2498, %v2514
        %v2519 = vsel %vm2510, %v2503, %v2515
        %v2520 = vadd.f32 %v2516, %v2517
        %v2521 = vadd.f32 %v2520, %v2518
        %v2522 = vadd.f32 %v2521, %v2519
        %2523 = vadd.xlane.f32.xlu0 %v2522
        %v2524 = vpop.xlane.xlu0 %2523
        %v2525 = vrot.slane %v2524, 4
        %v2526 = vadd.f32 %v2524, %v2525
        %v2527 = vrot.slane %v2526, 2
        %v2528 = vadd.f32 %v2526, %v2527
        %v2529 = vrot.slane %v2528, 1
        %v2530 = vadd.f32 %v2528, %v2529
        %s2531 = vtos %v2530
        %v2532 = vrcp.pop 4096.0
        %s2533 = vtos %v2532
        %s2534 = smul.f32 %s2531, %s2533
        %v2535 = vstv %s2534
        %v2536 = vsub.f32 %v2516, %v2535
        %v2537 = vsub.f32 %v2517, %v2535
        %v2538 = vsub.f32 %v2518, %v2535
        %v2539 = vsub.f32 %v2519, %v2535
        %v2540 = vmul.f32 %v2536, %v2536
        %v2541 = vmul.f32 %v2537, %v2537
        %v2542 = vmul.f32 %v2538, %v2538
        %v2543 = vmul.f32 %v2539, %v2539
        %v2544 = vadd.f32 %v2540, %v2541
        %v2545 = vadd.f32 %v2544, %v2542
        %v2546 = vadd.f32 %v2545, %v2543
        %2547 = vadd.xlane.f32.xlu0 %v2546
        %v2548 = vpop.xlane.xlu0 %2547
        %v2549 = vrot.slane %v2548, 4
        %v2550 = vadd.f32 %v2548, %v2549
        %v2551 = vrot.slane %v2550, 2
        %v2552 = vadd.f32 %v2550, %v2551
        %v2553 = vrot.slane %v2552, 1
        %v2554 = vadd.f32 %v2552, %v2553
        %s2555 = vtos %v2554
        %v2556 = vrcp.pop 4096.0
        %s2557 = vtos %v2556
        %s2558 = smul.f32 %s2555, %s2557
        %s2559 = sadd.f32 %s2558, 1e-08
        %v2560 = vstv %s2559
        %v2561 = vrsqrt.pop %v2560
        %s2562 = vtos %v2561
        %v2563 = vstv %s2562
        %v2564 = vmul.f32 %v2536, %v2563
        %v2565 = vmul.f32 %v2537, %v2563
        %v2566 = vmul.f32 %v2538, %v2563
        %v2567 = vmul.f32 %v2539, %v2563
        %s2568 = scalar_lea.vmem %s3, 96
        %v2569 = vld [vmem:[%s2568] sm:$0xff]
        %v2570 = vld [vmem:[%s2568 + $0x8] sm:$0xff]
        %v2571 = vld [vmem:[%s2568 + $0x10] sm:$0xff]
        %v2572 = vld [vmem:[%s2568 + $0x18] sm:$0xff]
        %2574 = vset.pattern.permute.xlu0 0
        %2575 = vperm.xlu0 %2574, %v2569
        %v2576 = vpop.permute.xlu0 %2575
        %2579 = vset.pattern.permute.xlu0 0
        %2580 = vperm.xlu0 %2579, %v2570
        %v2581 = vpop.permute.xlu0 %2580
        %2584 = vset.pattern.permute.xlu0 0
        %2585 = vperm.xlu0 %2584, %v2571
        %v2586 = vpop.permute.xlu0 %2585
        %2589 = vset.pattern.permute.xlu0 0
        %2590 = vperm.xlu0 %2589, %v2572
        %v2591 = vpop.permute.xlu0 %2590
        %v2593 = vmul.f32 %v2564, %v2576
        %v2594 = vmul.f32 %v2565, %v2581
        %v2595 = vmul.f32 %v2566, %v2586
        %v2596 = vmul.f32 %v2567, %v2591
        %s2597 = scalar_lea.vmem %s4, 96
        %v2598 = vld [vmem:[%s2597] sm:$0xff]
        %v2599 = vld [vmem:[%s2597 + $0x8] sm:$0xff]
        %v2600 = vld [vmem:[%s2597 + $0x10] sm:$0xff]
        %v2601 = vld [vmem:[%s2597 + $0x18] sm:$0xff]
        %2603 = vset.pattern.permute.xlu0 0
        %2604 = vperm.xlu0 %2603, %v2598
        %v2605 = vpop.permute.xlu0 %2604
        %2608 = vset.pattern.permute.xlu0 0
        %2609 = vperm.xlu0 %2608, %v2599
        %v2610 = vpop.permute.xlu0 %2609
        %2613 = vset.pattern.permute.xlu0 0
        %2614 = vperm.xlu0 %2613, %v2600
        %v2615 = vpop.permute.xlu0 %2614
        %2618 = vset.pattern.permute.xlu0 0
        %2619 = vperm.xlu0 %2618, %v2601
        %v2620 = vpop.permute.xlu0 %2619
        %v2622 = vadd.f32 %v2593, %v2605
        %v2623 = vadd.f32 %v2594, %v2610
        %v2624 = vadd.f32 %v2595, %v2615
        %v2625 = vadd.f32 %v2596, %v2620
        %2630 = vrot.lane.b32.xlu0 %v2622, 2
        %v2631 = vpop.permute.xlu0 %2630
        %2632 = vrot.lane.b32.xlu0 %v2623, 2
        %v2633 = vpop.permute.xlu0 %2632
        %2634 = vrot.lane.b32.xlu0 %v2624, 2
        %v2635 = vpop.permute.xlu0 %2634
        %2636 = vrot.lane.b32.xlu0 %v2625, 2
        %v2637 = vpop.permute.xlu0 %2636
        %v2642 = vsel %vm1310, 0.0, %v2631
        %v2643 = vsel %vm1310, 0.0, %v2633
        %v2644 = vsel %vm1310, 0.0, %v2635
        %v2645 = vsel %vm1310, 0.0, %v2637
        %v2646 = vsel %vm1310, %v2631, 0.0
        %v2647 = vsel %vm1310, %v2633, 0.0
        %v2648 = vsel %vm1310, %v2635, 0.0
        %v2649 = vsel %vm1310, %v2637, 0.0
        %s2650 = scalar_lea.vmem %s5, 96
        %v2651 = vld [vmem:[%s2650] sm:$0xff]
        %v2652 = vld [vmem:[%s2650 + $0x8] sm:$0xff]
        %v2653 = vld [vmem:[%s2650 + $0x10] sm:$0xff]
        %v2654 = vld [vmem:[%s2650 + $0x18] sm:$0xff]
        %2656 = vset.pattern.permute.xlu0 0
        %2657 = vperm.xlu0 %2656, %v2651
        %v2658 = vpop.permute.xlu0 %2657
        %2661 = vset.pattern.permute.xlu0 0
        %2662 = vperm.xlu0 %2661, %v2652
        %v2663 = vpop.permute.xlu0 %2662
        %2666 = vset.pattern.permute.xlu0 0
        %2667 = vperm.xlu0 %2666, %v2653
        %v2668 = vpop.permute.xlu0 %2667
        %2671 = vset.pattern.permute.xlu0 0
        %2672 = vperm.xlu0 %2671, %v2654
        %v2673 = vpop.permute.xlu0 %2672
        %v2675 = vmul.f32 %v2658, %v2642
        %v2676 = vmul.f32 %v2663, %v2643
        %v2677 = vmul.f32 %v2668, %v2644
        %v2678 = vmul.f32 %v2673, %v2645
        %2679 = vset.pattern.permute.xlu0 1
        %2680 = vperm.xlu0 %2679, %v2651
        %v2681 = vpop.permute.xlu0 %2680
        %2683 = vset.pattern.permute.xlu0 1
        %2684 = vperm.xlu0 %2683, %v2652
        %v2685 = vpop.permute.xlu0 %2684
        %2687 = vset.pattern.permute.xlu0 1
        %2688 = vperm.xlu0 %2687, %v2653
        %v2689 = vpop.permute.xlu0 %2688
        %2691 = vset.pattern.permute.xlu0 1
        %2692 = vperm.xlu0 %2691, %v2654
        %v2693 = vpop.permute.xlu0 %2692
        %v2695 = vmul.f32 %v2681, %v2642
        %v2696 = vmul.f32 %v2681, %v2646
        %v2697 = vmul.f32 %v2685, %v2643
        %v2698 = vmul.f32 %v2685, %v2647
        %v2699 = vmul.f32 %v2689, %v2644
        %v2700 = vmul.f32 %v2689, %v2648
        %v2701 = vmul.f32 %v2693, %v2645
        %v2702 = vmul.f32 %v2693, %v2649
        %2711 = vrot.lane.b32.xlu0 %v2695, 126
        %v2712 = vpop.permute.xlu0 %2711
        %2713 = vrot.lane.b32.xlu0 %v2696, 126
        %v2714 = vpop.permute.xlu0 %2713
        %2715 = vrot.lane.b32.xlu0 %v2697, 126
        %v2716 = vpop.permute.xlu0 %2715
        %2717 = vrot.lane.b32.xlu0 %v2698, 126
        %v2718 = vpop.permute.xlu0 %2717
        %2719 = vrot.lane.b32.xlu0 %v2699, 126
        %v2720 = vpop.permute.xlu0 %2719
        %2721 = vrot.lane.b32.xlu0 %v2700, 126
        %v2722 = vpop.permute.xlu0 %2721
        %2723 = vrot.lane.b32.xlu0 %v2701, 126
        %v2724 = vpop.permute.xlu0 %2723
        %2725 = vrot.lane.b32.xlu0 %v2702, 126
        %v2726 = vpop.permute.xlu0 %2725
        %v2727 = vsel %vm792, %v2712, %v2714
        %v2728 = vsel %vm792, %v2716, %v2718
        %v2729 = vsel %vm792, %v2720, %v2722
        %v2730 = vsel %vm792, %v2724, %v2726
        %v2735 = vadd.f32 %v2675, %v2727
        %v2736 = vadd.f32 %v2676, %v2728
        %v2737 = vadd.f32 %v2677, %v2729
        %v2738 = vadd.f32 %v2678, %v2730
        %2739 = vset.pattern.permute.xlu0 2
        %2740 = vperm.xlu0 %2739, %v2651
        %v2741 = vpop.permute.xlu0 %2740
        %2743 = vset.pattern.permute.xlu0 2
        %2744 = vperm.xlu0 %2743, %v2652
        %v2745 = vpop.permute.xlu0 %2744
        %2747 = vset.pattern.permute.xlu0 2
        %2748 = vperm.xlu0 %2747, %v2653
        %v2749 = vpop.permute.xlu0 %2748
        %2751 = vset.pattern.permute.xlu0 2
        %2752 = vperm.xlu0 %2751, %v2654
        %v2753 = vpop.permute.xlu0 %2752
        %v2755 = vmul.f32 %v2741, %v2642
        %v2756 = vmul.f32 %v2741, %v2646
        %v2757 = vmul.f32 %v2745, %v2643
        %v2758 = vmul.f32 %v2745, %v2647
        %v2759 = vmul.f32 %v2749, %v2644
        %v2760 = vmul.f32 %v2749, %v2648
        %v2761 = vmul.f32 %v2753, %v2645
        %v2762 = vmul.f32 %v2753, %v2649
        %2771 = vrot.lane.b32.xlu0 %v2755, 124
        %v2772 = vpop.permute.xlu0 %2771
        %2773 = vrot.lane.b32.xlu0 %v2756, 124
        %v2774 = vpop.permute.xlu0 %2773
        %2775 = vrot.lane.b32.xlu0 %v2757, 124
        %v2776 = vpop.permute.xlu0 %2775
        %2777 = vrot.lane.b32.xlu0 %v2758, 124
        %v2778 = vpop.permute.xlu0 %2777
        %2779 = vrot.lane.b32.xlu0 %v2759, 124
        %v2780 = vpop.permute.xlu0 %2779
        %2781 = vrot.lane.b32.xlu0 %v2760, 124
        %v2782 = vpop.permute.xlu0 %2781
        %2783 = vrot.lane.b32.xlu0 %v2761, 124
        %v2784 = vpop.permute.xlu0 %2783
        %2785 = vrot.lane.b32.xlu0 %v2762, 124
        %v2786 = vpop.permute.xlu0 %2785
        %v2787 = vsel %vm1456, %v2772, %v2774
        %v2788 = vsel %vm1456, %v2776, %v2778
        %v2789 = vsel %vm1456, %v2780, %v2782
        %v2790 = vsel %vm1456, %v2784, %v2786
        %v2795 = vadd.f32 %v2735, %v2787
        %v2796 = vadd.f32 %v2736, %v2788
        %v2797 = vadd.f32 %v2737, %v2789
        %v2798 = vadd.f32 %v2738, %v2790
        %s2799 = sld [smem:[#allocation5 + $0x3]]
        %vm2800 = vcmp.ge.f32.partialorder %v2795, 0.0
        %vm2801 = vcmp.ge.f32.partialorder %v2796, 0.0
        %vm2802 = vcmp.ge.f32.partialorder %v2797, 0.0
        %vm2803 = vcmp.ge.f32.partialorder %v2798, 0.0
        %v2804 = vstv %s2799
        %v2805 = vmul.f32 %v2804, %v2795
        %v2806 = vmul.f32 %v2804, %v2796
        %v2807 = vmul.f32 %v2804, %v2797
        %v2808 = vmul.f32 %v2804, %v2798
        %v2809 = vsel %vm2800, %v2795, %v2805
        %v2810 = vsel %vm2801, %v2796, %v2806
        %v2811 = vsel %vm2802, %v2797, %v2807
        %v2812 = vsel %vm2803, %v2798, %v2808
        %v2813 = vadd.f32 %v2809, %v2810
        %v2814 = vadd.f32 %v2813, %v2811
        %v2815 = vadd.f32 %v2814, %v2812
        %2816 = vadd.xlane.f32.xlu0 %v2815
        %v2817 = vpop.xlane.xlu0 %2816
        %v2818 = vrot.slane %v2817, 4
        %v2819 = vadd.f32 %v2817, %v2818
        %v2820 = vrot.slane %v2819, 2
        %v2821 = vadd.f32 %v2819, %v2820
        %v2822 = vrot.slane %v2821, 1
        %v2823 = vadd.f32 %v2821, %v2822
        %s2824 = vtos %v2823
        %v2825 = vrcp.pop 4096.0
        %s2826 = vtos %v2825
        %s2827 = smul.f32 %s2824, %s2826
        %v2828 = vstv %s2827
        %v2829 = vsub.f32 %v2809, %v2828
        %v2830 = vsub.f32 %v2810, %v2828
        %v2831 = vsub.f32 %v2811, %v2828
        %v2832 = vsub.f32 %v2812, %v2828
        %v2833 = vmul.f32 %v2829, %v2829
        %v2834 = vmul.f32 %v2830, %v2830
        %v2835 = vmul.f32 %v2831, %v2831
        %v2836 = vmul.f32 %v2832, %v2832
        %v2837 = vadd.f32 %v2833, %v2834
        %v2838 = vadd.f32 %v2837, %v2835
        %v2839 = vadd.f32 %v2838, %v2836
        %2840 = vadd.xlane.f32.xlu0 %v2839
        %v2841 = vpop.xlane.xlu0 %2840
        %v2842 = vrot.slane %v2841, 4
        %v2843 = vadd.f32 %v2841, %v2842
        %v2844 = vrot.slane %v2843, 2
        %v2845 = vadd.f32 %v2843, %v2844
        %v2846 = vrot.slane %v2845, 1
        %v2847 = vadd.f32 %v2845, %v2846
        %s2848 = vtos %v2847
        %v2849 = vrcp.pop 4096.0
        %s2850 = vtos %v2849
        %s2851 = smul.f32 %s2848, %s2850
        %s2852 = sadd.f32 %s2851, 1e-08
        %v2853 = vstv %s2852
        %v2854 = vrsqrt.pop %v2853
        %s2855 = vtos %v2854
        %v2856 = vstv %s2855
        %v2857 = vmul.f32 %v2829, %v2856
        %v2858 = vmul.f32 %v2830, %v2856
        %v2859 = vmul.f32 %v2831, %v2856
        %v2860 = vmul.f32 %v2832, %v2856
        %s2861 = scalar_lea.vmem %s7, 96
        %v2862 = vld [vmem:[%s2861] sm:$0xff]
        %v2863 = vld [vmem:[%s2861 + $0x8] sm:$0xff]
        %v2864 = vld [vmem:[%s2861 + $0x10] sm:$0xff]
        %v2865 = vld [vmem:[%s2861 + $0x18] sm:$0xff]
        %2867 = vset.pattern.permute.xlu0 0
        %2868 = vperm.xlu0 %2867, %v2862
        %v2869 = vpop.permute.xlu0 %2868
        %2872 = vset.pattern.permute.xlu0 0
        %2873 = vperm.xlu0 %2872, %v2863
        %v2874 = vpop.permute.xlu0 %2873
        %2877 = vset.pattern.permute.xlu0 0
        %2878 = vperm.xlu0 %2877, %v2864
        %v2879 = vpop.permute.xlu0 %2878
        %2882 = vset.pattern.permute.xlu0 0
        %2883 = vperm.xlu0 %2882, %v2865
        %v2884 = vpop.permute.xlu0 %2883
        %v2886 = vmul.f32 %v2857, %v2869
        %v2887 = vmul.f32 %v2858, %v2874
        %v2888 = vmul.f32 %v2859, %v2879
        %v2889 = vmul.f32 %v2860, %v2884
        %s2890 = scalar_lea.vmem %s8, 96
        %v2891 = vld [vmem:[%s2890] sm:$0xff]
        %v2892 = vld [vmem:[%s2890 + $0x8] sm:$0xff]
        %v2893 = vld [vmem:[%s2890 + $0x10] sm:$0xff]
        %v2894 = vld [vmem:[%s2890 + $0x18] sm:$0xff]
        %2896 = vset.pattern.permute.xlu0 0
        %2897 = vperm.xlu0 %2896, %v2891
        %v2898 = vpop.permute.xlu0 %2897
        %2901 = vset.pattern.permute.xlu0 0
        %2902 = vperm.xlu0 %2901, %v2892
        %v2903 = vpop.permute.xlu0 %2902
        %2906 = vset.pattern.permute.xlu0 0
        %2907 = vperm.xlu0 %2906, %v2893
        %v2908 = vpop.permute.xlu0 %2907
        %2911 = vset.pattern.permute.xlu0 0
        %2912 = vperm.xlu0 %2911, %v2894
        %v2913 = vpop.permute.xlu0 %2912
        %v2915 = vadd.f32 %v2886, %v2898
        %v2916 = vadd.f32 %v2887, %v2903
        %v2917 = vadd.f32 %v2888, %v2908
        %v2918 = vadd.f32 %v2889, %v2913
        %s2919 = scalar_lea.vmem %s10, 24
        %v2920 = vld [vmem:[%s2919] sm:$0xff]
        %v2922 = vsel %vm924, %v2920, 0
        %2924 = vmatprep.subr.mxu0 0.0
        %2925 = vmatpush1.msra.mxu0 0.0
        %2926 = vmatprep.subr.mxu0 0.0
        %2927 = vmatpush1.msra.mxu0 0.0
        %2928 = vmatprep.subr.mxu0 0.0
        %2929 = vmatpush1.msra.mxu0 0.0
        %2930 = vmatprep.subr.mxu0 0.0
        %2931 = vmatpush1.msra.mxu0 0.0
        %2932 = vmatprep.subr.mxu0 0.0
        %2933 = vmatpush1.msra.mxu0 0.0
        %2934 = vmatprep.subr.mxu0 0.0
        %2935 = vmatpush1.msra.mxu0 0.0
        %2936 = vmatprep.subr.mxu0 0.0
        %2937 = vmatpush1.msra.mxu0 0.0
        %2938 = vmatprep.subr.mxu0 0.0
        %2939 = vmatpush1.msra.mxu0 0.0
        %2940 = vmatprep.subr.mxu0 0.0
        %2941 = vmatpush1.msra.mxu0 0.0
        %2942 = vmatprep.subr.mxu0 0.0
        %2943 = vmatpush1.msra.mxu0 0.0
        %2944 = vmatprep.subr.mxu0 0.0
        %2945 = vmatpush1.msra.mxu0 0.0
        %2946 = vmatprep.subr.mxu0 0.0
        %2947 = vmatpush1.msra.mxu0 0.0
        %2948 = vmatprep.subr.mxu0 0.0
        %2949 = vmatpush1.msra.mxu0 %v2918
        %2950 = vmatprep.subr.mxu0 0.0
        %2951 = vmatpush1.msra.mxu0 %v2917
        %2952 = vmatprep.subr.mxu0 0.0
        %2953 = vmatpush1.msra.mxu0 %v2916
        %2954 = vmatprep.subr.mxu0 0.0
        %2955 = vmatpush1.msra.mxu0 %v2915
        %2956 = vmatprep.subr.mxu0 0.0
        %2957 = vmatpush2.msra.mxu0 0.0
        %2958 = vmatprep.subr.mxu0 0.0
        %2959 = vmatpush2.msra.mxu0 0.0
        %2960 = vmatprep.subr.mxu0 0.0
        %2961 = vmatpush2.msra.mxu0 0.0
        %2962 = vmatprep.subr.mxu0 0.0
        %2963 = vmatpush2.msra.mxu0 0.0
        %2964 = vmatprep.subr.mxu0 0.0
        %2965 = vmatpush2.msra.mxu0 0.0
        %2966 = vmatprep.subr.mxu0 0.0
        %2967 = vmatpush2.msra.mxu0 0.0
        %2968 = vmatprep.subr.mxu0 0.0
        %2969 = vmatpush2.msra.mxu0 0.0
        %2970 = vmatprep.subr.mxu0 0.0
        %2971 = vmatpush2.msra.mxu0 0.0
        %2972 = vmatprep.subr.mxu0 0.0
        %2973 = vmatpush2.msra.mxu0 0.0
        %2974 = vmatprep.subr.mxu0 0.0
        %2975 = vmatpush2.msra.mxu0 0.0
        %2976 = vmatprep.subr.mxu0 0.0
        %2977 = vmatpush2.msra.mxu0 0.0
        %2978 = vmatprep.subr.mxu0 0.0
        %2979 = vmatpush2.msra.mxu0 0.0
        %2980 = vmatprep.subr.mxu0 0.0
        %2981 = vmatpush2.msra.mxu0 0.0
        %2982 = vmatprep.subr.mxu0 0.0
        %2983 = vmatpush2.msra.mxu0 0.0
        %2984 = vmatprep.subr.mxu0 0.0
        %2985 = vmatpush2.msra.mxu0 0.0
        %2986 = vmatprep.subr.mxu0 0.0
        %2987 = vmatpush2.msra.mxu0 0.0
        %2988 = vmatprep.mubr.f32.mxu0 0.0
        %2989 = vmatmul.mubr.f32.gmra.mxu0 %v2922
        %v2990 = vpop.f32.mrf.mxu0
        %v2991 = vadd.f32 %v2326, %v2990
        %v2992 = vpop.f32.mrf.mxu0
        %2993 = vdwg.mxu0
        %2994 = vst [vmem:[%s404] sm:$0xff] %v2991
        %s2995 = sand.u32 %s271, 1
        %s2996 = scalar_lea.sflag [#allocation3], %s2995
        %s2997 = sand.u32 %s271, 1
        %s2998 = smul.addr %s2997, 8
        %s2999 = scalar_lea.vmem [#allocation7], %s2998
        // Predicated region
        $region73: #{tpu_custom_call.1} parent=63 // pred_check
          %p3000 = pneg %p281
        $region74: #{tpu_custom_call.1} parent=63 // pred_check_branch
          %3002 = sbr.rel (%p3000) target = $region76
        $region75: #{tpu_custom_call.1} parent=63 // pred_region
          %s3004 = ssub.s32 128, 128
          %3005 = vsyncadd %s2996, %s3004
          %s3006 = smul.addr %s27, 128
          %s3007 = scalar_lea.hbm %s11, %s3006
          %s3009 = sshll.u32 %s2999, 4
          %s3010 = int_to_ptr.vmem [resolvable:$true] %s3009
          %3012 = dma.vmem_to_hbm [thread:$0]  %s3010, 128, %s3007, %s2996
        $region76: #{tpu_custom_call.1} parent=63 // pred_fallthru
          _
      $region64: #{tpu_custom_call.1} parent=5 // pred_fallthru
        _
      %p3013 = scmp.le.s32.totalorder 2, %s22
      // Predicated region
      $region77: #{tpu_custom_call.1} parent=5 // pred_check
        %p3014 = pneg %p3013
      $region78: #{tpu_custom_call.1} parent=5 // pred_check_branch
        %3016 = sbr.rel (%p3014) target = $region80
      $region79: #{tpu_custom_call.1} parent=5 // pred_region
        %s3017 = ssub.s32 %s22, 2
        // Predicated region
        $region81: #{tpu_custom_call.1} parent=79 // pred_check
          %p3018 = pneg %p287
        $region82: #{tpu_custom_call.1} parent=79 // pred_check_branch
          %3020 = sbr.rel (%p3018) target = $region84
        $region83: #{tpu_custom_call.1} parent=79 // pred_region
          %s3021 = sand.u32 %s272, 1
          %s3022 = scalar_lea.sflag [#allocation3], %s3021
          %s3023 = sand.u32 %s272, 1
          %s3024 = smul.addr %s3023, 8
          %s3025 = scalar_lea.vmem [#allocation7], %s3024
          %3026 = dma.done %s3022, 128
        $region84: #{tpu_custom_call.1} parent=79 // pred_fallthru
          _
      $region80: #{tpu_custom_call.1} parent=5 // pred_fallthru
        _
    $region6: #{tpu_custom_call.1} parent=1 // loop_footer
      %s26 = sadd.s32 1, %s22
    $region7: #{tpu_custom_call.1} parent=1 // loop_footer_branch
      %21 = sbr.rel target = $region3
    $region8: #{tpu_custom_call.1} parent=1 // loop_exit
      _
    %3027 = vsyncpa [#allocation3], 1
    %s3028 = scalar_lea.sflag [#allocation3], 1
    %3029 = vsyncpa %s3028, 1
    %3030 = vsyncpa [#allocation4], 1
    %s3031 = scalar_lea.sflag [#allocation4], 1
    %3032 = vsyncpa %s3031, 1
    %3033 = vsyncpa [#allocation6], 1

</llo_original>
